<compile_context>
chip_gen: v5e
topology: v5e:2x2
jax: 0.10.0
libtpu: 0.0.40
codegen_flags: <defaults>
</compile_context>

<pallas_src>
import functools

import jax
import jax.numpy as jnp
from jax.experimental import pallas as pl
from jax.experimental.pallas import tpu as pltpu


def _round_up(x, m):
    return (x + m - 1) // m * m


# ----------------------------------------------------------------------------
# Static shape plan (mirrors ConvClassifier._make_feature_extractor)
# ----------------------------------------------------------------------------
def build_plan(in_size, filters, pool_every):
    C, H, W = in_size
    plan = []
    fi = 0
    n_blocks = len(filters) // pool_every
    for _ in range(n_blocks):
        convs = []
        for _ in range(pool_every):
            Cout = filters[fi]
            convs.append((C, Cout, H, W))  # 3x3, stride 1, pad 1: spatial unchanged
            C = Cout
            fi += 1
        # 2x2 / stride-2 pool: the flat-lane shift trick below relies on even H, W.
        assert H % 2 == 0 and W % 2 == 0, (H, W)
        plan.append({"convs": convs, "pool": (C, H, W)})
        H, W = H // 2, W // 2
    return plan, (C, H, W)


def choose_block_batch(n, hw_first, hw_final, cap=8, sel_budget=2 << 20):
    """Images per grid step: fill >=128 lanes in the deepest block, divide the
    batch, and keep the block-diagonal pool-select matrix small."""
    bt = 1
    while bt < cap and n % (2 * bt) == 0 and bt * hw_final < 128:
        nbt = 2 * bt
        sel_bytes = (nbt * hw_first) * (nbt * hw_first // 4) * 2  # bf16
        if sel_bytes > sel_budget:
            break
        bt = nbt
    return bt


def make_tap_masks(H, W, Bt):
    """(9, Bt*H*W) {0,1} bf16 masks: tap (dh,dw) is valid iff the shifted pixel
    stays inside its own image (covers zero padding AND the image concat)."""
    p = jnp.arange(H * W)
    r, c = p // W, p % W
    rows = []
    for dh in (-1, 0, 1):
        for dw in (-1, 0, 1):
            ok = (r + dh >= 0) & (r + dh < H) & (c + dw >= 0) & (c + dw < W)
            rows.append(jnp.tile(ok, (Bt,)))
    return jnp.stack(rows).astype(jnp.bfloat16)


def make_pool_select(H, W, Bt):
    """Block-diagonal one-hot (Bt*H*W, Bt*Ho*Wo) bf16 matrix selecting the
    (2i, 2j) positions of every image.  For very large spatial sizes this
    should be replaced by strided lane reads + a row-only select (quadratic
    scaling); at these sizes it is a ~100 KB constant."""
    Ho, Wo = H // 2, W // 2
    HW, HoWo = H * W, Ho * Wo
    s = jnp.arange(Bt * HW)[:, None]
    u = jnp.arange(Bt * HoWo)[None, :]
    tgt = (u // HoWo) * HW + 2 * ((u % HoWo) // Wo) * W + 2 * ((u % HoWo) % Wo)
    return (s == tgt).astype(jnp.bfloat16)


# ----------------------------------------------------------------------------
# In-kernel helpers (operate on VMEM-resident (C, Bt*H*W) values)
# ----------------------------------------------------------------------------
def _conv3x3_relu(act, w_ref, b_ref, m_ref, pad_ref, Cin, H, W, Bt, halo):
    """(Cin, Bt*H*W) -> (Cout, Bt*H*W) f32.  9 accumulated bf16 MXU matmuls on
    shifted windows of the padded flat activation (no im2col buffer)."""
    BtHW = Bt * H * W
    ts = w_ref.shape[-1]  # Cin rounded up to 8; weight cols [Cin:ts] are zero
    pad_ref[0:Cin, halo:halo + BtHW] = act.astype(jnp.bfloat16)
    if ts > Cin:
        # Zero-padded weight columns multiply these rows; keep them finite
        # (0 * NaN = NaN) and sublane-aligned reads cheap.
        pad_ref[Cin:ts, :] = jnp.zeros((ts - Cin, pad_ref.shape[1]), jnp.bfloat16)
    acc = None
    tap = 0
    for dh in (-1, 0, 1):
        for dw in (-1, 0, 1):
            off = dh * W + dw
            win = pad_ref[0:ts, halo + off:halo + off + BtHW]      # bf16 window
            if not (dh == 0 and dw == 0):
                win = win * m_ref[tap:tap + 1, :]                  # edge / pad mask
            part = jnp.dot(w_ref[tap], win, preferred_element_type=jnp.float32)
            acc = part if acc is None else acc + part
            tap += 1
    return jnp.maximum(acc + b_ref[...], 0.0)                      # (Cout, BtHW) f32


def _maxpool2x2(act, sel_ref, pad_ref, C, H, W, Bt, halo):
    """2x2 / stride-2 max-pool on the flat (C, Bt*H*W) activation.  The shifted
    maxes wrap across rows/images at non-selected positions only (H, W even);
    the one-hot select never picks them, and the halo strips are zeroed so no
    NaN can leak through the 0-weighted matmul columns."""
    BtHW = Bt * H * W
    a = act.astype(jnp.bfloat16)
    pad_ref[0:C, halo:halo + BtHW] = a
    m1 = jnp.maximum(a, pad_ref[0:C, halo + 1:halo + 1 + BtHW])    # x[i, j+1]
    pad_ref[0:C, halo:halo + BtHW] = m1
    m2 = jnp.maximum(m1, pad_ref[0:C, halo + W:halo + W + BtHW])   # m1[i+1, j]
    # Stride-2 down-sample: bf16 one-hot select matmul; with batch blocking its
    # N dim is Bt*(H//2)*(W//2) >= 128 lanes even in the deepest block.
    return jnp.dot(m2, sel_ref[...], preferred_element_type=jnp.float32)


# ----------------------------------------------------------------------------
# Fused feature extractor: [(conv+relu)*P + maxpool]*(N/P) in one pallas_call
# ----------------------------------------------------------------------------
def feature_extractor(x_nchw, conv_params, plan, final_dims, Bt):
    N, C0, H0, W0 = x_nchw.shape
    Cf, Hf, Wf = final_dims
    HW0, HWf = H0 * W0, Hf * Wf
    G = N // Bt

    # Host-side layout plumbing (one transpose, done by XLA): Bt images per
    # grid step concatenated along the lane axis -> (G, C0, Bt*H0*W0) bf16.
    x_r = (x_nchw.reshape(G, Bt, C0, HW0).transpose(0, 2, 1, 3)
           .reshape(G, C0, Bt * HW0).astype(jnp.bfloat16))

    conv_shapes = [c for b in plan for c in b["convs"]]
    n_convs = len(conv_shapes)
    n_blocks = len(plan)

    # Per-block constants and per-block scratch (per-layer-max sizing, not the
    # cross product of worst-case channels x worst-case spatial).
    masks, sels, pad_shapes, halos = [], [], [], []
    for blk in plan:
        Cb, H, W = blk["pool"]
        halo = _round_up(W + 1, 128)                     # lane-aligned halo >= W+1
        rows = max([_round_up(c[0], 8) for c in blk["convs"]] + [Cb])
        cols = Bt * H * W + 2 * halo
        masks.append(make_tap_masks(H, W, Bt))
        sels.append(make_pool_select(H, W, Bt))
        pad_shapes.append((rows, cols))
        halos.append(halo)

    n_in = 1 + 2 * n_convs + 2 * n_blocks

    def kernel(*refs):
        x_ref = refs[0]
        w_refs = refs[1:1 + n_convs]
        b_refs = refs[1 + n_convs:1 + 2 * n_convs]
        m_refs = refs[1 + 2 * n_convs:1 + 2 * n_convs + n_blocks]
        s_refs = refs[1 + 2 * n_convs + n_blocks:n_in]
        o_ref = refs[n_in]
        pad_refs = refs[n_in + 1:]

        act = x_ref[0]                                   # (C0, Bt*H0*W0) bf16
        li = 0
        for bi, blk in enumerate(plan):
            pr = pad_refs[bi]
            halo = halos[bi]
            Cb, H, W = blk["pool"]
            BtHW = Bt * H * W
            # Zero only the halo strips: they are read (masked / unselected
            # positions) but never written, so they must be finite zeros.
            # Done every step (cheap) so megacore grid sharding stays safe.
            pr[:, 0:halo] = jnp.zeros((pr.shape[0], halo), jnp.bfloat16)
            pr[:, halo + BtHW:halo + BtHW + halo] = jnp.zeros(
                (pr.shape[0], halo), jnp.bfloat16)
            for (Cin, Cout, H, W) in blk["convs"]:
                act = _conv3x3_relu(act, w_refs[li], b_refs[li], m_refs[bi],
                                    pr, Cin, H, W, Bt, halo)
                li += 1
            act = _maxpool2x2(act, s_refs[bi], pr, Cb, H, W, Bt, halo)
        o_ref[0] = act                                   # (Cf, Bt*Hf*Wf) f32, lane-dense

    def const_spec(shape):
        zeros = (0,) * len(shape)
        return pl.BlockSpec(shape, lambda g: zeros)

    operands = [x_r]
    in_specs = [pl.BlockSpec((1, C0, Bt * HW0), lambda g: (g, 0, 0))]
    for w, _ in conv_params:
        operands.append(w)
        in_specs.append(const_spec(w.shape))
    for _, b in conv_params:
        operands.append(b)
        in_specs.append(const_spec(b.shape))
    for m in masks:
        operands.append(m)
        in_specs.append(const_spec(m.shape))
    for s in sels:
        operands.append(s)
        in_specs.append(const_spec(s.shape))

    # Explicit VMEM budget (constants may be double-buffered by the pipeline;
    # for very large weight stacks mark their specs pipeline_mode=pl.Buffered(1)
    # or move them to memory_space=pl.ANY with a manual prefetch).
    const_bytes = sum(int(op.size) * op.dtype.itemsize for op in operands[1:])
    io_bytes = C0 * Bt * HW0 * 2 + Cf * Bt * HWf * 4
    scratch_bytes = sum(r * c * 2 for r, c in pad_shapes)
    vmem_limit = int(min(64 << 20,
                         max(32 << 20,
                             2 * (const_bytes + io_bytes) + scratch_bytes + (4 << 20))))

    out = pl.pallas_call(
        kernel,
        out_shape=jax.ShapeDtypeStruct((G, Cf, Bt * HWf), jnp.float32),
        grid=(G,),
        in_specs=in_specs,
        out_specs=pl.BlockSpec((1, Cf, Bt * HWf), lambda g: (g, 0, 0)),
        scratch_shapes=[pltpu.VMEM(s, jnp.bfloat16) for s in pad_shapes],
        compiler_params=pltpu.CompilerParams(
            dimension_semantics=("parallel",),   # image blocks shard over v7x's 2 TCs
            vmem_limit_bytes=vmem_limit),
    )(*operands)

    # Undo the image concatenation -> PyTorch Flatten(NCHW) order.  Pure layout
    # plumbing on the host; keeps the kernel's HBM store lane-dense.
    return (out.reshape(G, Cf, Bt, HWf).transpose(0, 2, 1, 3)
            .reshape(N, Cf * HWf))


# ----------------------------------------------------------------------------
# Fused MLP head: (Linear -> ReLU)*M -> Linear, batch-tiled, bf16 MXU operands
# ----------------------------------------------------------------------------
def mlp_head(feats, hidden_params, out_params):
    B, Din = feats.shape
    layers = list(hidden_params) + [out_params]
    out_classes = layers[-1][0].shape[1]
    n_layers = len(layers)
    TB = 128 if (B > 128 and B % 128 == 0) else B        # batch tile (M dim)
    x_b = feats.astype(jnp.bfloat16)

    def kernel(*refs):
        x_ref, o_ref = refs[0], refs[-1]
        h = x_ref[...]
        for li in range(n_layers):
            w_ref, b_ref = refs[1 + 2 * li], refs[2 + 2 * li]
            h = jnp.dot(h.astype(jnp.bfloat16), w_ref[...],
                        preferred_element_type=jnp.float32) + b_ref[...]
            if li < n_layers - 1:
                h = jnp.maximum(h, 0.0)
        o_ref[...] = h                                    # (TB, out_classes) f32

    operands = [x_b]
    in_specs = [pl.BlockSpec((TB, Din), lambda i: (i, 0))]
    for w, b in layers:
        operands += [w, b]
        in_specs += [pl.BlockSpec(w.shape, lambda i: (0, 0)),
                     pl.BlockSpec(b.shape, lambda i: (0, 0))]
    # NOTE: for Din in the multi-thousands, additionally K-tile the first
    # Linear (grid axis over Din with an f32 accumulator); unnecessary here.

    const_bytes = sum(int(op.size) * op.dtype.itemsize for op in operands[1:])
    vmem_limit = int(min(64 << 20,
                         max(32 << 20,
                             2 * (const_bytes + TB * Din * 2 + TB * out_classes * 4)
                             + (4 << 20))))

    return pl.pallas_call(
        kernel,
        out_shape=jax.ShapeDtypeStruct((B, out_classes), jnp.float32),
        grid=(B // TB,),
        in_specs=in_specs,
        out_specs=pl.BlockSpec((TB, out_classes), lambda i: (i, 0)),
        compiler_params=pltpu.CompilerParams(
            dimension_semantics=("parallel",),
            vmem_limit_bytes=vmem_limit),
    )(*operands)


# ----------------------------------------------------------------------------
# Params + forward
# ----------------------------------------------------------------------------
def init_params(key, in_size, out_classes, filters, pool_every, hidden_dims):
    plan, (Cf, Hf, Wf) = build_plan(in_size, filters, pool_every)
    params = {"conv": [], "hidden": [], "out": None}
    for blk in plan:
        for (Cin, Cout, H, W) in blk["convs"]:
            ts = _round_up(Cin, 8)
            key, k1, k2 = jax.random.split(key, 3)
            # (9, Cout, Cin) == PyTorch (Cout, Cin, 3, 3).permute(2, 3, 0, 1)
            # flattened over taps; Cin zero-padded to 8 and cast to bf16
            # (MXU-native dtype) at init.
            w = jax.random.normal(k1, (9, Cout, Cin), jnp.float32) * 0.1
            w = jnp.pad(w, ((0, 0), (0, 0), (0, ts - Cin))).astype(jnp.bfloat16)
            b = jax.random.normal(k2, (Cout, 1), jnp.float32) * 0.1
            params["conv"].append((w, b))
    in_features = Cf * Hf * Wf  # == filters[-1] * h * w, as in the PyTorch classifier
    for hd in hidden_dims:
        key, k1, k2 = jax.random.split(key, 3)
        params["hidden"].append(
            ((jax.random.normal(k1, (in_features, hd), jnp.float32) * 0.05
              ).astype(jnp.bfloat16),
             jax.random.normal(k2, (1, hd), jnp.float32) * 0.05))
        in_features = hd
    key, k1, k2 = jax.random.split(key, 3)
    params["out"] = (
        (jax.random.normal(k1, (in_features, out_classes), jnp.float32) * 0.05
         ).astype(jnp.bfloat16),
        jax.random.normal(k2, (1, out_classes), jnp.float32) * 0.05)
    return params


def conv_classifier_forward(x_nchw, params, in_size, filters, pool_every):
    plan, final_dims = build_plan(in_size, filters, pool_every)
    hw_first = plan[0]["pool"][1] * plan[0]["pool"][2]
    hw_final = final_dims[1] * final_dims[2]
    Bt = choose_block_batch(x_nchw.shape[0], hw_first, hw_final)
    feats = feature_extractor(x_nchw, params["conv"], plan, final_dims, Bt)
    return mlp_head(feats, params["hidden"], params["out"])


# ----------------------------------------------------------------------------
if __name__ == "__main__":
    in_size = (4, 16, 16)          # (C, H, W)
    out_classes = 10
    filters = [8, 8]               # N = 2 conv layers
    pool_every = 2                 # one pool after the two convs
    hidden_dims = [32]             # M = 1 hidden linear layer
    batch = 2
    assert len(filters) % pool_every == 0

    key = jax.random.PRNGKey(0)
    key, kx, kp = jax.random.split(key, 3)
    x = jax.random.normal(kx, (batch,) + in_size, jnp.float32)   # NCHW
    params = init_params(kp, in_size, out_classes, filters, pool_every,
                         hidden_dims)

    fwd = jax.jit(functools.partial(conv_classifier_forward, in_size=in_size,
                                    filters=filters, pool_every=pool_every))
    logits = jax.block_until_ready(fwd(x, params))
    assert logits.shape == (batch, out_classes), logits.shape
    assert bool(jnp.all(jnp.isfinite(logits)))
    print("KERNEL_OK")
</pallas_src>

<mosaic_0001>
module attributes {stable_mosaic.version = 11 : i64} {
  func.func @kernel(%arg0: i32, %arg1: memref<1x4x512xbf16, #tpu.memory_space<vmem>>, %arg2: memref<9x8x8xbf16, #tpu.memory_space<vmem>>, %arg3: memref<9x8x8xbf16, #tpu.memory_space<vmem>>, %arg4: memref<8x1xf32, #tpu.memory_space<vmem>>, %arg5: memref<8x1xf32, #tpu.memory_space<vmem>>, %arg6: memref<9x512xbf16, #tpu.memory_space<vmem>>, %arg7: memref<512x128xbf16, #tpu.memory_space<vmem>>, %arg8: memref<1x8x128xf32, #tpu.memory_space<vmem>>, %arg9: memref<8x768xbf16, #tpu.memory_space<vmem>>) attributes {dimension_semantics = [#tpu.dimension_semantics<parallel>], iteration_bounds = array<i64: 1>, scalar_prefetch = 0 : i64, scratch_operands = 1 : i64, tpu.core_type = #tpu.core_type<tc>, window_params = [{transform_indices = @transform_0, window_bounds = array<i64: 1, 4, 512>}, {pipeline_mode = #tpu.pipeline_mode<synchronous>, transform_indices = @transform_1, window_bounds = array<i64: 9, 8, 8>}, {pipeline_mode = #tpu.pipeline_mode<synchronous>, transform_indices = @transform_2, window_bounds = array<i64: 9, 8, 8>}, {pipeline_mode = #tpu.pipeline_mode<synchronous>, transform_indices = @transform_3, window_bounds = array<i64: 8, 1>}, {pipeline_mode = #tpu.pipeline_mode<synchronous>, transform_indices = @transform_4, window_bounds = array<i64: 8, 1>}, {pipeline_mode = #tpu.pipeline_mode<synchronous>, transform_indices = @transform_5, window_bounds = array<i64: 9, 512>}, {pipeline_mode = #tpu.pipeline_mode<synchronous>, transform_indices = @transform_6, window_bounds = array<i64: 512, 128>}, {transform_indices = @transform_7, window_bounds = array<i64: 1, 8, 128>}]} {
    %c0 = arith.constant 0 : index
    %c0_0 = arith.constant 0 : index
    %c0_1 = arith.constant 0 : index
    %0 = vector.load %arg1[%c0, %c0_0, %c0_1] : memref<1x4x512xbf16, #tpu.memory_space<vmem>>, vector<1x4x512xbf16>
    %1 = vector.shape_cast %0 : vector<1x4x512xbf16> to vector<4x512xbf16>
    %cst = arith.constant 0.000000e+00 : bf16
    %2 = vector.broadcast %cst : bf16 to vector<8x128xbf16>
    %c0_2 = arith.constant 0 : index
    %c0_3 = arith.constant 0 : index
    %3 = vector.load %arg9[%c0_2, %c0_3] : memref<8x768xbf16, #tpu.memory_space<vmem>>, vector<8x128xbf16>
    tpu.vector_store %arg9[%c0_2, %c0_3], %2 {strides = array<i32>} : memref<8x768xbf16, #tpu.memory_space<vmem>>, vector<8x128xbf16>,
    %cst_4 = arith.constant 0.000000e+00 : bf16
    %4 = vector.broadcast %cst_4 : bf16 to vector<8x128xbf16>
    %c0_5 = arith.constant 0 : index
    %c640 = arith.constant 640 : index
    %5 = vector.load %arg9[%c0_5, %c640] : memref<8x768xbf16, #tpu.memory_space<vmem>>, vector<8x128xbf16>
    tpu.vector_store %arg9[%c0_5, %c640], %4 {strides = array<i32>} : memref<8x768xbf16, #tpu.memory_space<vmem>>, vector<8x128xbf16>,
    %c0_6 = arith.constant 0 : index
    %c128 = arith.constant 128 : index
    %6 = vector.load %arg9[%c0_6, %c128] : memref<8x768xbf16, #tpu.memory_space<vmem>>, vector<4x512xbf16>
    tpu.vector_store %arg9[%c0_6, %c128], %1 {strides = array<i32>} : memref<8x768xbf16, #tpu.memory_space<vmem>>, vector<4x512xbf16>,
    %cst_7 = arith.constant 0.000000e+00 : bf16
    %7 = vector.broadcast %cst_7 : bf16 to vector<4x768xbf16>
    %c4 = arith.constant 4 : index
    %c0_8 = arith.constant 0 : index
    %8 = vector.load %arg9[%c4, %c0_8] : memref<8x768xbf16, #tpu.memory_space<vmem>>, vector<4x768xbf16>
    tpu.vector_store %arg9[%c4, %c0_8], %7 {strides = array<i32>} : memref<8x768xbf16, #tpu.memory_space<vmem>>, vector<4x768xbf16>,
    %c0_9 = arith.constant 0 : index
    %c111 = arith.constant 111 : index
    %9 = vector.load %arg9[%c0_9, %c111] : memref<8x768xbf16, #tpu.memory_space<vmem>>, vector<8x512xbf16>
    %c0_10 = arith.constant 0 : index
    %c0_11 = arith.constant 0 : index
    %10 = vector.load %arg6[%c0_10, %c0_11] : memref<9x512xbf16, #tpu.memory_space<vmem>>, vector<1x512xbf16>
    %11 = vector.broadcast %10 : vector<1x512xbf16> to vector<8x512xbf16>
    %12 = arith.mulf %9, %11 : vector<8x512xbf16>
    %c0_12 = arith.constant 0 : index
    %c0_13 = arith.constant 0 : index
    %c0_14 = arith.constant 0 : index
    %13 = vector.load %arg2[%c0_12, %c0_13, %c0_14] : memref<9x8x8xbf16, #tpu.memory_space<vmem>>, vector<1x8x8xbf16>
    %14 = vector.shape_cast %13 : vector<1x8x8xbf16> to vector<8x8xbf16>
    %cst_15 = arith.constant dense<0.000000e+00> : vector<8x512xf32>
    %15 = tpu.matmul %14, %12, %cst_15 {dimension_numbers = #tpu.dot_dimension_numbers<[1], [0], [0], [1], [0, 0, 1, 1], [], []>} : vector<8x8xbf16>, vector<8x512xbf16>, vector<8x512xf32> -> vector<8x512xf32>
    %c0_16 = arith.constant 0 : index
    %c112 = arith.constant 112 : index
    %16 = vector.load %arg9[%c0_16, %c112] : memref<8x768xbf16, #tpu.memory_space<vmem>>, vector<8x512xbf16>
    %c1 = arith.constant 1 : index
    %c0_17 = arith.constant 0 : index
    %17 = vector.load %arg6[%c1, %c0_17] : memref<9x512xbf16, #tpu.memory_space<vmem>>, vector<1x512xbf16>
    %18 = vector.broadcast %17 : vector<1x512xbf16> to vector<8x512xbf16>
    %19 = arith.mulf %16, %18 : vector<8x512xbf16>
    %c1_18 = arith.constant 1 : index
    %c0_19 = arith.constant 0 : index
    %c0_20 = arith.constant 0 : index
    %20 = vector.load %arg2[%c1_18, %c0_19, %c0_20] : memref<9x8x8xbf16, #tpu.memory_space<vmem>>, vector<1x8x8xbf16>
    %21 = vector.shape_cast %20 : vector<1x8x8xbf16> to vector<8x8xbf16>
    %cst_21 = arith.constant dense<0.000000e+00> : vector<8x512xf32>
    %22 = tpu.matmul %21, %19, %cst_21 {dimension_numbers = #tpu.dot_dimension_numbers<[1], [0], [0], [1], [0, 0, 1, 1], [], []>} : vector<8x8xbf16>, vector<8x512xbf16>, vector<8x512xf32> -> vector<8x512xf32>
    %23 = arith.addf %15, %22 : vector<8x512xf32>
    %c0_22 = arith.constant 0 : index
    %c113 = arith.constant 113 : index
    %24 = vector.load %arg9[%c0_22, %c113] : memref<8x768xbf16, #tpu.memory_space<vmem>>, vector<8x512xbf16>
    %c2 = arith.constant 2 : index
    %c0_23 = arith.constant 0 : index
    %25 = vector.load %arg6[%c2, %c0_23] : memref<9x512xbf16, #tpu.memory_space<vmem>>, vector<1x512xbf16>
    %26 = vector.broadcast %25 : vector<1x512xbf16> to vector<8x512xbf16>
    %27 = arith.mulf %24, %26 : vector<8x512xbf16>
    %c2_24 = arith.constant 2 : index
    %c0_25 = arith.constant 0 : index
    %c0_26 = arith.constant 0 : index
    %28 = vector.load %arg2[%c2_24, %c0_25, %c0_26] : memref<9x8x8xbf16, #tpu.memory_space<vmem>>, vector<1x8x8xbf16>
    %29 = vector.shape_cast %28 : vector<1x8x8xbf16> to vector<8x8xbf16>
    %cst_27 = arith.constant dense<0.000000e+00> : vector<8x512xf32>
    %30 = tpu.matmul %29, %27, %cst_27 {dimension_numbers = #tpu.dot_dimension_numbers<[1], [0], [0], [1], [0, 0, 1, 1], [], []>} : vector<8x8xbf16>, vector<8x512xbf16>, vector<8x512xf32> -> vector<8x512xf32>
    %31 = arith.addf %23, %30 : vector<8x512xf32>
    %c0_28 = arith.constant 0 : index
    %c127 = arith.constant 127 : index
    %32 = vector.load %arg9[%c0_28, %c127] : memref<8x768xbf16, #tpu.memory_space<vmem>>, vector<8x512xbf16>
    %c3 = arith.constant 3 : index
    %c0_29 = arith.constant 0 : index
    %33 = vector.load %arg6[%c3, %c0_29] : memref<9x512xbf16, #tpu.memory_space<vmem>>, vector<1x512xbf16>
    %34 = vector.broadcast %33 : vector<1x512xbf16> to vector<8x512xbf16>
    %35 = arith.mulf %32, %34 : vector<8x512xbf16>
    %c3_30 = arith.constant 3 : index
    %c0_31 = arith.constant 0 : index
    %c0_32 = arith.constant 0 : index
    %36 = vector.load %arg2[%c3_30, %c0_31, %c0_32] : memref<9x8x8xbf16, #tpu.memory_space<vmem>>, vector<1x8x8xbf16>
    %37 = vector.shape_cast %36 : vector<1x8x8xbf16> to vector<8x8xbf16>
    %cst_33 = arith.constant dense<0.000000e+00> : vector<8x512xf32>
    %38 = tpu.matmul %37, %35, %cst_33 {dimension_numbers = #tpu.dot_dimension_numbers<[1], [0], [0], [1], [0, 0, 1, 1], [], []>} : vector<8x8xbf16>, vector<8x512xbf16>, vector<8x512xf32> -> vector<8x512xf32>
    %39 = arith.addf %31, %38 : vector<8x512xf32>
    %c0_34 = arith.constant 0 : index
    %c128_35 = arith.constant 128 : index
    %40 = vector.load %arg9[%c0_34, %c128_35] : memref<8x768xbf16, #tpu.memory_space<vmem>>, vector<8x512xbf16>
    %c4_36 = arith.constant 4 : index
    %c0_37 = arith.constant 0 : index
    %c0_38 = arith.constant 0 : index
    %41 = vector.load %arg2[%c4_36, %c0_37, %c0_38] : memref<9x8x8xbf16, #tpu.memory_space<vmem>>, vector<1x8x8xbf16>
    %42 = vector.shape_cast %41 : vector<1x8x8xbf16> to vector<8x8xbf16>
    %cst_39 = arith.constant dense<0.000000e+00> : vector<8x512xf32>
    %43 = tpu.matmul %42, %40, %cst_39 {dimension_numbers = #tpu.dot_dimension_numbers<[1], [0], [0], [1], [0, 0, 1, 1], [], []>} : vector<8x8xbf16>, vector<8x512xbf16>, vector<8x512xf32> -> vector<8x512xf32>
    %44 = arith.addf %39, %43 : vector<8x512xf32>
    %c0_40 = arith.constant 0 : index
    %c129 = arith.constant 129 : index
    %45 = vector.load %arg9[%c0_40, %c129] : memref<8x768xbf16, #tpu.memory_space<vmem>>, vector<8x512xbf16>
    %c5 = arith.constant 5 : index
    %c0_41 = arith.constant 0 : index
    %46 = vector.load %arg6[%c5, %c0_41] : memref<9x512xbf16, #tpu.memory_space<vmem>>, vector<1x512xbf16>
    %47 = vector.broadcast %46 : vector<1x512xbf16> to vector<8x512xbf16>
    %48 = arith.mulf %45, %47 : vector<8x512xbf16>
    %c5_42 = arith.constant 5 : index
    %c0_43 = arith.constant 0 : index
    %c0_44 = arith.constant 0 : index
    %49 = vector.load %arg2[%c5_42, %c0_43, %c0_44] : memref<9x8x8xbf16, #tpu.memory_space<vmem>>, vector<1x8x8xbf16>
    %50 = vector.shape_cast %49 : vector<1x8x8xbf16> to vector<8x8xbf16>
    %cst_45 = arith.constant dense<0.000000e+00> : vector<8x512xf32>
    %51 = tpu.matmul %50, %48, %cst_45 {dimension_numbers = #tpu.dot_dimension_numbers<[1], [0], [0], [1], [0, 0, 1, 1], [], []>} : vector<8x8xbf16>, vector<8x512xbf16>, vector<8x512xf32> -> vector<8x512xf32>
    %52 = arith.addf %44, %51 : vector<8x512xf32>
    %c0_46 = arith.constant 0 : index
    %c143 = arith.constant 143 : index
    %53 = vector.load %arg9[%c0_46, %c143] : memref<8x768xbf16, #tpu.memory_space<vmem>>, vector<8x512xbf16>
    %c6 = arith.constant 6 : index
    %c0_47 = arith.constant 0 : index
    %54 = vector.load %arg6[%c6, %c0_47] : memref<9x512xbf16, #tpu.memory_space<vmem>>, vector<1x512xbf16>
    %55 = vector.broadcast %54 : vector<1x512xbf16> to vector<8x512xbf16>
    %56 = arith.mulf %53, %55 : vector<8x512xbf16>
    %c6_48 = arith.constant 6 : index
    %c0_49 = arith.constant 0 : index
    %c0_50 = arith.constant 0 : index
    %57 = vector.load %arg2[%c6_48, %c0_49, %c0_50] : memref<9x8x8xbf16, #tpu.memory_space<vmem>>, vector<1x8x8xbf16>
    %58 = vector.shape_cast %57 : vector<1x8x8xbf16> to vector<8x8xbf16>
    %cst_51 = arith.constant dense<0.000000e+00> : vector<8x512xf32>
    %59 = tpu.matmul %58, %56, %cst_51 {dimension_numbers = #tpu.dot_dimension_numbers<[1], [0], [0], [1], [0, 0, 1, 1], [], []>} : vector<8x8xbf16>, vector<8x512xbf16>, vector<8x512xf32> -> vector<8x512xf32>
    %60 = arith.addf %52, %59 : vector<8x512xf32>
    %c0_52 = arith.constant 0 : index
    %c144 = arith.constant 144 : index
    %61 = vector.load %arg9[%c0_52, %c144] : memref<8x768xbf16, #tpu.memory_space<vmem>>, vector<8x512xbf16>
    %c7 = arith.constant 7 : index
    %c0_53 = arith.constant 0 : index
    %62 = vector.load %arg6[%c7, %c0_53] : memref<9x512xbf16, #tpu.memory_space<vmem>>, vector<1x512xbf16>
    %63 = vector.broadcast %62 : vector<1x512xbf16> to vector<8x512xbf16>
    %64 = arith.mulf %61, %63 : vector<8x512xbf16>
    %c7_54 = arith.constant 7 : index
    %c0_55 = arith.constant 0 : index
    %c0_56 = arith.constant 0 : index
    %65 = vector.load %arg2[%c7_54, %c0_55, %c0_56] : memref<9x8x8xbf16, #tpu.memory_space<vmem>>, vector<1x8x8xbf16>
    %66 = vector.shape_cast %65 : vector<1x8x8xbf16> to vector<8x8xbf16>
    %cst_57 = arith.constant dense<0.000000e+00> : vector<8x512xf32>
    %67 = tpu.matmul %66, %64, %cst_57 {dimension_numbers = #tpu.dot_dimension_numbers<[1], [0], [0], [1], [0, 0, 1, 1], [], []>} : vector<8x8xbf16>, vector<8x512xbf16>, vector<8x512xf32> -> vector<8x512xf32>
    %68 = arith.addf %60, %67 : vector<8x512xf32>
    %c0_58 = arith.constant 0 : index
    %c145 = arith.constant 145 : index
    %69 = vector.load %arg9[%c0_58, %c145] : memref<8x768xbf16, #tpu.memory_space<vmem>>, vector<8x512xbf16>
    %c8 = arith.constant 8 : index
    %c0_59 = arith.constant 0 : index
    %70 = vector.load %arg6[%c8, %c0_59] : memref<9x512xbf16, #tpu.memory_space<vmem>>, vector<1x512xbf16>
    %71 = vector.broadcast %70 : vector<1x512xbf16> to vector<8x512xbf16>
    %72 = arith.mulf %69, %71 : vector<8x512xbf16>
    %c8_60 = arith.constant 8 : index
    %c0_61 = arith.constant 0 : index
    %c0_62 = arith.constant 0 : index
    %73 = vector.load %arg2[%c8_60, %c0_61, %c0_62] : memref<9x8x8xbf16, #tpu.memory_space<vmem>>, vector<1x8x8xbf16>
    %74 = vector.shape_cast %73 : vector<1x8x8xbf16> to vector<8x8xbf16>
    %cst_63 = arith.constant dense<0.000000e+00> : vector<8x512xf32>
    %75 = tpu.matmul %74, %72, %cst_63 {dimension_numbers = #tpu.dot_dimension_numbers<[1], [0], [0], [1], [0, 0, 1, 1], [], []>} : vector<8x8xbf16>, vector<8x512xbf16>, vector<8x512xf32> -> vector<8x512xf32>
    %76 = arith.addf %68, %75 : vector<8x512xf32>
    %c0_64 = arith.constant 0 : index
    %c0_65 = arith.constant 0 : index
    %77 = vector.load %arg4[%c0_64, %c0_65] : memref<8x1xf32, #tpu.memory_space<vmem>>, vector<8x1xf32>
    %78 = vector.broadcast %77 : vector<8x1xf32> to vector<8x512xf32>
    %79 = arith.addf %76, %78 : vector<8x512xf32>
    %cst_66 = arith.constant 0.000000e+00 : f32
    %80 = vector.broadcast %cst_66 : f32 to vector<8x512xf32>
    %81 = arith.maximumf %79, %80 : vector<8x512xf32>
    %82 = arith.truncf %81 : vector<8x512xf32> to vector<8x512xbf16>
    %c0_67 = arith.constant 0 : index
    %c128_68 = arith.constant 128 : index
    %83 = vector.load %arg9[%c0_67, %c128_68] : memref<8x768xbf16, #tpu.memory_space<vmem>>, vector<8x512xbf16>
    tpu.vector_store %arg9[%c0_67, %c128_68], %82 {strides = array<i32>} : memref<8x768xbf16, #tpu.memory_space<vmem>>, vector<8x512xbf16>,
    %c0_69 = arith.constant 0 : index
    %c111_70 = arith.constant 111 : index
    %84 = vector.load %arg9[%c0_69, %c111_70] : memref<8x768xbf16, #tpu.memory_space<vmem>>, vector<8x512xbf16>
    %c0_71 = arith.constant 0 : index
    %c0_72 = arith.constant 0 : index
    %85 = vector.load %arg6[%c0_71, %c0_72] : memref<9x512xbf16, #tpu.memory_space<vmem>>, vector<1x512xbf16>
    %86 = vector.broadcast %85 : vector<1x512xbf16> to vector<8x512xbf16>
    %87 = arith.mulf %84, %86 : vector<8x512xbf16>
    %c0_73 = arith.constant 0 : index
    %c0_74 = arith.constant 0 : index
    %c0_75 = arith.constant 0 : index
    %88 = vector.load %arg3[%c0_73, %c0_74, %c0_75] : memref<9x8x8xbf16, #tpu.memory_space<vmem>>, vector<1x8x8xbf16>
    %89 = vector.shape_cast %88 : vector<1x8x8xbf16> to vector<8x8xbf16>
    %cst_76 = arith.constant dense<0.000000e+00> : vector<8x512xf32>
    %90 = tpu.matmul %89, %87, %cst_76 {dimension_numbers = #tpu.dot_dimension_numbers<[1], [0], [0], [1], [0, 0, 1, 1], [], []>} : vector<8x8xbf16>, vector<8x512xbf16>, vector<8x512xf32> -> vector<8x512xf32>
    %c0_77 = arith.constant 0 : index
    %c112_78 = arith.constant 112 : index
    %91 = vector.load %arg9[%c0_77, %c112_78] : memref<8x768xbf16, #tpu.memory_space<vmem>>, vector<8x512xbf16>
    %c1_79 = arith.constant 1 : index
    %c0_80 = arith.constant 0 : index
    %92 = vector.load %arg6[%c1_79, %c0_80] : memref<9x512xbf16, #tpu.memory_space<vmem>>, vector<1x512xbf16>
    %93 = vector.broadcast %92 : vector<1x512xbf16> to vector<8x512xbf16>
    %94 = arith.mulf %91, %93 : vector<8x512xbf16>
    %c1_81 = arith.constant 1 : index
    %c0_82 = arith.constant 0 : index
    %c0_83 = arith.constant 0 : index
    %95 = vector.load %arg3[%c1_81, %c0_82, %c0_83] : memref<9x8x8xbf16, #tpu.memory_space<vmem>>, vector<1x8x8xbf16>
    %96 = vector.shape_cast %95 : vector<1x8x8xbf16> to vector<8x8xbf16>
    %cst_84 = arith.constant dense<0.000000e+00> : vector<8x512xf32>
    %97 = tpu.matmul %96, %94, %cst_84 {dimension_numbers = #tpu.dot_dimension_numbers<[1], [0], [0], [1], [0, 0, 1, 1], [], []>} : vector<8x8xbf16>, vector<8x512xbf16>, vector<8x512xf32> -> vector<8x512xf32>
    %98 = arith.addf %90, %97 : vector<8x512xf32>
    %c0_85 = arith.constant 0 : index
    %c113_86 = arith.constant 113 : index
    %99 = vector.load %arg9[%c0_85, %c113_86] : memref<8x768xbf16, #tpu.memory_space<vmem>>, vector<8x512xbf16>
    %c2_87 = arith.constant 2 : index
    %c0_88 = arith.constant 0 : index
    %100 = vector.load %arg6[%c2_87, %c0_88] : memref<9x512xbf16, #tpu.memory_space<vmem>>, vector<1x512xbf16>
    %101 = vector.broadcast %100 : vector<1x512xbf16> to vector<8x512xbf16>
    %102 = arith.mulf %99, %101 : vector<8x512xbf16>
    %c2_89 = arith.constant 2 : index
    %c0_90 = arith.constant 0 : index
    %c0_91 = arith.constant 0 : index
    %103 = vector.load %arg3[%c2_89, %c0_90, %c0_91] : memref<9x8x8xbf16, #tpu.memory_space<vmem>>, vector<1x8x8xbf16>
    %104 = vector.shape_cast %103 : vector<1x8x8xbf16> to vector<8x8xbf16>
    %cst_92 = arith.constant dense<0.000000e+00> : vector<8x512xf32>
    %105 = tpu.matmul %104, %102, %cst_92 {dimension_numbers = #tpu.dot_dimension_numbers<[1], [0], [0], [1], [0, 0, 1, 1], [], []>} : vector<8x8xbf16>, vector<8x512xbf16>, vector<8x512xf32> -> vector<8x512xf32>
    %106 = arith.addf %98, %105 : vector<8x512xf32>
    %c0_93 = arith.constant 0 : index
    %c127_94 = arith.constant 127 : index
    %107 = vector.load %arg9[%c0_93, %c127_94] : memref<8x768xbf16, #tpu.memory_space<vmem>>, vector<8x512xbf16>
    %c3_95 = arith.constant 3 : index
    %c0_96 = arith.constant 0 : index
    %108 = vector.load %arg6[%c3_95, %c0_96] : memref<9x512xbf16, #tpu.memory_space<vmem>>, vector<1x512xbf16>
    %109 = vector.broadcast %108 : vector<1x512xbf16> to vector<8x512xbf16>
    %110 = arith.mulf %107, %109 : vector<8x512xbf16>
    %c3_97 = arith.constant 3 : index
    %c0_98 = arith.constant 0 : index
    %c0_99 = arith.constant 0 : index
    %111 = vector.load %arg3[%c3_97, %c0_98, %c0_99] : memref<9x8x8xbf16, #tpu.memory_space<vmem>>, vector<1x8x8xbf16>
    %112 = vector.shape_cast %111 : vector<1x8x8xbf16> to vector<8x8xbf16>
    %cst_100 = arith.constant dense<0.000000e+00> : vector<8x512xf32>
    %113 = tpu.matmul %112, %110, %cst_100 {dimension_numbers = #tpu.dot_dimension_numbers<[1], [0], [0], [1], [0, 0, 1, 1], [], []>} : vector<8x8xbf16>, vector<8x512xbf16>, vector<8x512xf32> -> vector<8x512xf32>
    %114 = arith.addf %106, %113 : vector<8x512xf32>
    %c0_101 = arith.constant 0 : index
    %c128_102 = arith.constant 128 : index
    %115 = vector.load %arg9[%c0_101, %c128_102] : memref<8x768xbf16, #tpu.memory_space<vmem>>, vector<8x512xbf16>
    %c4_103 = arith.constant 4 : index
    %c0_104 = arith.constant 0 : index
    %c0_105 = arith.constant 0 : index
    %116 = vector.load %arg3[%c4_103, %c0_104, %c0_105] : memref<9x8x8xbf16, #tpu.memory_space<vmem>>, vector<1x8x8xbf16>
    %117 = vector.shape_cast %116 : vector<1x8x8xbf16> to vector<8x8xbf16>
    %cst_106 = arith.constant dense<0.000000e+00> : vector<8x512xf32>
    %118 = tpu.matmul %117, %115, %cst_106 {dimension_numbers = #tpu.dot_dimension_numbers<[1], [0], [0], [1], [0, 0, 1, 1], [], []>} : vector<8x8xbf16>, vector<8x512xbf16>, vector<8x512xf32> -> vector<8x512xf32>
    %119 = arith.addf %114, %118 : vector<8x512xf32>
    %c0_107 = arith.constant 0 : index
    %c129_108 = arith.constant 129 : index
    %120 = vector.load %arg9[%c0_107, %c129_108] : memref<8x768xbf16, #tpu.memory_space<vmem>>, vector<8x512xbf16>
    %c5_109 = arith.constant 5 : index
    %c0_110 = arith.constant 0 : index
    %121 = vector.load %arg6[%c5_109, %c0_110] : memref<9x512xbf16, #tpu.memory_space<vmem>>, vector<1x512xbf16>
    %122 = vector.broadcast %121 : vector<1x512xbf16> to vector<8x512xbf16>
    %123 = arith.mulf %120, %122 : vector<8x512xbf16>
    %c5_111 = arith.constant 5 : index
    %c0_112 = arith.constant 0 : index
    %c0_113 = arith.constant 0 : index
    %124 = vector.load %arg3[%c5_111, %c0_112, %c0_113] : memref<9x8x8xbf16, #tpu.memory_space<vmem>>, vector<1x8x8xbf16>
    %125 = vector.shape_cast %124 : vector<1x8x8xbf16> to vector<8x8xbf16>
    %cst_114 = arith.constant dense<0.000000e+00> : vector<8x512xf32>
    %126 = tpu.matmul %125, %123, %cst_114 {dimension_numbers = #tpu.dot_dimension_numbers<[1], [0], [0], [1], [0, 0, 1, 1], [], []>} : vector<8x8xbf16>, vector<8x512xbf16>, vector<8x512xf32> -> vector<8x512xf32>
    %127 = arith.addf %119, %126 : vector<8x512xf32>
    %c0_115 = arith.constant 0 : index
    %c143_116 = arith.constant 143 : index
    %128 = vector.load %arg9[%c0_115, %c143_116] : memref<8x768xbf16, #tpu.memory_space<vmem>>, vector<8x512xbf16>
    %c6_117 = arith.constant 6 : index
    %c0_118 = arith.constant 0 : index
    %129 = vector.load %arg6[%c6_117, %c0_118] : memref<9x512xbf16, #tpu.memory_space<vmem>>, vector<1x512xbf16>
    %130 = vector.broadcast %129 : vector<1x512xbf16> to vector<8x512xbf16>
    %131 = arith.mulf %128, %130 : vector<8x512xbf16>
    %c6_119 = arith.constant 6 : index
    %c0_120 = arith.constant 0 : index
    %c0_121 = arith.constant 0 : index
    %132 = vector.load %arg3[%c6_119, %c0_120, %c0_121] : memref<9x8x8xbf16, #tpu.memory_space<vmem>>, vector<1x8x8xbf16>
    %133 = vector.shape_cast %132 : vector<1x8x8xbf16> to vector<8x8xbf16>
    %cst_122 = arith.constant dense<0.000000e+00> : vector<8x512xf32>
    %134 = tpu.matmul %133, %131, %cst_122 {dimension_numbers = #tpu.dot_dimension_numbers<[1], [0], [0], [1], [0, 0, 1, 1], [], []>} : vector<8x8xbf16>, vector<8x512xbf16>, vector<8x512xf32> -> vector<8x512xf32>
    %135 = arith.addf %127, %134 : vector<8x512xf32>
    %c0_123 = arith.constant 0 : index
    %c144_124 = arith.constant 144 : index
    %136 = vector.load %arg9[%c0_123, %c144_124] : memref<8x768xbf16, #tpu.memory_space<vmem>>, vector<8x512xbf16>
    %c7_125 = arith.constant 7 : index
    %c0_126 = arith.constant 0 : index
    %137 = vector.load %arg6[%c7_125, %c0_126] : memref<9x512xbf16, #tpu.memory_space<vmem>>, vector<1x512xbf16>
    %138 = vector.broadcast %137 : vector<1x512xbf16> to vector<8x512xbf16>
    %139 = arith.mulf %136, %138 : vector<8x512xbf16>
    %c7_127 = arith.constant 7 : index
    %c0_128 = arith.constant 0 : index
    %c0_129 = arith.constant 0 : index
    %140 = vector.load %arg3[%c7_127, %c0_128, %c0_129] : memref<9x8x8xbf16, #tpu.memory_space<vmem>>, vector<1x8x8xbf16>
    %141 = vector.shape_cast %140 : vector<1x8x8xbf16> to vector<8x8xbf16>
    %cst_130 = arith.constant dense<0.000000e+00> : vector<8x512xf32>
    %142 = tpu.matmul %141, %139, %cst_130 {dimension_numbers = #tpu.dot_dimension_numbers<[1], [0], [0], [1], [0, 0, 1, 1], [], []>} : vector<8x8xbf16>, vector<8x512xbf16>, vector<8x512xf32> -> vector<8x512xf32>
    %143 = arith.addf %135, %142 : vector<8x512xf32>
    %c0_131 = arith.constant 0 : index
    %c145_132 = arith.constant 145 : index
    %144 = vector.load %arg9[%c0_131, %c145_132] : memref<8x768xbf16, #tpu.memory_space<vmem>>, vector<8x512xbf16>
    %c8_133 = arith.constant 8 : index
    %c0_134 = arith.constant 0 : index
    %145 = vector.load %arg6[%c8_133, %c0_134] : memref<9x512xbf16, #tpu.memory_space<vmem>>, vector<1x512xbf16>
    %146 = vector.broadcast %145 : vector<1x512xbf16> to vector<8x512xbf16>
    %147 = arith.mulf %144, %146 : vector<8x512xbf16>
    %c8_135 = arith.constant 8 : index
    %c0_136 = arith.constant 0 : index
    %c0_137 = arith.constant 0 : index
    %148 = vector.load %arg3[%c8_135, %c0_136, %c0_137] : memref<9x8x8xbf16, #tpu.memory_space<vmem>>, vector<1x8x8xbf16>
    %149 = vector.shape_cast %148 : vector<1x8x8xbf16> to vector<8x8xbf16>
    %cst_138 = arith.constant dense<0.000000e+00> : vector<8x512xf32>
    %150 = tpu.matmul %149, %147, %cst_138 {dimension_numbers = #tpu.dot_dimension_numbers<[1], [0], [0], [1], [0, 0, 1, 1], [], []>} : vector<8x8xbf16>, vector<8x512xbf16>, vector<8x512xf32> -> vector<8x512xf32>
    %151 = arith.addf %143, %150 : vector<8x512xf32>
    %c0_139 = arith.constant 0 : index
    %c0_140 = arith.constant 0 : index
    %152 = vector.load %arg5[%c0_139, %c0_140] : memref<8x1xf32, #tpu.memory_space<vmem>>, vector<8x1xf32>
    %153 = vector.broadcast %152 : vector<8x1xf32> to vector<8x512xf32>
    %154 = arith.addf %151, %153 : vector<8x512xf32>
    %cst_141 = arith.constant 0.000000e+00 : f32
    %155 = vector.broadcast %cst_141 : f32 to vector<8x512xf32>
    %156 = arith.maximumf %154, %155 : vector<8x512xf32>
    %157 = arith.truncf %156 : vector<8x512xf32> to vector<8x512xbf16>
    %c0_142 = arith.constant 0 : index
    %c128_143 = arith.constant 128 : index
    %158 = vector.load %arg9[%c0_142, %c128_143] : memref<8x768xbf16, #tpu.memory_space<vmem>>, vector<8x512xbf16>
    tpu.vector_store %arg9[%c0_142, %c128_143], %157 {strides = array<i32>} : memref<8x768xbf16, #tpu.memory_space<vmem>>, vector<8x512xbf16>,
    %c0_144 = arith.constant 0 : index
    %c129_145 = arith.constant 129 : index
    %159 = vector.load %arg9[%c0_144, %c129_145] : memref<8x768xbf16, #tpu.memory_space<vmem>>, vector<8x512xbf16>
    %160 = arith.maximumf %157, %159 : vector<8x512xbf16>
    %c0_146 = arith.constant 0 : index
    %c128_147 = arith.constant 128 : index
    %161 = vector.load %arg9[%c0_146, %c128_147] : memref<8x768xbf16, #tpu.memory_space<vmem>>, vector<8x512xbf16>
    tpu.vector_store %arg9[%c0_146, %c128_147], %160 {strides = array<i32>} : memref<8x768xbf16, #tpu.memory_space<vmem>>, vector<8x512xbf16>,
    %c0_148 = arith.constant 0 : index
    %c144_149 = arith.constant 144 : index
    %162 = vector.load %arg9[%c0_148, %c144_149] : memref<8x768xbf16, #tpu.memory_space<vmem>>, vector<8x512xbf16>
    %163 = arith.maximumf %160, %162 : vector<8x512xbf16>
    %c0_150 = arith.constant 0 : index
    %c0_151 = arith.constant 0 : index
    %164 = vector.load %arg7[%c0_150, %c0_151] : memref<512x128xbf16, #tpu.memory_space<vmem>>, vector<512x128xbf16>
    %cst_152 = arith.constant dense<0.000000e+00> : vector<8x128xf32>
    %165 = tpu.matmul %163, %164, %cst_152 {dimension_numbers = #tpu.dot_dimension_numbers<[1], [0], [0], [1], [0, 0, 1, 1], [], []>} : vector<8x512xbf16>, vector<512x128xbf16>, vector<8x128xf32> -> vector<8x128xf32>
    %c0_153 = arith.constant 0 : index
    %c0_154 = arith.constant 0 : index
    %c0_155 = arith.constant 0 : index
    %166 = vector.load %arg8[%c0_153, %c0_154, %c0_155] : memref<1x8x128xf32, #tpu.memory_space<vmem>>, vector<1x8x128xf32>
    %167 = vector.shape_cast %166 : vector<1x8x128xf32> to vector<8x128xf32>
    %168 = vector.shape_cast %165 : vector<8x128xf32> to vector<1x8x128xf32>
    tpu.vector_store %arg8[%c0_153, %c0_154, %c0_155], %168 {strides = array<i32>} : memref<1x8x128xf32, #tpu.memory_space<vmem>>, vector<1x8x128xf32>,
    return
  }
  func.func @transform_0(%arg0: i32) -> (i32, i32, i32) {
    %c0_i32 = arith.constant 0 : i32
    %c0_i32_0 = arith.constant 0 : i32
    %c0_i32_1 = arith.constant 0 : i32
    return %arg0, %c0_i32, %c0_i32_0 : i32, i32, i32
  }
  func.func @transform_1(%arg0: i32) -> (i32, i32, i32) {
    %c0_i32 = arith.constant 0 : i32
    %c0_i32_0 = arith.constant 0 : i32
    %c0_i32_1 = arith.constant 0 : i32
    %c0_i32_2 = arith.constant 0 : i32
    return %c0_i32, %c0_i32_0, %c0_i32_1 : i32, i32, i32
  }
  func.func @transform_2(%arg0: i32) -> (i32, i32, i32) {
    %c0_i32 = arith.constant 0 : i32
    %c0_i32_0 = arith.constant 0 : i32
    %c0_i32_1 = arith.constant 0 : i32
    %c0_i32_2 = arith.constant 0 : i32
    return %c0_i32, %c0_i32_0, %c0_i32_1 : i32, i32, i32
  }
  func.func @transform_3(%arg0: i32) -> (i32, i32) {
    %c0_i32 = arith.constant 0 : i32
    %c0_i32_0 = arith.constant 0 : i32
    %c0_i32_1 = arith.constant 0 : i32
    return %c0_i32, %c0_i32_0 : i32, i32
  }
  func.func @transform_4(%arg0: i32) -> (i32, i32) {
    %c0_i32 = arith.constant 0 : i32
    %c0_i32_0 = arith.constant 0 : i32
    %c0_i32_1 = arith.constant 0 : i32
    return %c0_i32, %c0_i32_0 : i32, i32
  }
  func.func @transform_5(%arg0: i32) -> (i32, i32) {
    %c0_i32 = arith.constant 0 : i32
    %c0_i32_0 = arith.constant 0 : i32
    %c0_i32_1 = arith.constant 0 : i32
    return %c0_i32, %c0_i32_0 : i32, i32
  }
  func.func @transform_6(%arg0: i32) -> (i32, i32) {
    %c0_i32 = arith.constant 0 : i32
    %c0_i32_0 = arith.constant 0 : i32
    %c0_i32_1 = arith.constant 0 : i32
    return %c0_i32, %c0_i32_0 : i32, i32
  }
  func.func @transform_7(%arg0: i32) -> (i32, i32, i32) {
    %c0_i32 = arith.constant 0 : i32
    %c0_i32_0 = arith.constant 0 : i32
    %c0_i32_1 = arith.constant 0 : i32
    return %arg0, %c0_i32, %c0_i32_0 : i32, i32, i32
  }
}

module attributes {stable_mosaic.version = 11 : i64} {
  func.func @kernel(%arg0: i32, %arg1: memref<2x512xbf16, #tpu.memory_space<vmem>>, %arg2: memref<512x32xbf16, #tpu.memory_space<vmem>>, %arg3: memref<1x32xf32, #tpu.memory_space<vmem>>, %arg4: memref<32x10xbf16, #tpu.memory_space<vmem>>, %arg5: memref<1x10xf32, #tpu.memory_space<vmem>>, %arg6: memref<2x10xf32, #tpu.memory_space<vmem>>) attributes {dimension_semantics = [#tpu.dimension_semantics<parallel>], iteration_bounds = array<i64: 1>, scalar_prefetch = 0 : i64, scratch_operands = 0 : i64, tpu.core_type = #tpu.core_type<tc>, window_params = [{transform_indices = @transform_0, window_bounds = array<i64: 2, 512>}, {pipeline_mode = #tpu.pipeline_mode<synchronous>, transform_indices = @transform_1, window_bounds = array<i64: 512, 32>}, {pipeline_mode = #tpu.pipeline_mode<synchronous>, transform_indices = @transform_2, window_bounds = array<i64: 1, 32>}, {pipeline_mode = #tpu.pipeline_mode<synchronous>, transform_indices = @transform_3, window_bounds = array<i64: 32, 10>}, {pipeline_mode = #tpu.pipeline_mode<synchronous>, transform_indices = @transform_4, window_bounds = array<i64: 1, 10>}, {transform_indices = @transform_5, window_bounds = array<i64: 2, 10>}]} {
    %c0 = arith.constant 0 : index
    %c0_0 = arith.constant 0 : index
    %0 = vector.load %arg1[%c0, %c0_0] : memref<2x512xbf16, #tpu.memory_space<vmem>>, vector<2x512xbf16>
    %c0_1 = arith.constant 0 : index
    %c0_2 = arith.constant 0 : index
    %1 = vector.load %arg2[%c0_1, %c0_2] : memref<512x32xbf16, #tpu.memory_space<vmem>>, vector<512x32xbf16>
    %cst = arith.constant dense<0.000000e+00> : vector<2x32xf32>
    %2 = tpu.matmul %0, %1, %cst {dimension_numbers = #tpu.dot_dimension_numbers<[1], [0], [0], [1], [0, 0, 1, 1], [], []>} : vector<2x512xbf16>, vector<512x32xbf16>, vector<2x32xf32> -> vector<2x32xf32>
    %c0_3 = arith.constant 0 : index
    %c0_4 = arith.constant 0 : index
    %3 = vector.load %arg3[%c0_3, %c0_4] : memref<1x32xf32, #tpu.memory_space<vmem>>, vector<1x32xf32>
    %4 = vector.broadcast %3 : vector<1x32xf32> to vector<2x32xf32>
    %5 = arith.addf %2, %4 : vector<2x32xf32>
    %cst_5 = arith.constant 0.000000e+00 : f32
    %6 = vector.broadcast %cst_5 : f32 to vector<2x32xf32>
    %7 = arith.maximumf %5, %6 : vector<2x32xf32>
    %8 = arith.truncf %7 : vector<2x32xf32> to vector<2x32xbf16>
    %c0_6 = arith.constant 0 : index
    %c0_7 = arith.constant 0 : index
    %9 = vector.load %arg4[%c0_6, %c0_7] : memref<32x10xbf16, #tpu.memory_space<vmem>>, vector<32x10xbf16>
    %cst_8 = arith.constant dense<0.000000e+00> : vector<2x10xf32>
    %10 = tpu.matmul %8, %9, %cst_8 {dimension_numbers = #tpu.dot_dimension_numbers<[1], [0], [0], [1], [0, 0, 1, 1], [], []>} : vector<2x32xbf16>, vector<32x10xbf16>, vector<2x10xf32> -> vector<2x10xf32>
    %c0_9 = arith.constant 0 : index
    %c0_10 = arith.constant 0 : index
    %11 = vector.load %arg5[%c0_9, %c0_10] : memref<1x10xf32, #tpu.memory_space<vmem>>, vector<1x10xf32>
    %12 = vector.broadcast %11 : vector<1x10xf32> to vector<2x10xf32>
    %13 = arith.addf %10, %12 : vector<2x10xf32>
    %c0_11 = arith.constant 0 : index
    %c0_12 = arith.constant 0 : index
    %14 = vector.load %arg6[%c0_11, %c0_12] : memref<2x10xf32, #tpu.memory_space<vmem>>, vector<2x10xf32>
    tpu.vector_store %arg6[%c0_11, %c0_12], %13 {strides = array<i32>} : memref<2x10xf32, #tpu.memory_space<vmem>>, vector<2x10xf32>,
    return
  }
  func.func @transform_0(%arg0: i32) -> (i32, i32) {
    %c0_i32 = arith.constant 0 : i32
    %c0_i32_0 = arith.constant 0 : i32
    return %arg0, %c0_i32 : i32, i32
  }
  func.func @transform_1(%arg0: i32) -> (i32, i32) {
    %c0_i32 = arith.constant 0 : i32
    %c0_i32_0 = arith.constant 0 : i32
    %c0_i32_1 = arith.constant 0 : i32
    return %c0_i32, %c0_i32_0 : i32, i32
  }
  func.func @transform_2(%arg0: i32) -> (i32, i32) {
    %c0_i32 = arith.constant 0 : i32
    %c0_i32_0 = arith.constant 0 : i32
    %c0_i32_1 = arith.constant 0 : i32
    return %c0_i32, %c0_i32_0 : i32, i32
  }
  func.func @transform_3(%arg0: i32) -> (i32, i32) {
    %c0_i32 = arith.constant 0 : i32
    %c0_i32_0 = arith.constant 0 : i32
    %c0_i32_1 = arith.constant 0 : i32
    return %c0_i32, %c0_i32_0 : i32, i32
  }
  func.func @transform_4(%arg0: i32) -> (i32, i32) {
    %c0_i32 = arith.constant 0 : i32
    %c0_i32_0 = arith.constant 0 : i32
    %c0_i32_1 = arith.constant 0 : i32
    return %c0_i32, %c0_i32_0 : i32, i32
  }
  func.func @transform_5(%arg0: i32) -> (i32, i32) {
    %c0_i32 = arith.constant 0 : i32
    %c0_i32_0 = arith.constant 0 : i32
    return %arg0, %c0_i32 : i32, i32
  }
}

</mosaic_0001>

<llo_original>
// kernel: conv_classifier_forward.3
$region0: #{conv_classifier_forward.3}
  #allocation0 [shape = 'u32[]', space=smem, size = 0x4, offset = 0x4, fixed_abs, tag = 'smem constant byte address 0x4 - core index']
  #allocation1 [shape = 'u32[72,128]{1,0:T(1,128)}', space=vmem, size = 0x9000, scoped, tag = 'internal scratch']
  %s0 = inlined_call_operand.vmem [shape: bf16[2,512], index: 0, kind: input, shape index: {}]
  %s1 = inlined_call_operand.vmem [shape: bf16[512,32], index: 1, kind: input, shape index: {}]
  %s2 = inlined_call_operand.vmem [shape: f32[1,32], index: 2, kind: input, shape index: {}]
  %s3 = inlined_call_operand.vmem [shape: bf16[32,10], index: 3, kind: input, shape index: {}]
  %s4 = inlined_call_operand.vmem [shape: f32[1,10], index: 4, kind: input, shape index: {}]
  %s5 = inlined_call_operand.hbm [shape: f32[2,10], index: 5, kind: output, shape index: {}]
  %s6 = sld [smem:[#allocation0]]
  $region30: #{conv_classifier_forward.3} parent=0
    _
  %s8 = ssub.s32 1, %s6
  %s9 = scalar_select 0, %s8, %s6
  $region1: #{conv_classifier_forward.3} parent=0
    #allocation2 [shape = 'u8[1024]{0}', space=vmem, size = 0x400, scoped, tag = 'output window, operand 0, single buffered']
    #allocation3 [shape = 's32[1]{0}', space=sflag, size = 0x4, scoped, tag = 'scoped memory for conv_classifier_forward.3']
    %10 = vsyncpa [#allocation3], 0
    // Predicated region
    $region2: #{conv_classifier_forward.3} parent=1 // pred_check
      _
    $region3: #{conv_classifier_forward.3} parent=1 // pred_check_branch
      %12 = sbr.rel (0) target = $region5
    $region4: #{conv_classifier_forward.3} parent=1 // pred_region
      _
    $region5: #{conv_classifier_forward.3} parent=1 // pred_fallthru
      _
    // Predicated region
    $region6: #{conv_classifier_forward.3} parent=1 // pred_check
      _
    $region7: #{conv_classifier_forward.3} parent=1 // pred_check_branch
      %14 = sbr.rel (0) target = $region9
    $region8: #{conv_classifier_forward.3} parent=1 // pred_region
      _
    $region9: #{conv_classifier_forward.3} parent=1 // pred_fallthru
      _
    // Predicated region
    $region10: #{conv_classifier_forward.3} parent=1 // pred_check
      _
    $region11: #{conv_classifier_forward.3} parent=1 // pred_check_branch
      %16 = sbr.rel (0) target = $region13
    $region12: #{conv_classifier_forward.3} parent=1 // pred_region
      _
    $region13: #{conv_classifier_forward.3} parent=1 // pred_fallthru
      _
    // Predicated region
    $region14: #{conv_classifier_forward.3} parent=1 // pred_check
      _
    $region15: #{conv_classifier_forward.3} parent=1 // pred_check_branch
      %18 = sbr.rel (0) target = $region17
    $region16: #{conv_classifier_forward.3} parent=1 // pred_region
      _
    $region17: #{conv_classifier_forward.3} parent=1 // pred_fallthru
      _
    // Predicated region
    $region18: #{conv_classifier_forward.3} parent=1 // pred_check
      _
    $region19: #{conv_classifier_forward.3} parent=1 // pred_check_branch
      %20 = sbr.rel (0) target = $region21
    $region20: #{conv_classifier_forward.3} parent=1 // pred_region
      _
    $region21: #{conv_classifier_forward.3} parent=1 // pred_fallthru
      _
    %v22 = vld [vmem:[%s0] sm:$0xf]
    %v23 = vld [vmem:[%s1] sm:$0xf]
    %v24 = vld [vmem:[%s1 + $0x4] sm:$0xf]
    %v25 = vld [vmem:[%s1 + $0x8] sm:$0xf]
    %v26 = vld [vmem:[%s1 + $0xc] sm:$0xf]
    %v27 = vld [vmem:[%s1 + $0x10] sm:$0xf]
    %v28 = vld [vmem:[%s1 + $0x14] sm:$0xf]
    %v29 = vld [vmem:[%s1 + $0x18] sm:$0xf]
    %v30 = vld [vmem:[%s1 + $0x1c] sm:$0xf]
    %v31 = vld [vmem:[%s1 + $0x20] sm:$0xf]
    %v32 = vld [vmem:[%s1 + $0x24] sm:$0xf]
    %v33 = vld [vmem:[%s1 + $0x28] sm:$0xf]
    %v34 = vld [vmem:[%s1 + $0x2c] sm:$0xf]
    %v35 = vld [vmem:[%s1 + $0x30] sm:$0xf]
    %v36 = vld [vmem:[%s1 + $0x34] sm:$0xf]
    %v37 = vld [vmem:[%s1 + $0x38] sm:$0xf]
    %v38 = vld [vmem:[%s1 + $0x3c] sm:$0xf]
    %v39 = vld [vmem:[%s1 + $0x40] sm:$0xf]
    %v40 = vld [vmem:[%s1 + $0x44] sm:$0xf]
    %v41 = vld [vmem:[%s1 + $0x48] sm:$0xf]
    %v42 = vld [vmem:[%s1 + $0x4c] sm:$0xf]
    %v43 = vld [vmem:[%s1 + $0x50] sm:$0xf]
    %v44 = vld [vmem:[%s1 + $0x54] sm:$0xf]
    %v45 = vld [vmem:[%s1 + $0x58] sm:$0xf]
    %v46 = vld [vmem:[%s1 + $0x5c] sm:$0xf]
    %v47 = vld [vmem:[%s1 + $0x60] sm:$0xf]
    %v48 = vld [vmem:[%s1 + $0x64] sm:$0xf]
    %v49 = vld [vmem:[%s1 + $0x68] sm:$0xf]
    %v50 = vld [vmem:[%s1 + $0x6c] sm:$0xf]
    %v51 = vld [vmem:[%s1 + $0x70] sm:$0xf]
    %v52 = vld [vmem:[%s1 + $0x74] sm:$0xf]
    %v53 = vld [vmem:[%s1 + $0x78] sm:$0xf]
    %v54 = vld [vmem:[%s1 + $0x7c] sm:$0xf]
    %v55 = vld [vmem:[%s1 + $0x80] sm:$0xf]
    %v56 = vld [vmem:[%s1 + $0x84] sm:$0xf]
    %v57 = vld [vmem:[%s1 + $0x88] sm:$0xf]
    %v58 = vld [vmem:[%s1 + $0x8c] sm:$0xf]
    %v59 = vld [vmem:[%s1 + $0x90] sm:$0xf]
    %v60 = vld [vmem:[%s1 + $0x94] sm:$0xf]
    %v61 = vld [vmem:[%s1 + $0x98] sm:$0xf]
    %v62 = vld [vmem:[%s1 + $0x9c] sm:$0xf]
    %v63 = vld [vmem:[%s1 + $0xa0] sm:$0xf]
    %v64 = vld [vmem:[%s1 + $0xa4] sm:$0xf]
    %v65 = vld [vmem:[%s1 + $0xa8] sm:$0xf]
    %v66 = vld [vmem:[%s1 + $0xac] sm:$0xf]
    %v67 = vld [vmem:[%s1 + $0xb0] sm:$0xf]
    %v68 = vld [vmem:[%s1 + $0xb4] sm:$0xf]
    %v69 = vld [vmem:[%s1 + $0xb8] sm:$0xf]
    %v70 = vld [vmem:[%s1 + $0xbc] sm:$0xf]
    %v71 = vld [vmem:[%s1 + $0xc0] sm:$0xf]
    %v72 = vld [vmem:[%s1 + $0xc4] sm:$0xf]
    %v73 = vld [vmem:[%s1 + $0xc8] sm:$0xf]
    %v74 = vld [vmem:[%s1 + $0xcc] sm:$0xf]
    %v75 = vld [vmem:[%s1 + $0xd0] sm:$0xf]
    %v76 = vld [vmem:[%s1 + $0xd4] sm:$0xf]
    %v77 = vld [vmem:[%s1 + $0xd8] sm:$0xf]
    %v78 = vld [vmem:[%s1 + $0xdc] sm:$0xf]
    %v79 = vld [vmem:[%s1 + $0xe0] sm:$0xf]
    %v80 = vld [vmem:[%s1 + $0xe4] sm:$0xf]
    %v81 = vld [vmem:[%s1 + $0xe8] sm:$0xf]
    %v82 = vld [vmem:[%s1 + $0xec] sm:$0xf]
    %v83 = vld [vmem:[%s1 + $0xf0] sm:$0xf]
    %v84 = vld [vmem:[%s1 + $0xf4] sm:$0xf]
    %v85 = vld [vmem:[%s1 + $0xf8] sm:$0xf]
    %v86 = vld [vmem:[%s1 + $0xfc] sm:$0xf]
    %v87 = vld [vmem:[%s2] sm:$0x1]
    %v89 = vperm.slane %v87, 0
    %92 = vst [vmem:[#allocation1] ss:$9 sm:$0xff] %v22
    %v93 = vld [vmem:[#allocation1] sm:$0xff]
    %v94 = vld [vmem:[#allocation1 + $0x9] sm:$0xff]
    %v95 = vld [vmem:[#allocation1 + $0x12] sm:$0xff]
    %v96 = vld [vmem:[#allocation1 + $0x1b] sm:$0xff]
    %v165 = vunpack.c.l.b16 %v23
    %v166 = vunpack.c.l.b16 %v24
    %v167 = vunpack.c.l.b16 %v25
    %v168 = vunpack.c.l.b16 %v26
    %v169 = vunpack.c.l.b16 %v27
    %v170 = vunpack.c.l.b16 %v28
    %v171 = vunpack.c.l.b16 %v29
    %v172 = vunpack.c.l.b16 %v30
    %v173 = vunpack.c.l.b16 %v31
    %v174 = vunpack.c.l.b16 %v32
    %v175 = vunpack.c.l.b16 %v33
    %v176 = vunpack.c.l.b16 %v34
    %v177 = vunpack.c.l.b16 %v35
    %v178 = vunpack.c.l.b16 %v36
    %v179 = vunpack.c.l.b16 %v37
    %v180 = vunpack.c.l.b16 %v38
    %v181 = vunpack.c.l.b16 %v39
    %v182 = vunpack.c.l.b16 %v40
    %v183 = vunpack.c.l.b16 %v41
    %v184 = vunpack.c.l.b16 %v42
    %v185 = vunpack.c.l.b16 %v43
    %v186 = vunpack.c.l.b16 %v44
    %v187 = vunpack.c.l.b16 %v45
    %v188 = vunpack.c.l.b16 %v46
    %v189 = vunpack.c.l.b16 %v47
    %v190 = vunpack.c.l.b16 %v48
    %v191 = vunpack.c.l.b16 %v49
    %v192 = vunpack.c.l.b16 %v50
    %v193 = vunpack.c.l.b16 %v51
    %v194 = vunpack.c.l.b16 %v52
    %v195 = vunpack.c.l.b16 %v53
    %v196 = vunpack.c.l.b16 %v54
    %v197 = vunpack.c.l.b16 %v55
    %v198 = vunpack.c.l.b16 %v56
    %v199 = vunpack.c.l.b16 %v57
    %v200 = vunpack.c.l.b16 %v58
    %v201 = vunpack.c.l.b16 %v59
    %v202 = vunpack.c.l.b16 %v60
    %v203 = vunpack.c.l.b16 %v61
    %v204 = vunpack.c.l.b16 %v62
    %v205 = vunpack.c.l.b16 %v63
    %v206 = vunpack.c.l.b16 %v64
    %v207 = vunpack.c.l.b16 %v65
    %v208 = vunpack.c.l.b16 %v66
    %v209 = vunpack.c.l.b16 %v67
    %v210 = vunpack.c.l.b16 %v68
    %v211 = vunpack.c.l.b16 %v69
    %v212 = vunpack.c.l.b16 %v70
    %v213 = vunpack.c.l.b16 %v71
    %v214 = vunpack.c.l.b16 %v72
    %v215 = vunpack.c.l.b16 %v73
    %v216 = vunpack.c.l.b16 %v74
    %v217 = vunpack.c.l.b16 %v75
    %v218 = vunpack.c.l.b16 %v76
    %v219 = vunpack.c.l.b16 %v77
    %v220 = vunpack.c.l.b16 %v78
    %v221 = vunpack.c.l.b16 %v79
    %v222 = vunpack.c.l.b16 %v80
    %v223 = vunpack.c.l.b16 %v81
    %v224 = vunpack.c.l.b16 %v82
    %v225 = vunpack.c.l.b16 %v83
    %v226 = vunpack.c.l.b16 %v84
    %v227 = vunpack.c.l.b16 %v85
    %v228 = vunpack.c.l.b16 %v86
    %v229 = vpack.c.b16 %v166, %v165
    %v230 = vpack.c.b16 %v168, %v167
    %v231 = vpack.c.b16 %v170, %v169
    %v232 = vpack.c.b16 %v172, %v171
    %v233 = vpack.c.b16 %v174, %v173
    %v234 = vpack.c.b16 %v176, %v175
    %v235 = vpack.c.b16 %v178, %v177
    %v236 = vpack.c.b16 %v180, %v179
    %v237 = vpack.c.b16 %v182, %v181
    %v238 = vpack.c.b16 %v184, %v183
    %v239 = vpack.c.b16 %v186, %v185
    %v240 = vpack.c.b16 %v188, %v187
    %v241 = vpack.c.b16 %v190, %v189
    %v242 = vpack.c.b16 %v192, %v191
    %v243 = vpack.c.b16 %v194, %v193
    %v244 = vpack.c.b16 %v196, %v195
    %v245 = vpack.c.b16 %v198, %v197
    %v246 = vpack.c.b16 %v200, %v199
    %v247 = vpack.c.b16 %v202, %v201
    %v248 = vpack.c.b16 %v204, %v203
    %v249 = vpack.c.b16 %v206, %v205
    %v250 = vpack.c.b16 %v208, %v207
    %v251 = vpack.c.b16 %v210, %v209
    %v252 = vpack.c.b16 %v212, %v211
    %v253 = vpack.c.b16 %v214, %v213
    %v254 = vpack.c.b16 %v216, %v215
    %v255 = vpack.c.b16 %v218, %v217
    %v256 = vpack.c.b16 %v220, %v219
    %v257 = vpack.c.b16 %v222, %v221
    %v258 = vpack.c.b16 %v224, %v223
    %v259 = vpack.c.b16 %v226, %v225
    %v260 = vpack.c.b16 %v228, %v227
    %293 = vmatpush.bf16.msra.mxu0 %v236
    %294 = vmatpush.bf16.msra.mxu0 %v235
    %295 = vmatpush.bf16.msra.mxu0 %v234
    %296 = vmatpush.bf16.msra.mxu0 %v233
    %297 = vmatpush.bf16.msra.mxu0 %v232
    %298 = vmatpush.bf16.msra.mxu0 %v231
    %299 = vmatpush.bf16.msra.mxu0 %v230
    %300 = vmatpush.bf16.msra.mxu0 %v229
    %301 = vmatmul.bf16.gmra.mxu0 %v93
    %v302 = vpop.f32.mrf.mxu0
    %v303 = vadd.f32 %v89, %v302
    %v304 = vpop.f32.mrf.mxu0
    %305 = vdwg.mxu0
    %306 = vmatpush.bf16.msra.mxu0 %v244
    %307 = vmatpush.bf16.msra.mxu0 %v243
    %308 = vmatpush.bf16.msra.mxu0 %v242
    %309 = vmatpush.bf16.msra.mxu0 %v241
    %310 = vmatpush.bf16.msra.mxu0 %v240
    %311 = vmatpush.bf16.msra.mxu0 %v239
    %312 = vmatpush.bf16.msra.mxu0 %v238
    %313 = vmatpush.bf16.msra.mxu0 %v237
    %314 = vmatmul.bf16.gmra.mxu0 %v94
    %v315 = vpop.f32.mrf.mxu0
    %v316 = vadd.f32 %v303, %v315
    %v317 = vpop.f32.mrf.mxu0
    %318 = vdwg.mxu0
    %319 = vmatpush.bf16.msra.mxu0 %v252
    %320 = vmatpush.bf16.msra.mxu0 %v251
    %321 = vmatpush.bf16.msra.mxu0 %v250
    %322 = vmatpush.bf16.msra.mxu0 %v249
    %323 = vmatpush.bf16.msra.mxu0 %v248
    %324 = vmatpush.bf16.msra.mxu0 %v247
    %325 = vmatpush.bf16.msra.mxu0 %v246
    %326 = vmatpush.bf16.msra.mxu0 %v245
    %327 = vmatmul.bf16.gmra.mxu0 %v95
    %v328 = vpop.f32.mrf.mxu0
    %v329 = vadd.f32 %v316, %v328
    %v330 = vpop.f32.mrf.mxu0
    %331 = vdwg.mxu0
    %332 = vmatpush.bf16.msra.mxu0 %v260
    %333 = vmatpush.bf16.msra.mxu0 %v259
    %334 = vmatpush.bf16.msra.mxu0 %v258
    %335 = vmatpush.bf16.msra.mxu0 %v257
    %336 = vmatpush.bf16.msra.mxu0 %v256
    %337 = vmatpush.bf16.msra.mxu0 %v255
    %338 = vmatpush.bf16.msra.mxu0 %v254
    %339 = vmatpush.bf16.msra.mxu0 %v253
    %340 = vmatmul.bf16.gmra.mxu0 %v96
    %v341 = vpop.f32.mrf.mxu0
    %v342 = vadd.f32 %v329, %v341
    %v343 = vpop.f32.mrf.mxu0
    %344 = vdwg.mxu0
    %v345 = vmax.f32 %v342, 0.0
    %v346 = vpack.c.bf16 %v345, %v345
    %v347 = vld [vmem:[%s3] sm:$0xf]
    %v348 = vld [vmem:[%s3 + $0x4] sm:$0xf]
    %v349 = vld [vmem:[%s3 + $0x8] sm:$0xf]
    %v350 = vld [vmem:[%s3 + $0xc] sm:$0xf]
    %v351 = vld [vmem:[%s4] sm:$0x1]
    %v353 = vperm.slane %v351, 0
    %v359 = vunpack.c.l.b16 %v347
    %v360 = vunpack.c.l.b16 %v348
    %v361 = vunpack.c.l.b16 %v349
    %v362 = vunpack.c.l.b16 %v350
    %v363 = vpack.c.b16 %v360, %v359
    %v364 = vpack.c.b16 %v362, %v361
    %vm367 = vcmask 261120
    %v369 = vsel %vm367, %v346, 0
    %371 = vmatpush.bf16.msra.mxu0 0
    %372 = vmatpush.bf16.msra.mxu0 0
    %373 = vmatpush.bf16.msra.mxu0 0
    %374 = vmatpush.bf16.msra.mxu0 0
    %375 = vmatpush.bf16.msra.mxu0 0
    %376 = vmatpush.bf16.msra.mxu0 0
    %377 = vmatpush.bf16.msra.mxu0 %v364
    %378 = vmatpush.bf16.msra.mxu0 %v363
    %379 = vmatmul.bf16.gmra.mxu0 %v369
    %v380 = vpop.f32.mrf.mxu0
    %v381 = vadd.f32 %v353, %v380
    %v382 = vpop.f32.mrf.mxu0
    %383 = vdwg.mxu0
    %vm384 = vcmask 74752
    %385 = vst.msk [vmem:[#allocation2] sm:$0x3] %vm384, %v381
    // Predicated region
    $region22: #{conv_classifier_forward.3} parent=1 // pred_check
      _
    $region23: #{conv_classifier_forward.3} parent=1 // pred_check_branch
      %387 = sbr.rel (0) target = $region25
    $region24: #{conv_classifier_forward.3} parent=1 // pred_region
      %389 = vsyncadd [#allocation3], 0
      %s391 = sshll.u32 [#allocation2], 4
      %s392 = int_to_ptr.vmem [resolvable:$true] %s391
      %s393 = sshll.u32 %s5, 4
      %s394 = int_to_ptr.hbm [resolvable:$true] %s393
      %396 = dma.vmem_to_hbm [thread:$0]  %s392, 32, %s394, [#allocation3]
    $region25: #{conv_classifier_forward.3} parent=1 // pred_fallthru
      _
    // Predicated region
    $region26: #{conv_classifier_forward.3} parent=1 // pred_check
      _
    $region27: #{conv_classifier_forward.3} parent=1 // pred_check_branch
      %398 = sbr.rel (0) target = $region29
    $region28: #{conv_classifier_forward.3} parent=1 // pred_region
      %400 = dma.done [#allocation3], 32
    $region29: #{conv_classifier_forward.3} parent=1 // pred_fallthru
      _
    %401 = vsyncpa [#allocation3], 1

// kernel: conv_classifier_forward.2
$region0: #{conv_classifier_forward.2}
  #allocation0 [shape = 'u32[]', space=smem, size = 0x4, offset = 0x4, fixed_abs, tag = 'smem constant byte address 0x4 - core index']
  #allocation1 [shape = 'u32[72,128]{1,0:T(1,128)}', space=vmem, size = 0x9000, scoped, tag = 'internal scratch']
  #allocation2 [shape = 'bf16[8,768]{1,0:T(8,128)(2,1)}', space=vmem, size = 0x3000, scoped, tag = 'scratch operand']
  %s0 = inlined_call_operand.vmem [shape: bf16[1,4,512], index: 0, kind: input, shape index: {}]
  %s1 = inlined_call_operand.vmem [shape: bf16[9,8,8], index: 1, kind: input, shape index: {}]
  %s2 = inlined_call_operand.vmem [shape: bf16[9,8,8], index: 2, kind: input, shape index: {}]
  %s3 = inlined_call_operand.vmem [shape: f32[8,1], index: 3, kind: input, shape index: {}]
  %s4 = inlined_call_operand.vmem [shape: f32[8,1], index: 4, kind: input, shape index: {}]
  %s5 = inlined_call_operand.vmem [shape: bf16[9,512], index: 5, kind: input, shape index: {}]
  %s6 = inlined_call_operand.vmem [shape: bf16[512,128], index: 6, kind: input, shape index: {}]
  %s7 = inlined_call_operand.vmem [shape: f32[1,8,128], index: 7, kind: output, shape index: {}]
  %s8 = sld [smem:[#allocation0]]
  $region38: #{conv_classifier_forward.2} parent=0
    _
  %s10 = ssub.s32 1, %s8
  %s11 = scalar_select 0, %s10, %s8
  // Predicated region
  $region2: #{conv_classifier_forward.2} parent=0 // pred_check
    _
  $region3: #{conv_classifier_forward.2} parent=0 // pred_check_branch
    %13 = sbr.rel (0) target = $region5
  $region4: #{conv_classifier_forward.2} parent=0 // pred_region
    _
  $region5: #{conv_classifier_forward.2} parent=0 // pred_fallthru
    _
  // Predicated region
  $region6: #{conv_classifier_forward.2} parent=0 // pred_check
    _
  $region7: #{conv_classifier_forward.2} parent=0 // pred_check_branch
    %15 = sbr.rel (0) target = $region9
  $region8: #{conv_classifier_forward.2} parent=0 // pred_region
    _
  $region9: #{conv_classifier_forward.2} parent=0 // pred_fallthru
    _
  // Predicated region
  $region10: #{conv_classifier_forward.2} parent=0 // pred_check
    _
  $region11: #{conv_classifier_forward.2} parent=0 // pred_check_branch
    %17 = sbr.rel (0) target = $region13
  $region12: #{conv_classifier_forward.2} parent=0 // pred_region
    _
  $region13: #{conv_classifier_forward.2} parent=0 // pred_fallthru
    _
  // Predicated region
  $region14: #{conv_classifier_forward.2} parent=0 // pred_check
    _
  $region15: #{conv_classifier_forward.2} parent=0 // pred_check_branch
    %19 = sbr.rel (0) target = $region17
  $region16: #{conv_classifier_forward.2} parent=0 // pred_region
    _
  $region17: #{conv_classifier_forward.2} parent=0 // pred_fallthru
    _
  // Predicated region
  $region18: #{conv_classifier_forward.2} parent=0 // pred_check
    _
  $region19: #{conv_classifier_forward.2} parent=0 // pred_check_branch
    %21 = sbr.rel (0) target = $region21
  $region20: #{conv_classifier_forward.2} parent=0 // pred_region
    _
  $region21: #{conv_classifier_forward.2} parent=0 // pred_fallthru
    _
  // Predicated region
  $region22: #{conv_classifier_forward.2} parent=0 // pred_check
    _
  $region23: #{conv_classifier_forward.2} parent=0 // pred_check_branch
    %23 = sbr.rel (0) target = $region25
  $region24: #{conv_classifier_forward.2} parent=0 // pred_region
    _
  $region25: #{conv_classifier_forward.2} parent=0 // pred_fallthru
    _
  // Predicated region
  $region26: #{conv_classifier_forward.2} parent=0 // pred_check
    _
  $region27: #{conv_classifier_forward.2} parent=0 // pred_check_branch
    %25 = sbr.rel (0) target = $region29
  $region28: #{conv_classifier_forward.2} parent=0 // pred_region
    _
  $region29: #{conv_classifier_forward.2} parent=0 // pred_fallthru
    _
  %v27 = vld [vmem:[%s0] sm:$0xff]
  %28 = vst [vmem:[#allocation2] sm:$0xf] 0
  %29 = vst [vmem:[#allocation2 + $0x14] sm:$0xf] 0
  %31 = vst [vmem:[#allocation1] ss:$2 sm:$0xff] %v27
  %v32 = vld.sshfl [vmem:[#allocation1] sm:$0xff pattern:$0x75643120]
  %v33 = vld.sshfl [vmem:[#allocation1 + $0x8] sm:$0xff pattern:$0x75643120]
  %36 = vst [vmem:[#allocation2 + $0x4] sm:$0x33] %v32
  %37 = vst [vmem:[#allocation2 + $0xc] sm:$0x33] %v33
  %38 = vst [vmem:[#allocation2] sm:$0xcc] 0
  %39 = vst [vmem:[#allocation2 + $0x8] sm:$0xcc] 0
  %40 = vst [vmem:[#allocation2 + $0x10] sm:$0xcc] 0
  %v41 = vld [vmem:[#allocation2] sm:$0xff]
  %v42 = vld [vmem:[#allocation2 + $0x8] sm:$0xff]
  %v43 = vld [vmem:[#allocation2 + $0x10] sm:$0xf]
  %v44 = vld [vmem:[%s5] sm:$0x11]
  %v45 = vld [vmem:[%s5 + $0x8] sm:$0x11]
  %v48 = vunpack.c.l.b16 %v44
  %v49 = vunpack.c.h.b16 %v44
  %v50 = vunpack.c.l.b16 %v45
  %v51 = vunpack.c.h.b16 %v45
  %v52 = vpack.c.b16 %v48, %v48
  %v53 = vpack.c.b16 %v49, %v49
  %v54 = vpack.c.b16 %v50, %v50
  %v55 = vpack.c.b16 %v51, %v51
  %v57 = vpack.i.b16 %v52, %v52
  %v59 = vperm.slane %v57, 0
  %v61 = vpack.i.b16 %v53, %v53
  %v63 = vperm.slane %v61, 0
  %v65 = vpack.i.b16 %v54, %v54
  %v67 = vperm.slane %v65, 0
  %v69 = vpack.i.b16 %v55, %v55
  %v71 = vperm.slane %v69, 0
  %v72 = vunpack.c.l.bf16 %v41
  %v73 = vunpack.c.h.bf16 %v41
  %v74 = vunpack.c.l.bf16 %v42
  %v75 = vunpack.c.h.bf16 %v42
  %v76 = vunpack.c.l.bf16 %v43
  %v77 = vunpack.c.l.bf16 %v59
  %v78 = vunpack.c.l.bf16 %v63
  %v79 = vunpack.c.l.bf16 %v67
  %v80 = vunpack.c.l.bf16 %v71
  %85 = vrot.lane.b32.xlu0 %v77, 111
  %v86 = vpop.permute.xlu0 %85
  %87 = vrot.lane.b32.xlu0 %v78, 111
  %v88 = vpop.permute.xlu0 %87
  %89 = vrot.lane.b32.xlu0 %v79, 111
  %v90 = vpop.permute.xlu0 %89
  %91 = vrot.lane.b32.xlu0 %v80, 111
  %v92 = vpop.permute.xlu0 %91
  %vm93 = vcmask 908288
  %v94 = vsel %vm93, %v86, %v88
  %v95 = vsel %vm93, %v88, %v90
  %v96 = vsel %vm93, %v90, %v92
  %v102 = vmul.f32 %v72, %v86
  %v103 = vmul.f32 %v73, %v94
  %v104 = vmul.f32 %v74, %v95
  %v105 = vmul.f32 %v75, %v96
  %v106 = vmul.f32 %v76, %v92
  %v107 = vpack.c.bf16 %v102, %v102
  %v108 = vpack.c.bf16 %v103, %v103
  %v109 = vpack.c.bf16 %v104, %v104
  %v110 = vpack.c.bf16 %v105, %v105
  %v111 = vpack.c.bf16 %v106, %v106
  %v112 = vld [vmem:[%s1] sm:$0xf]
  %v113 = vshrl.u32 %v52, 16
  %v114 = vpack.i.b16 %v113, %v113
  %v116 = vperm.slane %v114, 0
  %v117 = vshrl.u32 %v53, 16
  %v118 = vpack.i.b16 %v117, %v117
  %v120 = vperm.slane %v118, 0
  %v121 = vshrl.u32 %v54, 16
  %v122 = vpack.i.b16 %v121, %v121
  %v124 = vperm.slane %v122, 0
  %v125 = vshrl.u32 %v55, 16
  %v126 = vpack.i.b16 %v125, %v125
  %v128 = vperm.slane %v126, 0
  %v129 = vunpack.c.l.bf16 %v116
  %v130 = vunpack.c.l.bf16 %v120
  %v131 = vunpack.c.l.bf16 %v124
  %v132 = vunpack.c.l.bf16 %v128
  %137 = vrot.lane.b32.xlu0 %v129, 112
  %v138 = vpop.permute.xlu0 %137
  %139 = vrot.lane.b32.xlu0 %v130, 112
  %v140 = vpop.permute.xlu0 %139
  %141 = vrot.lane.b32.xlu0 %v131, 112
  %v142 = vpop.permute.xlu0 %141
  %143 = vrot.lane.b32.xlu0 %v132, 112
  %v144 = vpop.permute.xlu0 %143
  %vm145 = vcmask 916480
  %v146 = vsel %vm145, %v138, %v140
  %v147 = vsel %vm145, %v140, %v142
  %v148 = vsel %vm145, %v142, %v144
  %v154 = vmul.f32 %v72, %v138
  %v155 = vmul.f32 %v73, %v146
  %v156 = vmul.f32 %v74, %v147
  %v157 = vmul.f32 %v75, %v148
  %v158 = vmul.f32 %v76, %v144
  %v159 = vpack.c.bf16 %v154, %v154
  %v160 = vpack.c.bf16 %v155, %v155
  %v161 = vpack.c.bf16 %v156, %v156
  %v162 = vpack.c.bf16 %v157, %v157
  %v163 = vpack.c.bf16 %v158, %v158
  %s164 = scalar_lea.vmem %s1, 4
  %v165 = vld [vmem:[%s164] sm:$0xf]
  %171 = vrot.lane.b32.xlu0 %v159, 16
  %v172 = vpop.permute.xlu0 %171
  %173 = vrot.lane.b32.xlu0 %v160, 16
  %v174 = vpop.permute.xlu0 %173
  %175 = vrot.lane.b32.xlu0 %v161, 16
  %v176 = vpop.permute.xlu0 %175
  %177 = vrot.lane.b32.xlu0 %v162, 16
  %v178 = vpop.permute.xlu0 %177
  %179 = vrot.lane.b32.xlu0 %v163, 16
  %v180 = vpop.permute.xlu0 %179
  %vm181 = vcmask 130048
  %v182 = vsel %vm181, %v172, %v174
  %v183 = vsel %vm181, %v174, %v176
  %v184 = vsel %vm181, %v176, %v178
  %v185 = vsel %vm181, %v178, %v180
  %vm186 = vcmask 64512
  %v188 = vsel %vm186, %v165, 0
  %vm190 = vcmask 1043456
  %v192 = vsel %vm190, %v182, 0
  %v195 = vsel %vm190, %v183, 0
  %v198 = vsel %vm190, %v184, 0
  %v201 = vsel %vm190, %v185, 0
  %203 = vmatpush.bf16.msra.mxu0 0
  %204 = vmatpush.bf16.msra.mxu0 0
  %205 = vmatpush.bf16.msra.mxu0 0
  %206 = vmatpush.bf16.msra.mxu0 0
  %207 = vmatpush.bf16.msra.mxu0 0
  %208 = vmatpush.bf16.msra.mxu0 0
  %209 = vmatpush.bf16.msra.mxu0 0
  %210 = vmatpush.bf16.msra.mxu0 %v192
  %211 = vmatmul.bf16.gmra.mxu0 %v188
  %v212 = vpop.f32.mrf.mxu0
  %v213 = vadd.f32 0.0, %v212
  %v214 = vpop.f32.mrf.mxu0
  %215 = vdwg.mxu0
  %216 = vmatpush.bf16.msra.mxu0 0
  %217 = vmatpush.bf16.msra.mxu0 0
  %218 = vmatpush.bf16.msra.mxu0 0
  %219 = vmatpush.bf16.msra.mxu0 0
  %220 = vmatpush.bf16.msra.mxu0 0
  %221 = vmatpush.bf16.msra.mxu0 0
  %222 = vmatpush.bf16.msra.mxu0 0
  %223 = vmatpush.bf16.msra.mxu0 %v195
  %224 = vmatmul.bf16.gmra.mxu0 %v188
  %v225 = vpop.f32.mrf.mxu0
  %v226 = vadd.f32 0.0, %v225
  %v227 = vpop.f32.mrf.mxu0
  %228 = vdwg.mxu0
  %229 = vmatpush.bf16.msra.mxu0 0
  %230 = vmatpush.bf16.msra.mxu0 0
  %231 = vmatpush.bf16.msra.mxu0 0
  %232 = vmatpush.bf16.msra.mxu0 0
  %233 = vmatpush.bf16.msra.mxu0 0
  %234 = vmatpush.bf16.msra.mxu0 0
  %235 = vmatpush.bf16.msra.mxu0 0
  %236 = vmatpush.bf16.msra.mxu0 %v198
  %237 = vmatmul.bf16.gmra.mxu0 %v188
  %v238 = vpop.f32.mrf.mxu0
  %v239 = vadd.f32 0.0, %v238
  %v240 = vpop.f32.mrf.mxu0
  %241 = vdwg.mxu0
  %242 = vmatpush.bf16.msra.mxu0 0
  %243 = vmatpush.bf16.msra.mxu0 0
  %244 = vmatpush.bf16.msra.mxu0 0
  %245 = vmatpush.bf16.msra.mxu0 0
  %246 = vmatpush.bf16.msra.mxu0 0
  %247 = vmatpush.bf16.msra.mxu0 0
  %248 = vmatpush.bf16.msra.mxu0 0
  %249 = vmatpush.bf16.msra.mxu0 %v201
  %250 = vmatmul.bf16.gmra.mxu0 %v188
  %v251 = vpop.f32.mrf.mxu0
  %v252 = vadd.f32 0.0, %v251
  %v253 = vpop.f32.mrf.mxu0
  %254 = vdwg.mxu0
  %260 = vrot.lane.b32.xlu0 %v107, 17
  %v261 = vpop.permute.xlu0 %260
  %262 = vrot.lane.b32.xlu0 %v108, 17
  %v263 = vpop.permute.xlu0 %262
  %264 = vrot.lane.b32.xlu0 %v109, 17
  %v265 = vpop.permute.xlu0 %264
  %266 = vrot.lane.b32.xlu0 %v110, 17
  %v267 = vpop.permute.xlu0 %266
  %268 = vrot.lane.b32.xlu0 %v111, 17
  %v269 = vpop.permute.xlu0 %268
  %vm270 = vcmask 138240
  %v271 = vsel %vm270, %v261, %v263
  %v272 = vsel %vm270, %v263, %v265
  %v273 = vsel %vm270, %v265, %v267
  %v274 = vsel %vm270, %v267, %v269
  %v276 = vsel %vm186, %v112, 0
  %v279 = vsel %vm190, %v271, 0
  %v282 = vsel %vm190, %v272, 0
  %v285 = vsel %vm190, %v273, 0
  %v288 = vsel %vm190, %v274, 0
  %290 = vmatpush.bf16.msra.mxu0 0
  %291 = vmatpush.bf16.msra.mxu0 0
  %292 = vmatpush.bf16.msra.mxu0 0
  %293 = vmatpush.bf16.msra.mxu0 0
  %294 = vmatpush.bf16.msra.mxu0 0
  %295 = vmatpush.bf16.msra.mxu0 0
  %296 = vmatpush.bf16.msra.mxu0 0
  %297 = vmatpush.bf16.msra.mxu0 %v279
  %298 = vmatmul.bf16.gmra.mxu0 %v276
  %v299 = vpop.f32.mrf.mxu0
  %v300 = vadd.f32 %v213, %v299
  %v301 = vpop.f32.mrf.mxu0
  %302 = vdwg.mxu0
  %303 = vmatpush.bf16.msra.mxu0 0
  %304 = vmatpush.bf16.msra.mxu0 0
  %305 = vmatpush.bf16.msra.mxu0 0
  %306 = vmatpush.bf16.msra.mxu0 0
  %307 = vmatpush.bf16.msra.mxu0 0
  %308 = vmatpush.bf16.msra.mxu0 0
  %309 = vmatpush.bf16.msra.mxu0 0
  %310 = vmatpush.bf16.msra.mxu0 %v282
  %311 = vmatmul.bf16.gmra.mxu0 %v276
  %v312 = vpop.f32.mrf.mxu0
  %v313 = vadd.f32 %v226, %v312
  %v314 = vpop.f32.mrf.mxu0
  %315 = vdwg.mxu0
  %316 = vmatpush.bf16.msra.mxu0 0
  %317 = vmatpush.bf16.msra.mxu0 0
  %318 = vmatpush.bf16.msra.mxu0 0
  %319 = vmatpush.bf16.msra.mxu0 0
  %320 = vmatpush.bf16.msra.mxu0 0
  %321 = vmatpush.bf16.msra.mxu0 0
  %322 = vmatpush.bf16.msra.mxu0 0
  %323 = vmatpush.bf16.msra.mxu0 %v285
  %324 = vmatmul.bf16.gmra.mxu0 %v276
  %v325 = vpop.f32.mrf.mxu0
  %v326 = vadd.f32 %v239, %v325
  %v327 = vpop.f32.mrf.mxu0
  %328 = vdwg.mxu0
  %329 = vmatpush.bf16.msra.mxu0 0
  %330 = vmatpush.bf16.msra.mxu0 0
  %331 = vmatpush.bf16.msra.mxu0 0
  %332 = vmatpush.bf16.msra.mxu0 0
  %333 = vmatpush.bf16.msra.mxu0 0
  %334 = vmatpush.bf16.msra.mxu0 0
  %335 = vmatpush.bf16.msra.mxu0 0
  %336 = vmatpush.bf16.msra.mxu0 %v288
  %337 = vmatmul.bf16.gmra.mxu0 %v276
  %v338 = vpop.f32.mrf.mxu0
  %v339 = vadd.f32 %v252, %v338
  %v340 = vpop.f32.mrf.mxu0
  %341 = vdwg.mxu0
  %v342 = vld [vmem:[%s5] sm:$0x22]
  %v343 = vld [vmem:[%s5 + $0x8] sm:$0x22]
  %v346 = vunpack.c.l.b16 %v342
  %v347 = vunpack.c.h.b16 %v342
  %v348 = vunpack.c.l.b16 %v343
  %v349 = vunpack.c.h.b16 %v343
  %v350 = vpack.c.b16 %v346, %v346
  %v351 = vpack.c.b16 %v347, %v347
  %v352 = vpack.c.b16 %v348, %v348
  %v353 = vpack.c.b16 %v349, %v349
  %v355 = vpack.i.b16 %v350, %v350
  %v357 = vperm.slane %v355, 1
  %v359 = vpack.i.b16 %v351, %v351
  %v361 = vperm.slane %v359, 1
  %v363 = vpack.i.b16 %v352, %v352
  %v365 = vperm.slane %v363, 1
  %v367 = vpack.i.b16 %v353, %v353
  %v369 = vperm.slane %v367, 1
  %v370 = vunpack.c.l.bf16 %v357
  %v371 = vunpack.c.l.bf16 %v361
  %v372 = vunpack.c.l.bf16 %v365
  %v373 = vunpack.c.l.bf16 %v369
  %378 = vrot.lane.b32.xlu0 %v370, 113
  %v379 = vpop.permute.xlu0 %378
  %380 = vrot.lane.b32.xlu0 %v371, 113
  %v381 = vpop.permute.xlu0 %380
  %382 = vrot.lane.b32.xlu0 %v372, 113
  %v383 = vpop.permute.xlu0 %382
  %384 = vrot.lane.b32.xlu0 %v373, 113
  %v385 = vpop.permute.xlu0 %384
  %vm386 = vcmask 924672
  %v387 = vsel %vm386, %v379, %v381
  %v388 = vsel %vm386, %v381, %v383
  %v389 = vsel %vm386, %v383, %v385
  %v395 = vmul.f32 %v72, %v379
  %v396 = vmul.f32 %v73, %v387
  %v397 = vmul.f32 %v74, %v388
  %v398 = vmul.f32 %v75, %v389
  %v399 = vmul.f32 %v76, %v385
  %v400 = vpack.c.bf16 %v395, %v395
  %v401 = vpack.c.bf16 %v396, %v396
  %v402 = vpack.c.bf16 %v397, %v397
  %v403 = vpack.c.bf16 %v398, %v398
  %v404 = vpack.c.bf16 %v399, %v399
  %s405 = scalar_lea.vmem %s1, 8
  %v406 = vld [vmem:[%s405] sm:$0xf]
  %412 = vrot.lane.b32.xlu0 %v400, 15
  %v413 = vpop.permute.xlu0 %412
  %414 = vrot.lane.b32.xlu0 %v401, 15
  %v415 = vpop.permute.xlu0 %414
  %416 = vrot.lane.b32.xlu0 %v402, 15
  %v417 = vpop.permute.xlu0 %416
  %418 = vrot.lane.b32.xlu0 %v403, 15
  %v419 = vpop.permute.xlu0 %418
  %420 = vrot.lane.b32.xlu0 %v404, 15
  %v421 = vpop.permute.xlu0 %420
  %vm422 = vcmask 121856
  %v423 = vsel %vm422, %v413, %v415
  %v424 = vsel %vm422, %v415, %v417
  %v425 = vsel %vm422, %v417, %v419
  %v426 = vsel %vm422, %v419, %v421
  %v428 = vsel %vm186, %v406, 0
  %v431 = vsel %vm190, %v423, 0
  %v434 = vsel %vm190, %v424, 0
  %v437 = vsel %vm190, %v425, 0
  %v440 = vsel %vm190, %v426, 0
  %442 = vmatpush.bf16.msra.mxu0 0
  %443 = vmatpush.bf16.msra.mxu0 0
  %444 = vmatpush.bf16.msra.mxu0 0
  %445 = vmatpush.bf16.msra.mxu0 0
  %446 = vmatpush.bf16.msra.mxu0 0
  %447 = vmatpush.bf16.msra.mxu0 0
  %448 = vmatpush.bf16.msra.mxu0 0
  %449 = vmatpush.bf16.msra.mxu0 %v431
  %450 = vmatmul.bf16.gmra.mxu0 %v428
  %v451 = vpop.f32.mrf.mxu0
  %v452 = vadd.f32 0.0, %v451
  %v453 = vpop.f32.mrf.mxu0
  %454 = vdwg.mxu0
  %455 = vmatpush.bf16.msra.mxu0 0
  %456 = vmatpush.bf16.msra.mxu0 0
  %457 = vmatpush.bf16.msra.mxu0 0
  %458 = vmatpush.bf16.msra.mxu0 0
  %459 = vmatpush.bf16.msra.mxu0 0
  %460 = vmatpush.bf16.msra.mxu0 0
  %461 = vmatpush.bf16.msra.mxu0 0
  %462 = vmatpush.bf16.msra.mxu0 %v434
  %463 = vmatmul.bf16.gmra.mxu0 %v428
  %v464 = vpop.f32.mrf.mxu0
  %v465 = vadd.f32 0.0, %v464
  %v466 = vpop.f32.mrf.mxu0
  %467 = vdwg.mxu0
  %468 = vmatpush.bf16.msra.mxu0 0
  %469 = vmatpush.bf16.msra.mxu0 0
  %470 = vmatpush.bf16.msra.mxu0 0
  %471 = vmatpush.bf16.msra.mxu0 0
  %472 = vmatpush.bf16.msra.mxu0 0
  %473 = vmatpush.bf16.msra.mxu0 0
  %474 = vmatpush.bf16.msra.mxu0 0
  %475 = vmatpush.bf16.msra.mxu0 %v437
  %476 = vmatmul.bf16.gmra.mxu0 %v428
  %v477 = vpop.f32.mrf.mxu0
  %v478 = vadd.f32 0.0, %v477
  %v479 = vpop.f32.mrf.mxu0
  %480 = vdwg.mxu0
  %481 = vmatpush.bf16.msra.mxu0 0
  %482 = vmatpush.bf16.msra.mxu0 0
  %483 = vmatpush.bf16.msra.mxu0 0
  %484 = vmatpush.bf16.msra.mxu0 0
  %485 = vmatpush.bf16.msra.mxu0 0
  %486 = vmatpush.bf16.msra.mxu0 0
  %487 = vmatpush.bf16.msra.mxu0 0
  %488 = vmatpush.bf16.msra.mxu0 %v440
  %489 = vmatmul.bf16.gmra.mxu0 %v428
  %v490 = vpop.f32.mrf.mxu0
  %v491 = vadd.f32 0.0, %v490
  %v492 = vpop.f32.mrf.mxu0
  %493 = vdwg.mxu0
  %v494 = vadd.f32 %v300, %v452
  %v495 = vadd.f32 %v313, %v465
  %v496 = vadd.f32 %v326, %v478
  %v497 = vadd.f32 %v339, %v491
  %v498 = vshrl.u32 %v350, 16
  %v499 = vpack.i.b16 %v498, %v498
  %v501 = vperm.slane %v499, 1
  %v502 = vshrl.u32 %v351, 16
  %v503 = vpack.i.b16 %v502, %v502
  %v505 = vperm.slane %v503, 1
  %v506 = vshrl.u32 %v352, 16
  %v507 = vpack.i.b16 %v506, %v506
  %v509 = vperm.slane %v507, 1
  %v510 = vshrl.u32 %v353, 16
  %v511 = vpack.i.b16 %v510, %v510
  %v513 = vperm.slane %v511, 1
  %v514 = vunpack.c.l.bf16 %v501
  %v515 = vunpack.c.l.bf16 %v505
  %v516 = vunpack.c.l.bf16 %v509
  %v517 = vunpack.c.l.bf16 %v513
  %522 = vrot.lane.b32.xlu0 %v514, 127
  %v523 = vpop.permute.xlu0 %522
  %524 = vrot.lane.b32.xlu0 %v515, 127
  %v525 = vpop.permute.xlu0 %524
  %526 = vrot.lane.b32.xlu0 %v516, 127
  %v527 = vpop.permute.xlu0 %526
  %528 = vrot.lane.b32.xlu0 %v517, 127
  %v529 = vpop.permute.xlu0 %528
  %vm530 = vcmask 1039360
  %v531 = vsel %vm530, %v523, %v525
  %v532 = vsel %vm530, %v525, %v527
  %v533 = vsel %vm530, %v527, %v529
  %v539 = vmul.f32 %v72, %v523
  %v540 = vmul.f32 %v73, %v531
  %v541 = vmul.f32 %v74, %v532
  %v542 = vmul.f32 %v75, %v533
  %v543 = vmul.f32 %v76, %v529
  %v544 = vpack.c.bf16 %v539, %v539
  %v545 = vpack.c.bf16 %v540, %v540
  %v546 = vpack.c.bf16 %v541, %v541
  %v547 = vpack.c.bf16 %v542, %v542
  %v548 = vpack.c.bf16 %v543, %v543
  %s549 = scalar_lea.vmem %s1, 12
  %v550 = vld [vmem:[%s549] sm:$0xf]
  %556 = vrot.lane.b32.xlu0 %v544, 1
  %v557 = vpop.permute.xlu0 %556
  %558 = vrot.lane.b32.xlu0 %v545, 1
  %v559 = vpop.permute.xlu0 %558
  %560 = vrot.lane.b32.xlu0 %v546, 1
  %v561 = vpop.permute.xlu0 %560
  %562 = vrot.lane.b32.xlu0 %v547, 1
  %v563 = vpop.permute.xlu0 %562
  %564 = vrot.lane.b32.xlu0 %v548, 1
  %v565 = vpop.permute.xlu0 %564
  %vm566 = vcmask 7168
  %v567 = vsel %vm566, %v557, %v559
  %v568 = vsel %vm566, %v559, %v561
  %v569 = vsel %vm566, %v561, %v563
  %v570 = vsel %vm566, %v563, %v565
  %v572 = vsel %vm186, %v550, 0
  %v575 = vsel %vm190, %v567, 0
  %v578 = vsel %vm190, %v568, 0
  %v581 = vsel %vm190, %v569, 0
  %v584 = vsel %vm190, %v570, 0
  %586 = vmatpush.bf16.msra.mxu0 0
  %587 = vmatpush.bf16.msra.mxu0 0
  %588 = vmatpush.bf16.msra.mxu0 0
  %589 = vmatpush.bf16.msra.mxu0 0
  %590 = vmatpush.bf16.msra.mxu0 0
  %591 = vmatpush.bf16.msra.mxu0 0
  %592 = vmatpush.bf16.msra.mxu0 0
  %593 = vmatpush.bf16.msra.mxu0 %v575
  %594 = vmatmul.bf16.gmra.mxu0 %v572
  %v595 = vpop.f32.mrf.mxu0
  %v596 = vadd.f32 0.0, %v595
  %v597 = vpop.f32.mrf.mxu0
  %598 = vdwg.mxu0
  %599 = vmatpush.bf16.msra.mxu0 0
  %600 = vmatpush.bf16.msra.mxu0 0
  %601 = vmatpush.bf16.msra.mxu0 0
  %602 = vmatpush.bf16.msra.mxu0 0
  %603 = vmatpush.bf16.msra.mxu0 0
  %604 = vmatpush.bf16.msra.mxu0 0
  %605 = vmatpush.bf16.msra.mxu0 0
  %606 = vmatpush.bf16.msra.mxu0 %v578
  %607 = vmatmul.bf16.gmra.mxu0 %v572
  %v608 = vpop.f32.mrf.mxu0
  %v609 = vadd.f32 0.0, %v608
  %v610 = vpop.f32.mrf.mxu0
  %611 = vdwg.mxu0
  %612 = vmatpush.bf16.msra.mxu0 0
  %613 = vmatpush.bf16.msra.mxu0 0
  %614 = vmatpush.bf16.msra.mxu0 0
  %615 = vmatpush.bf16.msra.mxu0 0
  %616 = vmatpush.bf16.msra.mxu0 0
  %617 = vmatpush.bf16.msra.mxu0 0
  %618 = vmatpush.bf16.msra.mxu0 0
  %619 = vmatpush.bf16.msra.mxu0 %v581
  %620 = vmatmul.bf16.gmra.mxu0 %v572
  %v621 = vpop.f32.mrf.mxu0
  %v622 = vadd.f32 0.0, %v621
  %v623 = vpop.f32.mrf.mxu0
  %624 = vdwg.mxu0
  %625 = vmatpush.bf16.msra.mxu0 0
  %626 = vmatpush.bf16.msra.mxu0 0
  %627 = vmatpush.bf16.msra.mxu0 0
  %628 = vmatpush.bf16.msra.mxu0 0
  %629 = vmatpush.bf16.msra.mxu0 0
  %630 = vmatpush.bf16.msra.mxu0 0
  %631 = vmatpush.bf16.msra.mxu0 0
  %632 = vmatpush.bf16.msra.mxu0 %v584
  %633 = vmatmul.bf16.gmra.mxu0 %v572
  %v634 = vpop.f32.mrf.mxu0
  %v635 = vadd.f32 0.0, %v634
  %v636 = vpop.f32.mrf.mxu0
  %637 = vdwg.mxu0
  %v638 = vadd.f32 %v494, %v596
  %v639 = vadd.f32 %v495, %v609
  %v640 = vadd.f32 %v496, %v622
  %v641 = vadd.f32 %v497, %v635
  %v642 = vld [vmem:[#allocation2 + $0x4] sm:$0xff]
  %v643 = vld [vmem:[#allocation2 + $0xc] sm:$0xff]
  %s644 = scalar_lea.vmem %s1, 16
  %v645 = vld [vmem:[%s644] sm:$0xf]
  %v648 = vunpack.c.l.b16 %v642
  %v649 = vunpack.c.h.b16 %v642
  %v650 = vunpack.c.l.b16 %v643
  %v651 = vunpack.c.h.b16 %v643
  %v652 = vpack.c.b16 %v648, %v648
  %v653 = vpack.c.b16 %v649, %v649
  %v654 = vpack.c.b16 %v650, %v650
  %v655 = vpack.c.b16 %v651, %v651
  %v657 = vsel %vm186, %v645, 0
  %v660 = vsel %vm190, %v652, 0
  %v663 = vsel %vm190, %v653, 0
  %v666 = vsel %vm190, %v654, 0
  %v669 = vsel %vm190, %v655, 0
  %671 = vmatpush.bf16.msra.mxu0 0
  %672 = vmatpush.bf16.msra.mxu0 0
  %673 = vmatpush.bf16.msra.mxu0 0
  %674 = vmatpush.bf16.msra.mxu0 0
  %675 = vmatpush.bf16.msra.mxu0 0
  %676 = vmatpush.bf16.msra.mxu0 0
  %677 = vmatpush.bf16.msra.mxu0 0
  %678 = vmatpush.bf16.msra.mxu0 %v660
  %679 = vmatmul.bf16.gmra.mxu0 %v657
  %v680 = vpop.f32.mrf.mxu0
  %v681 = vadd.f32 0.0, %v680
  %v682 = vpop.f32.mrf.mxu0
  %683 = vdwg.mxu0
  %684 = vmatpush.bf16.msra.mxu0 0
  %685 = vmatpush.bf16.msra.mxu0 0
  %686 = vmatpush.bf16.msra.mxu0 0
  %687 = vmatpush.bf16.msra.mxu0 0
  %688 = vmatpush.bf16.msra.mxu0 0
  %689 = vmatpush.bf16.msra.mxu0 0
  %690 = vmatpush.bf16.msra.mxu0 0
  %691 = vmatpush.bf16.msra.mxu0 %v663
  %692 = vmatmul.bf16.gmra.mxu0 %v657
  %v693 = vpop.f32.mrf.mxu0
  %v694 = vadd.f32 0.0, %v693
  %v695 = vpop.f32.mrf.mxu0
  %696 = vdwg.mxu0
  %697 = vmatpush.bf16.msra.mxu0 0
  %698 = vmatpush.bf16.msra.mxu0 0
  %699 = vmatpush.bf16.msra.mxu0 0
  %700 = vmatpush.bf16.msra.mxu0 0
  %701 = vmatpush.bf16.msra.mxu0 0
  %702 = vmatpush.bf16.msra.mxu0 0
  %703 = vmatpush.bf16.msra.mxu0 0
  %704 = vmatpush.bf16.msra.mxu0 %v666
  %705 = vmatmul.bf16.gmra.mxu0 %v657
  %v706 = vpop.f32.mrf.mxu0
  %v707 = vadd.f32 0.0, %v706
  %v708 = vpop.f32.mrf.mxu0
  %709 = vdwg.mxu0
  %710 = vmatpush.bf16.msra.mxu0 0
  %711 = vmatpush.bf16.msra.mxu0 0
  %712 = vmatpush.bf16.msra.mxu0 0
  %713 = vmatpush.bf16.msra.mxu0 0
  %714 = vmatpush.bf16.msra.mxu0 0
  %715 = vmatpush.bf16.msra.mxu0 0
  %716 = vmatpush.bf16.msra.mxu0 0
  %717 = vmatpush.bf16.msra.mxu0 %v669
  %718 = vmatmul.bf16.gmra.mxu0 %v657
  %v719 = vpop.f32.mrf.mxu0
  %v720 = vadd.f32 0.0, %v719
  %v721 = vpop.f32.mrf.mxu0
  %722 = vdwg.mxu0
  %v723 = vadd.f32 %v638, %v681
  %v724 = vadd.f32 %v639, %v694
  %v725 = vadd.f32 %v640, %v707
  %v726 = vadd.f32 %v641, %v720
  %v727 = vld [vmem:[#allocation2 + $0x4] sm:$0xff]
  %v728 = vld [vmem:[#allocation2 + $0xc] sm:$0xff]
  %v729 = vld [vmem:[#allocation2 + $0x14] sm:$0xf]
  %v730 = vld [vmem:[%s5] sm:$0x44]
  %v731 = vld [vmem:[%s5 + $0x8] sm:$0x44]
  %v734 = vunpack.c.l.b16 %v730
  %v735 = vunpack.c.h.b16 %v730
  %v736 = vunpack.c.l.b16 %v731
  %v737 = vunpack.c.h.b16 %v731
  %v738 = vpack.c.b16 %v734, %v734
  %v739 = vpack.c.b16 %v735, %v735
  %v740 = vpack.c.b16 %v736, %v736
  %v741 = vpack.c.b16 %v737, %v737
  %v743 = vshrl.u32 %v738, 16
  %v744 = vpack.i.b16 %v743, %v743
  %v746 = vperm.slane %v744, 2
  %v748 = vshrl.u32 %v739, 16
  %v749 = vpack.i.b16 %v748, %v748
  %v751 = vperm.slane %v749, 2
  %v753 = vshrl.u32 %v740, 16
  %v754 = vpack.i.b16 %v753, %v753
  %v756 = vperm.slane %v754, 2
  %v758 = vshrl.u32 %v741, 16
  %v759 = vpack.i.b16 %v758, %v758
  %v761 = vperm.slane %v759, 2
  %v762 = vunpack.c.l.bf16 %v727
  %v763 = vunpack.c.h.bf16 %v727
  %v764 = vunpack.c.l.bf16 %v728
  %v765 = vunpack.c.h.bf16 %v728
  %v766 = vunpack.c.l.bf16 %v729
  %v767 = vunpack.c.l.bf16 %v746
  %v768 = vunpack.c.l.bf16 %v751
  %v769 = vunpack.c.l.bf16 %v756
  %v770 = vunpack.c.l.bf16 %v761
  %775 = vrot.lane.b32.xlu0 %v767, 1
  %v776 = vpop.permute.xlu0 %775
  %777 = vrot.lane.b32.xlu0 %v768, 1
  %v778 = vpop.permute.xlu0 %777
  %779 = vrot.lane.b32.xlu0 %v769, 1
  %v780 = vpop.permute.xlu0 %779
  %781 = vrot.lane.b32.xlu0 %v770, 1
  %v782 = vpop.permute.xlu0 %781
  %vm783 = vcmask 7168
  %v784 = vsel %vm783, %v776, %v778
  %v785 = vsel %vm783, %v778, %v780
  %v786 = vsel %vm783, %v780, %v782
  %v792 = vmul.f32 %v762, %v776
  %v793 = vmul.f32 %v763, %v784
  %v794 = vmul.f32 %v764, %v785
  %v795 = vmul.f32 %v765, %v786
  %v796 = vmul.f32 %v766, %v782
  %v797 = vpack.c.bf16 %v792, %v792
  %v798 = vpack.c.bf16 %v793, %v793
  %v799 = vpack.c.bf16 %v794, %v794
  %v800 = vpack.c.bf16 %v795, %v795
  %v801 = vpack.c.bf16 %v796, %v796
  %s802 = scalar_lea.vmem %s1, 20
  %v803 = vld [vmem:[%s802] sm:$0xf]
  %809 = vrot.lane.b32.xlu0 %v797, 127
  %v810 = vpop.permute.xlu0 %809
  %811 = vrot.lane.b32.xlu0 %v798, 127
  %v812 = vpop.permute.xlu0 %811
  %813 = vrot.lane.b32.xlu0 %v799, 127
  %v814 = vpop.permute.xlu0 %813
  %815 = vrot.lane.b32.xlu0 %v800, 127
  %v816 = vpop.permute.xlu0 %815
  %817 = vrot.lane.b32.xlu0 %v801, 127
  %v818 = vpop.permute.xlu0 %817
  %vm819 = vcmask 1039360
  %v820 = vsel %vm819, %v810, %v812
  %v821 = vsel %vm819, %v812, %v814
  %v822 = vsel %vm819, %v814, %v816
  %v823 = vsel %vm819, %v816, %v818
  %v825 = vsel %vm186, %v803, 0
  %v828 = vsel %vm190, %v820, 0
  %v831 = vsel %vm190, %v821, 0
  %v834 = vsel %vm190, %v822, 0
  %v837 = vsel %vm190, %v823, 0
  %839 = vmatpush.bf16.msra.mxu0 0
  %840 = vmatpush.bf16.msra.mxu0 0
  %841 = vmatpush.bf16.msra.mxu0 0
  %842 = vmatpush.bf16.msra.mxu0 0
  %843 = vmatpush.bf16.msra.mxu0 0
  %844 = vmatpush.bf16.msra.mxu0 0
  %845 = vmatpush.bf16.msra.mxu0 0
  %846 = vmatpush.bf16.msra.mxu0 %v828
  %847 = vmatmul.bf16.gmra.mxu0 %v825
  %v848 = vpop.f32.mrf.mxu0
  %v849 = vadd.f32 0.0, %v848
  %v850 = vpop.f32.mrf.mxu0
  %851 = vdwg.mxu0
  %852 = vmatpush.bf16.msra.mxu0 0
  %853 = vmatpush.bf16.msra.mxu0 0
  %854 = vmatpush.bf16.msra.mxu0 0
  %855 = vmatpush.bf16.msra.mxu0 0
  %856 = vmatpush.bf16.msra.mxu0 0
  %857 = vmatpush.bf16.msra.mxu0 0
  %858 = vmatpush.bf16.msra.mxu0 0
  %859 = vmatpush.bf16.msra.mxu0 %v831
  %860 = vmatmul.bf16.gmra.mxu0 %v825
  %v861 = vpop.f32.mrf.mxu0
  %v862 = vadd.f32 0.0, %v861
  %v863 = vpop.f32.mrf.mxu0
  %864 = vdwg.mxu0
  %865 = vmatpush.bf16.msra.mxu0 0
  %866 = vmatpush.bf16.msra.mxu0 0
  %867 = vmatpush.bf16.msra.mxu0 0
  %868 = vmatpush.bf16.msra.mxu0 0
  %869 = vmatpush.bf16.msra.mxu0 0
  %870 = vmatpush.bf16.msra.mxu0 0
  %871 = vmatpush.bf16.msra.mxu0 0
  %872 = vmatpush.bf16.msra.mxu0 %v834
  %873 = vmatmul.bf16.gmra.mxu0 %v825
  %v874 = vpop.f32.mrf.mxu0
  %v875 = vadd.f32 0.0, %v874
  %v876 = vpop.f32.mrf.mxu0
  %877 = vdwg.mxu0
  %878 = vmatpush.bf16.msra.mxu0 0
  %879 = vmatpush.bf16.msra.mxu0 0
  %880 = vmatpush.bf16.msra.mxu0 0
  %881 = vmatpush.bf16.msra.mxu0 0
  %882 = vmatpush.bf16.msra.mxu0 0
  %883 = vmatpush.bf16.msra.mxu0 0
  %884 = vmatpush.bf16.msra.mxu0 0
  %885 = vmatpush.bf16.msra.mxu0 %v837
  %886 = vmatmul.bf16.gmra.mxu0 %v825
  %v887 = vpop.f32.mrf.mxu0
  %v888 = vadd.f32 0.0, %v887
  %v889 = vpop.f32.mrf.mxu0
  %890 = vdwg.mxu0
  %v891 = vadd.f32 %v723, %v849
  %v892 = vadd.f32 %v724, %v862
  %v893 = vadd.f32 %v725, %v875
  %v894 = vadd.f32 %v726, %v888
  %v895 = vld [vmem:[%s5] sm:$0x88]
  %v896 = vld [vmem:[%s5 + $0x8] sm:$0x88]
  %v899 = vunpack.c.l.b16 %v895
  %v900 = vunpack.c.h.b16 %v895
  %v901 = vunpack.c.l.b16 %v896
  %v902 = vunpack.c.h.b16 %v896
  %v903 = vpack.c.b16 %v899, %v899
  %v904 = vpack.c.b16 %v900, %v900
  %v905 = vpack.c.b16 %v901, %v901
  %v906 = vpack.c.b16 %v902, %v902
  %v908 = vpack.i.b16 %v903, %v903
  %v910 = vperm.slane %v908, 3
  %v912 = vpack.i.b16 %v904, %v904
  %v914 = vperm.slane %v912, 3
  %v916 = vpack.i.b16 %v905, %v905
  %v918 = vperm.slane %v916, 3
  %v920 = vpack.i.b16 %v906, %v906
  %v922 = vperm.slane %v920, 3
  %v923 = vunpack.c.l.bf16 %v910
  %v924 = vunpack.c.l.bf16 %v914
  %v925 = vunpack.c.l.bf16 %v918
  %v926 = vunpack.c.l.bf16 %v922
  %931 = vrot.lane.b32.xlu0 %v923, 15
  %v932 = vpop.permute.xlu0 %931
  %933 = vrot.lane.b32.xlu0 %v924, 15
  %v934 = vpop.permute.xlu0 %933
  %935 = vrot.lane.b32.xlu0 %v925, 15
  %v936 = vpop.permute.xlu0 %935
  %937 = vrot.lane.b32.xlu0 %v926, 15
  %v938 = vpop.permute.xlu0 %937
  %vm939 = vcmask 121856
  %v940 = vsel %vm939, %v932, %v934
  %v941 = vsel %vm939, %v934, %v936
  %v942 = vsel %vm939, %v936, %v938
  %v948 = vmul.f32 %v762, %v932
  %v949 = vmul.f32 %v763, %v940
  %v950 = vmul.f32 %v764, %v941
  %v951 = vmul.f32 %v765, %v942
  %v952 = vmul.f32 %v766, %v938
  %v953 = vpack.c.bf16 %v948, %v948
  %v954 = vpack.c.bf16 %v949, %v949
  %v955 = vpack.c.bf16 %v950, %v950
  %v956 = vpack.c.bf16 %v951, %v951
  %v957 = vpack.c.bf16 %v952, %v952
  %s958 = scalar_lea.vmem %s1, 24
  %v959 = vld [vmem:[%s958] sm:$0xf]
  %965 = vrot.lane.b32.xlu0 %v953, 113
  %v966 = vpop.permute.xlu0 %965
  %967 = vrot.lane.b32.xlu0 %v954, 113
  %v968 = vpop.permute.xlu0 %967
  %969 = vrot.lane.b32.xlu0 %v955, 113
  %v970 = vpop.permute.xlu0 %969
  %971 = vrot.lane.b32.xlu0 %v956, 113
  %v972 = vpop.permute.xlu0 %971
  %973 = vrot.lane.b32.xlu0 %v957, 113
  %v974 = vpop.permute.xlu0 %973
  %vm975 = vcmask 924672
  %v976 = vsel %vm975, %v966, %v968
  %v977 = vsel %vm975, %v968, %v970
  %v978 = vsel %vm975, %v970, %v972
  %v979 = vsel %vm975, %v972, %v974
  %v981 = vsel %vm186, %v959, 0
  %v984 = vsel %vm190, %v976, 0
  %v987 = vsel %vm190, %v977, 0
  %v990 = vsel %vm190, %v978, 0
  %v993 = vsel %vm190, %v979, 0
  %995 = vmatpush.bf16.msra.mxu0 0
  %996 = vmatpush.bf16.msra.mxu0 0
  %997 = vmatpush.bf16.msra.mxu0 0
  %998 = vmatpush.bf16.msra.mxu0 0
  %999 = vmatpush.bf16.msra.mxu0 0
  %1000 = vmatpush.bf16.msra.mxu0 0
  %1001 = vmatpush.bf16.msra.mxu0 0
  %1002 = vmatpush.bf16.msra.mxu0 %v984
  %1003 = vmatmul.bf16.gmra.mxu0 %v981
  %v1004 = vpop.f32.mrf.mxu0
  %v1005 = vadd.f32 0.0, %v1004
  %v1006 = vpop.f32.mrf.mxu0
  %1007 = vdwg.mxu0
  %1008 = vmatpush.bf16.msra.mxu0 0
  %1009 = vmatpush.bf16.msra.mxu0 0
  %1010 = vmatpush.bf16.msra.mxu0 0
  %1011 = vmatpush.bf16.msra.mxu0 0
  %1012 = vmatpush.bf16.msra.mxu0 0
  %1013 = vmatpush.bf16.msra.mxu0 0
  %1014 = vmatpush.bf16.msra.mxu0 0
  %1015 = vmatpush.bf16.msra.mxu0 %v987
  %1016 = vmatmul.bf16.gmra.mxu0 %v981
  %v1017 = vpop.f32.mrf.mxu0
  %v1018 = vadd.f32 0.0, %v1017
  %v1019 = vpop.f32.mrf.mxu0
  %1020 = vdwg.mxu0
  %1021 = vmatpush.bf16.msra.mxu0 0
  %1022 = vmatpush.bf16.msra.mxu0 0
  %1023 = vmatpush.bf16.msra.mxu0 0
  %1024 = vmatpush.bf16.msra.mxu0 0
  %1025 = vmatpush.bf16.msra.mxu0 0
  %1026 = vmatpush.bf16.msra.mxu0 0
  %1027 = vmatpush.bf16.msra.mxu0 0
  %1028 = vmatpush.bf16.msra.mxu0 %v990
  %1029 = vmatmul.bf16.gmra.mxu0 %v981
  %v1030 = vpop.f32.mrf.mxu0
  %v1031 = vadd.f32 0.0, %v1030
  %v1032 = vpop.f32.mrf.mxu0
  %1033 = vdwg.mxu0
  %1034 = vmatpush.bf16.msra.mxu0 0
  %1035 = vmatpush.bf16.msra.mxu0 0
  %1036 = vmatpush.bf16.msra.mxu0 0
  %1037 = vmatpush.bf16.msra.mxu0 0
  %1038 = vmatpush.bf16.msra.mxu0 0
  %1039 = vmatpush.bf16.msra.mxu0 0
  %1040 = vmatpush.bf16.msra.mxu0 0
  %1041 = vmatpush.bf16.msra.mxu0 %v993
  %1042 = vmatmul.bf16.gmra.mxu0 %v981
  %v1043 = vpop.f32.mrf.mxu0
  %v1044 = vadd.f32 0.0, %v1043
  %v1045 = vpop.f32.mrf.mxu0
  %1046 = vdwg.mxu0
  %v1047 = vadd.f32 %v891, %v1005
  %v1048 = vadd.f32 %v892, %v1018
  %v1049 = vadd.f32 %v893, %v1031
  %v1050 = vadd.f32 %v894, %v1044
  %v1051 = vshrl.u32 %v903, 16
  %v1052 = vpack.i.b16 %v1051, %v1051
  %v1054 = vperm.slane %v1052, 3
  %v1055 = vshrl.u32 %v904, 16
  %v1056 = vpack.i.b16 %v1055, %v1055
  %v1058 = vperm.slane %v1056, 3
  %v1059 = vshrl.u32 %v905, 16
  %v1060 = vpack.i.b16 %v1059, %v1059
  %v1062 = vperm.slane %v1060, 3
  %v1063 = vshrl.u32 %v906, 16
  %v1064 = vpack.i.b16 %v1063, %v1063
  %v1066 = vperm.slane %v1064, 3
  %v1067 = vunpack.c.l.bf16 %v1054
  %v1068 = vunpack.c.l.bf16 %v1058
  %v1069 = vunpack.c.l.bf16 %v1062
  %v1070 = vunpack.c.l.bf16 %v1066
  %1075 = vrot.lane.b32.xlu0 %v1067, 16
  %v1076 = vpop.permute.xlu0 %1075
  %1077 = vrot.lane.b32.xlu0 %v1068, 16
  %v1078 = vpop.permute.xlu0 %1077
  %1079 = vrot.lane.b32.xlu0 %v1069, 16
  %v1080 = vpop.permute.xlu0 %1079
  %1081 = vrot.lane.b32.xlu0 %v1070, 16
  %v1082 = vpop.permute.xlu0 %1081
  %vm1083 = vcmask 130048
  %v1084 = vsel %vm1083, %v1076, %v1078
  %v1085 = vsel %vm1083, %v1078, %v1080
  %v1086 = vsel %vm1083, %v1080, %v1082
  %v1092 = vmul.f32 %v762, %v1076
  %v1093 = vmul.f32 %v763, %v1084
  %v1094 = vmul.f32 %v764, %v1085
  %v1095 = vmul.f32 %v765, %v1086
  %v1096 = vmul.f32 %v766, %v1082
  %v1097 = vpack.c.bf16 %v1092, %v1092
  %v1098 = vpack.c.bf16 %v1093, %v1093
  %v1099 = vpack.c.bf16 %v1094, %v1094
  %v1100 = vpack.c.bf16 %v1095, %v1095
  %v1101 = vpack.c.bf16 %v1096, %v1096
  %s1102 = scalar_lea.vmem %s1, 28
  %v1103 = vld [vmem:[%s1102] sm:$0xf]
  %1109 = vrot.lane.b32.xlu0 %v1097, 112
  %v1110 = vpop.permute.xlu0 %1109
  %1111 = vrot.lane.b32.xlu0 %v1098, 112
  %v1112 = vpop.permute.xlu0 %1111
  %1113 = vrot.lane.b32.xlu0 %v1099, 112
  %v1114 = vpop.permute.xlu0 %1113
  %1115 = vrot.lane.b32.xlu0 %v1100, 112
  %v1116 = vpop.permute.xlu0 %1115
  %1117 = vrot.lane.b32.xlu0 %v1101, 112
  %v1118 = vpop.permute.xlu0 %1117
  %vm1119 = vcmask 916480
  %v1120 = vsel %vm1119, %v1110, %v1112
  %v1121 = vsel %vm1119, %v1112, %v1114
  %v1122 = vsel %vm1119, %v1114, %v1116
  %v1123 = vsel %vm1119, %v1116, %v1118
  %v1125 = vsel %vm186, %v1103, 0
  %v1128 = vsel %vm190, %v1120, 0
  %v1131 = vsel %vm190, %v1121, 0
  %v1134 = vsel %vm190, %v1122, 0
  %v1137 = vsel %vm190, %v1123, 0
  %1139 = vmatpush.bf16.msra.mxu0 0
  %1140 = vmatpush.bf16.msra.mxu0 0
  %1141 = vmatpush.bf16.msra.mxu0 0
  %1142 = vmatpush.bf16.msra.mxu0 0
  %1143 = vmatpush.bf16.msra.mxu0 0
  %1144 = vmatpush.bf16.msra.mxu0 0
  %1145 = vmatpush.bf16.msra.mxu0 0
  %1146 = vmatpush.bf16.msra.mxu0 %v1128
  %1147 = vmatmul.bf16.gmra.mxu0 %v1125
  %v1148 = vpop.f32.mrf.mxu0
  %v1149 = vadd.f32 0.0, %v1148
  %v1150 = vpop.f32.mrf.mxu0
  %1151 = vdwg.mxu0
  %1152 = vmatpush.bf16.msra.mxu0 0
  %1153 = vmatpush.bf16.msra.mxu0 0
  %1154 = vmatpush.bf16.msra.mxu0 0
  %1155 = vmatpush.bf16.msra.mxu0 0
  %1156 = vmatpush.bf16.msra.mxu0 0
  %1157 = vmatpush.bf16.msra.mxu0 0
  %1158 = vmatpush.bf16.msra.mxu0 0
  %1159 = vmatpush.bf16.msra.mxu0 %v1131
  %1160 = vmatmul.bf16.gmra.mxu0 %v1125
  %v1161 = vpop.f32.mrf.mxu0
  %v1162 = vadd.f32 0.0, %v1161
  %v1163 = vpop.f32.mrf.mxu0
  %1164 = vdwg.mxu0
  %1165 = vmatpush.bf16.msra.mxu0 0
  %1166 = vmatpush.bf16.msra.mxu0 0
  %1167 = vmatpush.bf16.msra.mxu0 0
  %1168 = vmatpush.bf16.msra.mxu0 0
  %1169 = vmatpush.bf16.msra.mxu0 0
  %1170 = vmatpush.bf16.msra.mxu0 0
  %1171 = vmatpush.bf16.msra.mxu0 0
  %1172 = vmatpush.bf16.msra.mxu0 %v1134
  %1173 = vmatmul.bf16.gmra.mxu0 %v1125
  %v1174 = vpop.f32.mrf.mxu0
  %v1175 = vadd.f32 0.0, %v1174
  %v1176 = vpop.f32.mrf.mxu0
  %1177 = vdwg.mxu0
  %1178 = vmatpush.bf16.msra.mxu0 0
  %1179 = vmatpush.bf16.msra.mxu0 0
  %1180 = vmatpush.bf16.msra.mxu0 0
  %1181 = vmatpush.bf16.msra.mxu0 0
  %1182 = vmatpush.bf16.msra.mxu0 0
  %1183 = vmatpush.bf16.msra.mxu0 0
  %1184 = vmatpush.bf16.msra.mxu0 0
  %1185 = vmatpush.bf16.msra.mxu0 %v1137
  %1186 = vmatmul.bf16.gmra.mxu0 %v1125
  %v1187 = vpop.f32.mrf.mxu0
  %v1188 = vadd.f32 0.0, %v1187
  %v1189 = vpop.f32.mrf.mxu0
  %1190 = vdwg.mxu0
  %v1191 = vadd.f32 %v1047, %v1149
  %v1192 = vadd.f32 %v1048, %v1162
  %v1193 = vadd.f32 %v1049, %v1175
  %v1194 = vadd.f32 %v1050, %v1188
  %v1195 = vld [vmem:[%s5 + $0x10] sm:$0x11]
  %v1196 = vld [vmem:[%s5 + $0x18] sm:$0x11]
  %v1199 = vunpack.c.l.b16 %v1195
  %v1200 = vunpack.c.h.b16 %v1195
  %v1201 = vunpack.c.l.b16 %v1196
  %v1202 = vunpack.c.h.b16 %v1196
  %v1203 = vpack.c.b16 %v1199, %v1199
  %v1204 = vpack.c.b16 %v1200, %v1200
  %v1205 = vpack.c.b16 %v1201, %v1201
  %v1206 = vpack.c.b16 %v1202, %v1202
  %v1208 = vpack.i.b16 %v1203, %v1203
  %v1210 = vperm.slane %v1208, 0
  %v1212 = vpack.i.b16 %v1204, %v1204
  %v1214 = vperm.slane %v1212, 0
  %v1216 = vpack.i.b16 %v1205, %v1205
  %v1218 = vperm.slane %v1216, 0
  %v1220 = vpack.i.b16 %v1206, %v1206
  %v1222 = vperm.slane %v1220, 0
  %v1223 = vunpack.c.l.bf16 %v1210
  %v1224 = vunpack.c.l.bf16 %v1214
  %v1225 = vunpack.c.l.bf16 %v1218
  %v1226 = vunpack.c.l.bf16 %v1222
  %1231 = vrot.lane.b32.xlu0 %v1223, 17
  %v1232 = vpop.permute.xlu0 %1231
  %1233 = vrot.lane.b32.xlu0 %v1224, 17
  %v1234 = vpop.permute.xlu0 %1233
  %1235 = vrot.lane.b32.xlu0 %v1225, 17
  %v1236 = vpop.permute.xlu0 %1235
  %1237 = vrot.lane.b32.xlu0 %v1226, 17
  %v1238 = vpop.permute.xlu0 %1237
  %vm1239 = vcmask 138240
  %v1240 = vsel %vm1239, %v1232, %v1234
  %v1241 = vsel %vm1239, %v1234, %v1236
  %v1242 = vsel %vm1239, %v1236, %v1238
  %v1248 = vmul.f32 %v762, %v1232
  %v1249 = vmul.f32 %v763, %v1240
  %v1250 = vmul.f32 %v764, %v1241
  %v1251 = vmul.f32 %v765, %v1242
  %v1252 = vmul.f32 %v766, %v1238
  %v1253 = vpack.c.bf16 %v1248, %v1248
  %v1254 = vpack.c.bf16 %v1249, %v1249
  %v1255 = vpack.c.bf16 %v1250, %v1250
  %v1256 = vpack.c.bf16 %v1251, %v1251
  %v1257 = vpack.c.bf16 %v1252, %v1252
  %s1258 = scalar_lea.vmem %s1, 32
  %v1259 = vld [vmem:[%s1258] sm:$0xf]
  %1265 = vrot.lane.b32.xlu0 %v1253, 111
  %v1266 = vpop.permute.xlu0 %1265
  %1267 = vrot.lane.b32.xlu0 %v1254, 111
  %v1268 = vpop.permute.xlu0 %1267
  %1269 = vrot.lane.b32.xlu0 %v1255, 111
  %v1270 = vpop.permute.xlu0 %1269
  %1271 = vrot.lane.b32.xlu0 %v1256, 111
  %v1272 = vpop.permute.xlu0 %1271
  %1273 = vrot.lane.b32.xlu0 %v1257, 111
  %v1274 = vpop.permute.xlu0 %1273
  %vm1275 = vcmask 908288
  %v1276 = vsel %vm1275, %v1266, %v1268
  %v1277 = vsel %vm1275, %v1268, %v1270
  %v1278 = vsel %vm1275, %v1270, %v1272
  %v1279 = vsel %vm1275, %v1272, %v1274
  %v1281 = vsel %vm186, %v1259, 0
  %v1284 = vsel %vm190, %v1276, 0
  %v1287 = vsel %vm190, %v1277, 0
  %v1290 = vsel %vm190, %v1278, 0
  %v1293 = vsel %vm190, %v1279, 0
  %1295 = vmatpush.bf16.msra.mxu0 0
  %1296 = vmatpush.bf16.msra.mxu0 0
  %1297 = vmatpush.bf16.msra.mxu0 0
  %1298 = vmatpush.bf16.msra.mxu0 0
  %1299 = vmatpush.bf16.msra.mxu0 0
  %1300 = vmatpush.bf16.msra.mxu0 0
  %1301 = vmatpush.bf16.msra.mxu0 0
  %1302 = vmatpush.bf16.msra.mxu0 %v1284
  %1303 = vmatmul.bf16.gmra.mxu0 %v1281
  %v1304 = vpop.f32.mrf.mxu0
  %v1305 = vadd.f32 0.0, %v1304
  %v1306 = vpop.f32.mrf.mxu0
  %1307 = vdwg.mxu0
  %1308 = vmatpush.bf16.msra.mxu0 0
  %1309 = vmatpush.bf16.msra.mxu0 0
  %1310 = vmatpush.bf16.msra.mxu0 0
  %1311 = vmatpush.bf16.msra.mxu0 0
  %1312 = vmatpush.bf16.msra.mxu0 0
  %1313 = vmatpush.bf16.msra.mxu0 0
  %1314 = vmatpush.bf16.msra.mxu0 0
  %1315 = vmatpush.bf16.msra.mxu0 %v1287
  %1316 = vmatmul.bf16.gmra.mxu0 %v1281
  %v1317 = vpop.f32.mrf.mxu0
  %v1318 = vadd.f32 0.0, %v1317
  %v1319 = vpop.f32.mrf.mxu0
  %1320 = vdwg.mxu0
  %1321 = vmatpush.bf16.msra.mxu0 0
  %1322 = vmatpush.bf16.msra.mxu0 0
  %1323 = vmatpush.bf16.msra.mxu0 0
  %1324 = vmatpush.bf16.msra.mxu0 0
  %1325 = vmatpush.bf16.msra.mxu0 0
  %1326 = vmatpush.bf16.msra.mxu0 0
  %1327 = vmatpush.bf16.msra.mxu0 0
  %1328 = vmatpush.bf16.msra.mxu0 %v1290
  %1329 = vmatmul.bf16.gmra.mxu0 %v1281
  %v1330 = vpop.f32.mrf.mxu0
  %v1331 = vadd.f32 0.0, %v1330
  %v1332 = vpop.f32.mrf.mxu0
  %1333 = vdwg.mxu0
  %1334 = vmatpush.bf16.msra.mxu0 0
  %1335 = vmatpush.bf16.msra.mxu0 0
  %1336 = vmatpush.bf16.msra.mxu0 0
  %1337 = vmatpush.bf16.msra.mxu0 0
  %1338 = vmatpush.bf16.msra.mxu0 0
  %1339 = vmatpush.bf16.msra.mxu0 0
  %1340 = vmatpush.bf16.msra.mxu0 0
  %1341 = vmatpush.bf16.msra.mxu0 %v1293
  %1342 = vmatmul.bf16.gmra.mxu0 %v1281
  %v1343 = vpop.f32.mrf.mxu0
  %v1344 = vadd.f32 0.0, %v1343
  %v1345 = vpop.f32.mrf.mxu0
  %1346 = vdwg.mxu0
  %v1347 = vadd.f32 %v1191, %v1305
  %v1348 = vadd.f32 %v1192, %v1318
  %v1349 = vadd.f32 %v1193, %v1331
  %v1350 = vadd.f32 %v1194, %v1344
  %v1351 = vld [vmem:[%s3] sm:$0xff]
  %1353 = vset.pattern.permute.xlu0 0
  %1354 = vperm.xlu0 %1353, %v1351
  %v1355 = vpop.permute.xlu0 %1354
  %v1357 = vadd.f32 %v1347, %v1355
  %v1358 = vadd.f32 %v1348, %v1355
  %v1359 = vadd.f32 %v1349, %v1355
  %v1360 = vadd.f32 %v1350, %v1355
  %v1361 = vmax.f32 %v1357, 0.0
  %v1362 = vmax.f32 %v1358, 0.0
  %v1363 = vmax.f32 %v1359, 0.0
  %v1364 = vmax.f32 %v1360, 0.0
  %v1365 = vpack.c.bf16 %v1362, %v1361
  %v1366 = vpack.c.bf16 %v1364, %v1363
  %1367 = vst [vmem:[#allocation2 + $0x4] sm:$0xff] %v1365
  %1368 = vst [vmem:[#allocation2 + $0xc] sm:$0xff] %v1366
  %v1369 = vld [vmem:[#allocation2] sm:$0xff]
  %v1370 = vld [vmem:[#allocation2 + $0x8] sm:$0xff]
  %v1371 = vld [vmem:[#allocation2 + $0x10] sm:$0xf]
  %v1372 = vld [vmem:[%s5] sm:$0x11]
  %v1373 = vld [vmem:[%s5 + $0x8] sm:$0x11]
  %v1376 = vunpack.c.l.b16 %v1372
  %v1377 = vunpack.c.h.b16 %v1372
  %v1378 = vunpack.c.l.b16 %v1373
  %v1379 = vunpack.c.h.b16 %v1373
  %v1380 = vpack.c.b16 %v1376, %v1376
  %v1381 = vpack.c.b16 %v1377, %v1377
  %v1382 = vpack.c.b16 %v1378, %v1378
  %v1383 = vpack.c.b16 %v1379, %v1379
  %v1385 = vpack.i.b16 %v1380, %v1380
  %v1387 = vperm.slane %v1385, 0
  %v1389 = vpack.i.b16 %v1381, %v1381
  %v1391 = vperm.slane %v1389, 0
  %v1393 = vpack.i.b16 %v1382, %v1382
  %v1395 = vperm.slane %v1393, 0
  %v1397 = vpack.i.b16 %v1383, %v1383
  %v1399 = vperm.slane %v1397, 0
  %v1400 = vunpack.c.l.bf16 %v1369
  %v1401 = vunpack.c.h.bf16 %v1369
  %v1402 = vunpack.c.l.bf16 %v1370
  %v1403 = vunpack.c.h.bf16 %v1370
  %v1404 = vunpack.c.l.bf16 %v1371
  %v1405 = vunpack.c.l.bf16 %v1387
  %v1406 = vunpack.c.l.bf16 %v1391
  %v1407 = vunpack.c.l.bf16 %v1395
  %v1408 = vunpack.c.l.bf16 %v1399
  %1413 = vrot.lane.b32.xlu0 %v1405, 111
  %v1414 = vpop.permute.xlu0 %1413
  %1415 = vrot.lane.b32.xlu0 %v1406, 111
  %v1416 = vpop.permute.xlu0 %1415
  %1417 = vrot.lane.b32.xlu0 %v1407, 111
  %v1418 = vpop.permute.xlu0 %1417
  %1419 = vrot.lane.b32.xlu0 %v1408, 111
  %v1420 = vpop.permute.xlu0 %1419
  %v1421 = vsel %vm93, %v1414, %v1416
  %v1422 = vsel %vm93, %v1416, %v1418
  %v1423 = vsel %vm93, %v1418, %v1420
  %v1429 = vmul.f32 %v1400, %v1414
  %v1430 = vmul.f32 %v1401, %v1421
  %v1431 = vmul.f32 %v1402, %v1422
  %v1432 = vmul.f32 %v1403, %v1423
  %v1433 = vmul.f32 %v1404, %v1420
  %v1434 = vpack.c.bf16 %v1429, %v1429
  %v1435 = vpack.c.bf16 %v1430, %v1430
  %v1436 = vpack.c.bf16 %v1431, %v1431
  %v1437 = vpack.c.bf16 %v1432, %v1432
  %v1438 = vpack.c.bf16 %v1433, %v1433
  %v1439 = vld [vmem:[%s2] sm:$0xf]
  %v1440 = vshrl.u32 %v1380, 16
  %v1441 = vpack.i.b16 %v1440, %v1440
  %v1443 = vperm.slane %v1441, 0
  %v1444 = vshrl.u32 %v1381, 16
  %v1445 = vpack.i.b16 %v1444, %v1444
  %v1447 = vperm.slane %v1445, 0
  %v1448 = vshrl.u32 %v1382, 16
  %v1449 = vpack.i.b16 %v1448, %v1448
  %v1451 = vperm.slane %v1449, 0
  %v1452 = vshrl.u32 %v1383, 16
  %v1453 = vpack.i.b16 %v1452, %v1452
  %v1455 = vperm.slane %v1453, 0
  %v1456 = vunpack.c.l.bf16 %v1443
  %v1457 = vunpack.c.l.bf16 %v1447
  %v1458 = vunpack.c.l.bf16 %v1451
  %v1459 = vunpack.c.l.bf16 %v1455
  %1464 = vrot.lane.b32.xlu0 %v1456, 112
  %v1465 = vpop.permute.xlu0 %1464
  %1466 = vrot.lane.b32.xlu0 %v1457, 112
  %v1467 = vpop.permute.xlu0 %1466
  %1468 = vrot.lane.b32.xlu0 %v1458, 112
  %v1469 = vpop.permute.xlu0 %1468
  %1470 = vrot.lane.b32.xlu0 %v1459, 112
  %v1471 = vpop.permute.xlu0 %1470
  %v1472 = vsel %vm145, %v1465, %v1467
  %v1473 = vsel %vm145, %v1467, %v1469
  %v1474 = vsel %vm145, %v1469, %v1471
  %v1480 = vmul.f32 %v1400, %v1465
  %v1481 = vmul.f32 %v1401, %v1472
  %v1482 = vmul.f32 %v1402, %v1473
  %v1483 = vmul.f32 %v1403, %v1474
  %v1484 = vmul.f32 %v1404, %v1471
  %v1485 = vpack.c.bf16 %v1480, %v1480
  %v1486 = vpack.c.bf16 %v1481, %v1481
  %v1487 = vpack.c.bf16 %v1482, %v1482
  %v1488 = vpack.c.bf16 %v1483, %v1483
  %v1489 = vpack.c.bf16 %v1484, %v1484
  %s1490 = scalar_lea.vmem %s2, 4
  %v1491 = vld [vmem:[%s1490] sm:$0xf]
  %1497 = vrot.lane.b32.xlu0 %v1485, 16
  %v1498 = vpop.permute.xlu0 %1497
  %1499 = vrot.lane.b32.xlu0 %v1486, 16
  %v1500 = vpop.permute.xlu0 %1499
  %1501 = vrot.lane.b32.xlu0 %v1487, 16
  %v1502 = vpop.permute.xlu0 %1501
  %1503 = vrot.lane.b32.xlu0 %v1488, 16
  %v1504 = vpop.permute.xlu0 %1503
  %1505 = vrot.lane.b32.xlu0 %v1489, 16
  %v1506 = vpop.permute.xlu0 %1505
  %v1507 = vsel %vm181, %v1498, %v1500
  %v1508 = vsel %vm181, %v1500, %v1502
  %v1509 = vsel %vm181, %v1502, %v1504
  %v1510 = vsel %vm181, %v1504, %v1506
  %v1512 = vsel %vm186, %v1491, 0
  %v1515 = vsel %vm190, %v1507, 0
  %v1518 = vsel %vm190, %v1508, 0
  %v1521 = vsel %vm190, %v1509, 0
  %v1524 = vsel %vm190, %v1510, 0
  %1526 = vmatpush.bf16.msra.mxu0 0
  %1527 = vmatpush.bf16.msra.mxu0 0
  %1528 = vmatpush.bf16.msra.mxu0 0
  %1529 = vmatpush.bf16.msra.mxu0 0
  %1530 = vmatpush.bf16.msra.mxu0 0
  %1531 = vmatpush.bf16.msra.mxu0 0
  %1532 = vmatpush.bf16.msra.mxu0 0
  %1533 = vmatpush.bf16.msra.mxu0 %v1515
  %1534 = vmatmul.bf16.gmra.mxu0 %v1512
  %v1535 = vpop.f32.mrf.mxu0
  %v1536 = vadd.f32 0.0, %v1535
  %v1537 = vpop.f32.mrf.mxu0
  %1538 = vdwg.mxu0
  %1539 = vmatpush.bf16.msra.mxu0 0
  %1540 = vmatpush.bf16.msra.mxu0 0
  %1541 = vmatpush.bf16.msra.mxu0 0
  %1542 = vmatpush.bf16.msra.mxu0 0
  %1543 = vmatpush.bf16.msra.mxu0 0
  %1544 = vmatpush.bf16.msra.mxu0 0
  %1545 = vmatpush.bf16.msra.mxu0 0
  %1546 = vmatpush.bf16.msra.mxu0 %v1518
  %1547 = vmatmul.bf16.gmra.mxu0 %v1512
  %v1548 = vpop.f32.mrf.mxu0
  %v1549 = vadd.f32 0.0, %v1548
  %v1550 = vpop.f32.mrf.mxu0
  %1551 = vdwg.mxu0
  %1552 = vmatpush.bf16.msra.mxu0 0
  %1553 = vmatpush.bf16.msra.mxu0 0
  %1554 = vmatpush.bf16.msra.mxu0 0
  %1555 = vmatpush.bf16.msra.mxu0 0
  %1556 = vmatpush.bf16.msra.mxu0 0
  %1557 = vmatpush.bf16.msra.mxu0 0
  %1558 = vmatpush.bf16.msra.mxu0 0
  %1559 = vmatpush.bf16.msra.mxu0 %v1521
  %1560 = vmatmul.bf16.gmra.mxu0 %v1512
  %v1561 = vpop.f32.mrf.mxu0
  %v1562 = vadd.f32 0.0, %v1561
  %v1563 = vpop.f32.mrf.mxu0
  %1564 = vdwg.mxu0
  %1565 = vmatpush.bf16.msra.mxu0 0
  %1566 = vmatpush.bf16.msra.mxu0 0
  %1567 = vmatpush.bf16.msra.mxu0 0
  %1568 = vmatpush.bf16.msra.mxu0 0
  %1569 = vmatpush.bf16.msra.mxu0 0
  %1570 = vmatpush.bf16.msra.mxu0 0
  %1571 = vmatpush.bf16.msra.mxu0 0
  %1572 = vmatpush.bf16.msra.mxu0 %v1524
  %1573 = vmatmul.bf16.gmra.mxu0 %v1512
  %v1574 = vpop.f32.mrf.mxu0
  %v1575 = vadd.f32 0.0, %v1574
  %v1576 = vpop.f32.mrf.mxu0
  %1577 = vdwg.mxu0
  %1583 = vrot.lane.b32.xlu0 %v1434, 17
  %v1584 = vpop.permute.xlu0 %1583
  %1585 = vrot.lane.b32.xlu0 %v1435, 17
  %v1586 = vpop.permute.xlu0 %1585
  %1587 = vrot.lane.b32.xlu0 %v1436, 17
  %v1588 = vpop.permute.xlu0 %1587
  %1589 = vrot.lane.b32.xlu0 %v1437, 17
  %v1590 = vpop.permute.xlu0 %1589
  %1591 = vrot.lane.b32.xlu0 %v1438, 17
  %v1592 = vpop.permute.xlu0 %1591
  %v1593 = vsel %vm270, %v1584, %v1586
  %v1594 = vsel %vm270, %v1586, %v1588
  %v1595 = vsel %vm270, %v1588, %v1590
  %v1596 = vsel %vm270, %v1590, %v1592
  %v1598 = vsel %vm186, %v1439, 0
  %v1601 = vsel %vm190, %v1593, 0
  %v1604 = vsel %vm190, %v1594, 0
  %v1607 = vsel %vm190, %v1595, 0
  %v1610 = vsel %vm190, %v1596, 0
  %1612 = vmatpush.bf16.msra.mxu0 0
  %1613 = vmatpush.bf16.msra.mxu0 0
  %1614 = vmatpush.bf16.msra.mxu0 0
  %1615 = vmatpush.bf16.msra.mxu0 0
  %1616 = vmatpush.bf16.msra.mxu0 0
  %1617 = vmatpush.bf16.msra.mxu0 0
  %1618 = vmatpush.bf16.msra.mxu0 0
  %1619 = vmatpush.bf16.msra.mxu0 %v1601
  %1620 = vmatmul.bf16.gmra.mxu0 %v1598
  %v1621 = vpop.f32.mrf.mxu0
  %v1622 = vadd.f32 %v1536, %v1621
  %v1623 = vpop.f32.mrf.mxu0
  %1624 = vdwg.mxu0
  %1625 = vmatpush.bf16.msra.mxu0 0
  %1626 = vmatpush.bf16.msra.mxu0 0
  %1627 = vmatpush.bf16.msra.mxu0 0
  %1628 = vmatpush.bf16.msra.mxu0 0
  %1629 = vmatpush.bf16.msra.mxu0 0
  %1630 = vmatpush.bf16.msra.mxu0 0
  %1631 = vmatpush.bf16.msra.mxu0 0
  %1632 = vmatpush.bf16.msra.mxu0 %v1604
  %1633 = vmatmul.bf16.gmra.mxu0 %v1598
  %v1634 = vpop.f32.mrf.mxu0
  %v1635 = vadd.f32 %v1549, %v1634
  %v1636 = vpop.f32.mrf.mxu0
  %1637 = vdwg.mxu0
  %1638 = vmatpush.bf16.msra.mxu0 0
  %1639 = vmatpush.bf16.msra.mxu0 0
  %1640 = vmatpush.bf16.msra.mxu0 0
  %1641 = vmatpush.bf16.msra.mxu0 0
  %1642 = vmatpush.bf16.msra.mxu0 0
  %1643 = vmatpush.bf16.msra.mxu0 0
  %1644 = vmatpush.bf16.msra.mxu0 0
  %1645 = vmatpush.bf16.msra.mxu0 %v1607
  %1646 = vmatmul.bf16.gmra.mxu0 %v1598
  %v1647 = vpop.f32.mrf.mxu0
  %v1648 = vadd.f32 %v1562, %v1647
  %v1649 = vpop.f32.mrf.mxu0
  %1650 = vdwg.mxu0
  %1651 = vmatpush.bf16.msra.mxu0 0
  %1652 = vmatpush.bf16.msra.mxu0 0
  %1653 = vmatpush.bf16.msra.mxu0 0
  %1654 = vmatpush.bf16.msra.mxu0 0
  %1655 = vmatpush.bf16.msra.mxu0 0
  %1656 = vmatpush.bf16.msra.mxu0 0
  %1657 = vmatpush.bf16.msra.mxu0 0
  %1658 = vmatpush.bf16.msra.mxu0 %v1610
  %1659 = vmatmul.bf16.gmra.mxu0 %v1598
  %v1660 = vpop.f32.mrf.mxu0
  %v1661 = vadd.f32 %v1575, %v1660
  %v1662 = vpop.f32.mrf.mxu0
  %1663 = vdwg.mxu0
  %v1664 = vld [vmem:[%s5] sm:$0x22]
  %v1665 = vld [vmem:[%s5 + $0x8] sm:$0x22]
  %v1668 = vunpack.c.l.b16 %v1664
  %v1669 = vunpack.c.h.b16 %v1664
  %v1670 = vunpack.c.l.b16 %v1665
  %v1671 = vunpack.c.h.b16 %v1665
  %v1672 = vpack.c.b16 %v1668, %v1668
  %v1673 = vpack.c.b16 %v1669, %v1669
  %v1674 = vpack.c.b16 %v1670, %v1670
  %v1675 = vpack.c.b16 %v1671, %v1671
  %v1677 = vpack.i.b16 %v1672, %v1672
  %v1679 = vperm.slane %v1677, 1
  %v1681 = vpack.i.b16 %v1673, %v1673
  %v1683 = vperm.slane %v1681, 1
  %v1685 = vpack.i.b16 %v1674, %v1674
  %v1687 = vperm.slane %v1685, 1
  %v1689 = vpack.i.b16 %v1675, %v1675
  %v1691 = vperm.slane %v1689, 1
  %v1692 = vunpack.c.l.bf16 %v1679
  %v1693 = vunpack.c.l.bf16 %v1683
  %v1694 = vunpack.c.l.bf16 %v1687
  %v1695 = vunpack.c.l.bf16 %v1691
  %1700 = vrot.lane.b32.xlu0 %v1692, 113
  %v1701 = vpop.permute.xlu0 %1700
  %1702 = vrot.lane.b32.xlu0 %v1693, 113
  %v1703 = vpop.permute.xlu0 %1702
  %1704 = vrot.lane.b32.xlu0 %v1694, 113
  %v1705 = vpop.permute.xlu0 %1704
  %1706 = vrot.lane.b32.xlu0 %v1695, 113
  %v1707 = vpop.permute.xlu0 %1706
  %v1708 = vsel %vm386, %v1701, %v1703
  %v1709 = vsel %vm386, %v1703, %v1705
  %v1710 = vsel %vm386, %v1705, %v1707
  %v1716 = vmul.f32 %v1400, %v1701
  %v1717 = vmul.f32 %v1401, %v1708
  %v1718 = vmul.f32 %v1402, %v1709
  %v1719 = vmul.f32 %v1403, %v1710
  %v1720 = vmul.f32 %v1404, %v1707
  %v1721 = vpack.c.bf16 %v1716, %v1716
  %v1722 = vpack.c.bf16 %v1717, %v1717
  %v1723 = vpack.c.bf16 %v1718, %v1718
  %v1724 = vpack.c.bf16 %v1719, %v1719
  %v1725 = vpack.c.bf16 %v1720, %v1720
  %s1726 = scalar_lea.vmem %s2, 8
  %v1727 = vld [vmem:[%s1726] sm:$0xf]
  %1733 = vrot.lane.b32.xlu0 %v1721, 15
  %v1734 = vpop.permute.xlu0 %1733
  %1735 = vrot.lane.b32.xlu0 %v1722, 15
  %v1736 = vpop.permute.xlu0 %1735
  %1737 = vrot.lane.b32.xlu0 %v1723, 15
  %v1738 = vpop.permute.xlu0 %1737
  %1739 = vrot.lane.b32.xlu0 %v1724, 15
  %v1740 = vpop.permute.xlu0 %1739
  %1741 = vrot.lane.b32.xlu0 %v1725, 15
  %v1742 = vpop.permute.xlu0 %1741
  %v1743 = vsel %vm422, %v1734, %v1736
  %v1744 = vsel %vm422, %v1736, %v1738
  %v1745 = vsel %vm422, %v1738, %v1740
  %v1746 = vsel %vm422, %v1740, %v1742
  %v1748 = vsel %vm186, %v1727, 0
  %v1751 = vsel %vm190, %v1743, 0
  %v1754 = vsel %vm190, %v1744, 0
  %v1757 = vsel %vm190, %v1745, 0
  %v1760 = vsel %vm190, %v1746, 0
  %1762 = vmatpush.bf16.msra.mxu0 0
  %1763 = vmatpush.bf16.msra.mxu0 0
  %1764 = vmatpush.bf16.msra.mxu0 0
  %1765 = vmatpush.bf16.msra.mxu0 0
  %1766 = vmatpush.bf16.msra.mxu0 0
  %1767 = vmatpush.bf16.msra.mxu0 0
  %1768 = vmatpush.bf16.msra.mxu0 0
  %1769 = vmatpush.bf16.msra.mxu0 %v1751
  %1770 = vmatmul.bf16.gmra.mxu0 %v1748
  %v1771 = vpop.f32.mrf.mxu0
  %v1772 = vadd.f32 0.0, %v1771
  %v1773 = vpop.f32.mrf.mxu0
  %1774 = vdwg.mxu0
  %1775 = vmatpush.bf16.msra.mxu0 0
  %1776 = vmatpush.bf16.msra.mxu0 0
  %1777 = vmatpush.bf16.msra.mxu0 0
  %1778 = vmatpush.bf16.msra.mxu0 0
  %1779 = vmatpush.bf16.msra.mxu0 0
  %1780 = vmatpush.bf16.msra.mxu0 0
  %1781 = vmatpush.bf16.msra.mxu0 0
  %1782 = vmatpush.bf16.msra.mxu0 %v1754
  %1783 = vmatmul.bf16.gmra.mxu0 %v1748
  %v1784 = vpop.f32.mrf.mxu0
  %v1785 = vadd.f32 0.0, %v1784
  %v1786 = vpop.f32.mrf.mxu0
  %1787 = vdwg.mxu0
  %1788 = vmatpush.bf16.msra.mxu0 0
  %1789 = vmatpush.bf16.msra.mxu0 0
  %1790 = vmatpush.bf16.msra.mxu0 0
  %1791 = vmatpush.bf16.msra.mxu0 0
  %1792 = vmatpush.bf16.msra.mxu0 0
  %1793 = vmatpush.bf16.msra.mxu0 0
  %1794 = vmatpush.bf16.msra.mxu0 0
  %1795 = vmatpush.bf16.msra.mxu0 %v1757
  %1796 = vmatmul.bf16.gmra.mxu0 %v1748
  %v1797 = vpop.f32.mrf.mxu0
  %v1798 = vadd.f32 0.0, %v1797
  %v1799 = vpop.f32.mrf.mxu0
  %1800 = vdwg.mxu0
  %1801 = vmatpush.bf16.msra.mxu0 0
  %1802 = vmatpush.bf16.msra.mxu0 0
  %1803 = vmatpush.bf16.msra.mxu0 0
  %1804 = vmatpush.bf16.msra.mxu0 0
  %1805 = vmatpush.bf16.msra.mxu0 0
  %1806 = vmatpush.bf16.msra.mxu0 0
  %1807 = vmatpush.bf16.msra.mxu0 0
  %1808 = vmatpush.bf16.msra.mxu0 %v1760
  %1809 = vmatmul.bf16.gmra.mxu0 %v1748
  %v1810 = vpop.f32.mrf.mxu0
  %v1811 = vadd.f32 0.0, %v1810
  %v1812 = vpop.f32.mrf.mxu0
  %1813 = vdwg.mxu0
  %v1814 = vadd.f32 %v1622, %v1772
  %v1815 = vadd.f32 %v1635, %v1785
  %v1816 = vadd.f32 %v1648, %v1798
  %v1817 = vadd.f32 %v1661, %v1811
  %v1818 = vshrl.u32 %v1672, 16
  %v1819 = vpack.i.b16 %v1818, %v1818
  %v1821 = vperm.slane %v1819, 1
  %v1822 = vshrl.u32 %v1673, 16
  %v1823 = vpack.i.b16 %v1822, %v1822
  %v1825 = vperm.slane %v1823, 1
  %v1826 = vshrl.u32 %v1674, 16
  %v1827 = vpack.i.b16 %v1826, %v1826
  %v1829 = vperm.slane %v1827, 1
  %v1830 = vshrl.u32 %v1675, 16
  %v1831 = vpack.i.b16 %v1830, %v1830
  %v1833 = vperm.slane %v1831, 1
  %v1834 = vunpack.c.l.bf16 %v1821
  %v1835 = vunpack.c.l.bf16 %v1825
  %v1836 = vunpack.c.l.bf16 %v1829
  %v1837 = vunpack.c.l.bf16 %v1833
  %1842 = vrot.lane.b32.xlu0 %v1834, 127
  %v1843 = vpop.permute.xlu0 %1842
  %1844 = vrot.lane.b32.xlu0 %v1835, 127
  %v1845 = vpop.permute.xlu0 %1844
  %1846 = vrot.lane.b32.xlu0 %v1836, 127
  %v1847 = vpop.permute.xlu0 %1846
  %1848 = vrot.lane.b32.xlu0 %v1837, 127
  %v1849 = vpop.permute.xlu0 %1848
  %v1850 = vsel %vm530, %v1843, %v1845
  %v1851 = vsel %vm530, %v1845, %v1847
  %v1852 = vsel %vm530, %v1847, %v1849
  %v1858 = vmul.f32 %v1400, %v1843
  %v1859 = vmul.f32 %v1401, %v1850
  %v1860 = vmul.f32 %v1402, %v1851
  %v1861 = vmul.f32 %v1403, %v1852
  %v1862 = vmul.f32 %v1404, %v1849
  %v1863 = vpack.c.bf16 %v1858, %v1858
  %v1864 = vpack.c.bf16 %v1859, %v1859
  %v1865 = vpack.c.bf16 %v1860, %v1860
  %v1866 = vpack.c.bf16 %v1861, %v1861
  %v1867 = vpack.c.bf16 %v1862, %v1862
  %s1868 = scalar_lea.vmem %s2, 12
  %v1869 = vld [vmem:[%s1868] sm:$0xf]
  %1875 = vrot.lane.b32.xlu0 %v1863, 1
  %v1876 = vpop.permute.xlu0 %1875
  %1877 = vrot.lane.b32.xlu0 %v1864, 1
  %v1878 = vpop.permute.xlu0 %1877
  %1879 = vrot.lane.b32.xlu0 %v1865, 1
  %v1880 = vpop.permute.xlu0 %1879
  %1881 = vrot.lane.b32.xlu0 %v1866, 1
  %v1882 = vpop.permute.xlu0 %1881
  %1883 = vrot.lane.b32.xlu0 %v1867, 1
  %v1884 = vpop.permute.xlu0 %1883
  %v1885 = vsel %vm566, %v1876, %v1878
  %v1886 = vsel %vm566, %v1878, %v1880
  %v1887 = vsel %vm566, %v1880, %v1882
  %v1888 = vsel %vm566, %v1882, %v1884
  %v1890 = vsel %vm186, %v1869, 0
  %v1893 = vsel %vm190, %v1885, 0
  %v1896 = vsel %vm190, %v1886, 0
  %v1899 = vsel %vm190, %v1887, 0
  %v1902 = vsel %vm190, %v1888, 0
  %1904 = vmatpush.bf16.msra.mxu0 0
  %1905 = vmatpush.bf16.msra.mxu0 0
  %1906 = vmatpush.bf16.msra.mxu0 0
  %1907 = vmatpush.bf16.msra.mxu0 0
  %1908 = vmatpush.bf16.msra.mxu0 0
  %1909 = vmatpush.bf16.msra.mxu0 0
  %1910 = vmatpush.bf16.msra.mxu0 0
  %1911 = vmatpush.bf16.msra.mxu0 %v1893
  %1912 = vmatmul.bf16.gmra.mxu0 %v1890
  %v1913 = vpop.f32.mrf.mxu0
  %v1914 = vadd.f32 0.0, %v1913
  %v1915 = vpop.f32.mrf.mxu0
  %1916 = vdwg.mxu0
  %1917 = vmatpush.bf16.msra.mxu0 0
  %1918 = vmatpush.bf16.msra.mxu0 0
  %1919 = vmatpush.bf16.msra.mxu0 0
  %1920 = vmatpush.bf16.msra.mxu0 0
  %1921 = vmatpush.bf16.msra.mxu0 0
  %1922 = vmatpush.bf16.msra.mxu0 0
  %1923 = vmatpush.bf16.msra.mxu0 0
  %1924 = vmatpush.bf16.msra.mxu0 %v1896
  %1925 = vmatmul.bf16.gmra.mxu0 %v1890
  %v1926 = vpop.f32.mrf.mxu0
  %v1927 = vadd.f32 0.0, %v1926
  %v1928 = vpop.f32.mrf.mxu0
  %1929 = vdwg.mxu0
  %1930 = vmatpush.bf16.msra.mxu0 0
  %1931 = vmatpush.bf16.msra.mxu0 0
  %1932 = vmatpush.bf16.msra.mxu0 0
  %1933 = vmatpush.bf16.msra.mxu0 0
  %1934 = vmatpush.bf16.msra.mxu0 0
  %1935 = vmatpush.bf16.msra.mxu0 0
  %1936 = vmatpush.bf16.msra.mxu0 0
  %1937 = vmatpush.bf16.msra.mxu0 %v1899
  %1938 = vmatmul.bf16.gmra.mxu0 %v1890
  %v1939 = vpop.f32.mrf.mxu0
  %v1940 = vadd.f32 0.0, %v1939
  %v1941 = vpop.f32.mrf.mxu0
  %1942 = vdwg.mxu0
  %1943 = vmatpush.bf16.msra.mxu0 0
  %1944 = vmatpush.bf16.msra.mxu0 0
  %1945 = vmatpush.bf16.msra.mxu0 0
  %1946 = vmatpush.bf16.msra.mxu0 0
  %1947 = vmatpush.bf16.msra.mxu0 0
  %1948 = vmatpush.bf16.msra.mxu0 0
  %1949 = vmatpush.bf16.msra.mxu0 0
  %1950 = vmatpush.bf16.msra.mxu0 %v1902
  %1951 = vmatmul.bf16.gmra.mxu0 %v1890
  %v1952 = vpop.f32.mrf.mxu0
  %v1953 = vadd.f32 0.0, %v1952
  %v1954 = vpop.f32.mrf.mxu0
  %1955 = vdwg.mxu0
  %v1956 = vadd.f32 %v1814, %v1914
  %v1957 = vadd.f32 %v1815, %v1927
  %v1958 = vadd.f32 %v1816, %v1940
  %v1959 = vadd.f32 %v1817, %v1953
  %v1960 = vld [vmem:[#allocation2 + $0x4] sm:$0xff]
  %v1961 = vld [vmem:[#allocation2 + $0xc] sm:$0xff]
  %s1962 = scalar_lea.vmem %s2, 16
  %v1963 = vld [vmem:[%s1962] sm:$0xf]
  %v1966 = vunpack.c.l.b16 %v1960
  %v1967 = vunpack.c.h.b16 %v1960
  %v1968 = vunpack.c.l.b16 %v1961
  %v1969 = vunpack.c.h.b16 %v1961
  %v1970 = vpack.c.b16 %v1966, %v1966
  %v1971 = vpack.c.b16 %v1967, %v1967
  %v1972 = vpack.c.b16 %v1968, %v1968
  %v1973 = vpack.c.b16 %v1969, %v1969
  %v1975 = vsel %vm186, %v1963, 0
  %v1978 = vsel %vm190, %v1970, 0
  %v1981 = vsel %vm190, %v1971, 0
  %v1984 = vsel %vm190, %v1972, 0
  %v1987 = vsel %vm190, %v1973, 0
  %1989 = vmatpush.bf16.msra.mxu0 0
  %1990 = vmatpush.bf16.msra.mxu0 0
  %1991 = vmatpush.bf16.msra.mxu0 0
  %1992 = vmatpush.bf16.msra.mxu0 0
  %1993 = vmatpush.bf16.msra.mxu0 0
  %1994 = vmatpush.bf16.msra.mxu0 0
  %1995 = vmatpush.bf16.msra.mxu0 0
  %1996 = vmatpush.bf16.msra.mxu0 %v1978
  %1997 = vmatmul.bf16.gmra.mxu0 %v1975
  %v1998 = vpop.f32.mrf.mxu0
  %v1999 = vadd.f32 0.0, %v1998
  %v2000 = vpop.f32.mrf.mxu0
  %2001 = vdwg.mxu0
  %2002 = vmatpush.bf16.msra.mxu0 0
  %2003 = vmatpush.bf16.msra.mxu0 0
  %2004 = vmatpush.bf16.msra.mxu0 0
  %2005 = vmatpush.bf16.msra.mxu0 0
  %2006 = vmatpush.bf16.msra.mxu0 0
  %2007 = vmatpush.bf16.msra.mxu0 0
  %2008 = vmatpush.bf16.msra.mxu0 0
  %2009 = vmatpush.bf16.msra.mxu0 %v1981
  %2010 = vmatmul.bf16.gmra.mxu0 %v1975
  %v2011 = vpop.f32.mrf.mxu0
  %v2012 = vadd.f32 0.0, %v2011
  %v2013 = vpop.f32.mrf.mxu0
  %2014 = vdwg.mxu0
  %2015 = vmatpush.bf16.msra.mxu0 0
  %2016 = vmatpush.bf16.msra.mxu0 0
  %2017 = vmatpush.bf16.msra.mxu0 0
  %2018 = vmatpush.bf16.msra.mxu0 0
  %2019 = vmatpush.bf16.msra.mxu0 0
  %2020 = vmatpush.bf16.msra.mxu0 0
  %2021 = vmatpush.bf16.msra.mxu0 0
  %2022 = vmatpush.bf16.msra.mxu0 %v1984
  %2023 = vmatmul.bf16.gmra.mxu0 %v1975
  %v2024 = vpop.f32.mrf.mxu0
  %v2025 = vadd.f32 0.0, %v2024
  %v2026 = vpop.f32.mrf.mxu0
  %2027 = vdwg.mxu0
  %2028 = vmatpush.bf16.msra.mxu0 0
  %2029 = vmatpush.bf16.msra.mxu0 0
  %2030 = vmatpush.bf16.msra.mxu0 0
  %2031 = vmatpush.bf16.msra.mxu0 0
  %2032 = vmatpush.bf16.msra.mxu0 0
  %2033 = vmatpush.bf16.msra.mxu0 0
  %2034 = vmatpush.bf16.msra.mxu0 0
  %2035 = vmatpush.bf16.msra.mxu0 %v1987
  %2036 = vmatmul.bf16.gmra.mxu0 %v1975
  %v2037 = vpop.f32.mrf.mxu0
  %v2038 = vadd.f32 0.0, %v2037
  %v2039 = vpop.f32.mrf.mxu0
  %2040 = vdwg.mxu0
  %v2041 = vadd.f32 %v1956, %v1999
  %v2042 = vadd.f32 %v1957, %v2012
  %v2043 = vadd.f32 %v1958, %v2025
  %v2044 = vadd.f32 %v1959, %v2038
  %v2045 = vld [vmem:[#allocation2 + $0x4] sm:$0xff]
  %v2046 = vld [vmem:[#allocation2 + $0xc] sm:$0xff]
  %v2047 = vld [vmem:[#allocation2 + $0x14] sm:$0xf]
  %v2048 = vld [vmem:[%s5] sm:$0x44]
  %v2049 = vld [vmem:[%s5 + $0x8] sm:$0x44]
  %v2052 = vunpack.c.l.b16 %v2048
  %v2053 = vunpack.c.h.b16 %v2048
  %v2054 = vunpack.c.l.b16 %v2049
  %v2055 = vunpack.c.h.b16 %v2049
  %v2056 = vpack.c.b16 %v2052, %v2052
  %v2057 = vpack.c.b16 %v2053, %v2053
  %v2058 = vpack.c.b16 %v2054, %v2054
  %v2059 = vpack.c.b16 %v2055, %v2055
  %v2061 = vshrl.u32 %v2056, 16
  %v2062 = vpack.i.b16 %v2061, %v2061
  %v2064 = vperm.slane %v2062, 2
  %v2066 = vshrl.u32 %v2057, 16
  %v2067 = vpack.i.b16 %v2066, %v2066
  %v2069 = vperm.slane %v2067, 2
  %v2071 = vshrl.u32 %v2058, 16
  %v2072 = vpack.i.b16 %v2071, %v2071
  %v2074 = vperm.slane %v2072, 2
  %v2076 = vshrl.u32 %v2059, 16
  %v2077 = vpack.i.b16 %v2076, %v2076
  %v2079 = vperm.slane %v2077, 2
  %v2080 = vunpack.c.l.bf16 %v2045
  %v2081 = vunpack.c.h.bf16 %v2045
  %v2082 = vunpack.c.l.bf16 %v2046
  %v2083 = vunpack.c.h.bf16 %v2046
  %v2084 = vunpack.c.l.bf16 %v2047
  %v2085 = vunpack.c.l.bf16 %v2064
  %v2086 = vunpack.c.l.bf16 %v2069
  %v2087 = vunpack.c.l.bf16 %v2074
  %v2088 = vunpack.c.l.bf16 %v2079
  %2093 = vrot.lane.b32.xlu0 %v2085, 1
  %v2094 = vpop.permute.xlu0 %2093
  %2095 = vrot.lane.b32.xlu0 %v2086, 1
  %v2096 = vpop.permute.xlu0 %2095
  %2097 = vrot.lane.b32.xlu0 %v2087, 1
  %v2098 = vpop.permute.xlu0 %2097
  %2099 = vrot.lane.b32.xlu0 %v2088, 1
  %v2100 = vpop.permute.xlu0 %2099
  %v2101 = vsel %vm783, %v2094, %v2096
  %v2102 = vsel %vm783, %v2096, %v2098
  %v2103 = vsel %vm783, %v2098, %v2100
  %v2109 = vmul.f32 %v2080, %v2094
  %v2110 = vmul.f32 %v2081, %v2101
  %v2111 = vmul.f32 %v2082, %v2102
  %v2112 = vmul.f32 %v2083, %v2103
  %v2113 = vmul.f32 %v2084, %v2100
  %v2114 = vpack.c.bf16 %v2109, %v2109
  %v2115 = vpack.c.bf16 %v2110, %v2110
  %v2116 = vpack.c.bf16 %v2111, %v2111
  %v2117 = vpack.c.bf16 %v2112, %v2112
  %v2118 = vpack.c.bf16 %v2113, %v2113
  %s2119 = scalar_lea.vmem %s2, 20
  %v2120 = vld [vmem:[%s2119] sm:$0xf]
  %2126 = vrot.lane.b32.xlu0 %v2114, 127
  %v2127 = vpop.permute.xlu0 %2126
  %2128 = vrot.lane.b32.xlu0 %v2115, 127
  %v2129 = vpop.permute.xlu0 %2128
  %2130 = vrot.lane.b32.xlu0 %v2116, 127
  %v2131 = vpop.permute.xlu0 %2130
  %2132 = vrot.lane.b32.xlu0 %v2117, 127
  %v2133 = vpop.permute.xlu0 %2132
  %2134 = vrot.lane.b32.xlu0 %v2118, 127
  %v2135 = vpop.permute.xlu0 %2134
  %v2136 = vsel %vm819, %v2127, %v2129
  %v2137 = vsel %vm819, %v2129, %v2131
  %v2138 = vsel %vm819, %v2131, %v2133
  %v2139 = vsel %vm819, %v2133, %v2135
  %v2141 = vsel %vm186, %v2120, 0
  %v2144 = vsel %vm190, %v2136, 0
  %v2147 = vsel %vm190, %v2137, 0
  %v2150 = vsel %vm190, %v2138, 0
  %v2153 = vsel %vm190, %v2139, 0
  %2155 = vmatpush.bf16.msra.mxu0 0
  %2156 = vmatpush.bf16.msra.mxu0 0
  %2157 = vmatpush.bf16.msra.mxu0 0
  %2158 = vmatpush.bf16.msra.mxu0 0
  %2159 = vmatpush.bf16.msra.mxu0 0
  %2160 = vmatpush.bf16.msra.mxu0 0
  %2161 = vmatpush.bf16.msra.mxu0 0
  %2162 = vmatpush.bf16.msra.mxu0 %v2144
  %2163 = vmatmul.bf16.gmra.mxu0 %v2141
  %v2164 = vpop.f32.mrf.mxu0
  %v2165 = vadd.f32 0.0, %v2164
  %v2166 = vpop.f32.mrf.mxu0
  %2167 = vdwg.mxu0
  %2168 = vmatpush.bf16.msra.mxu0 0
  %2169 = vmatpush.bf16.msra.mxu0 0
  %2170 = vmatpush.bf16.msra.mxu0 0
  %2171 = vmatpush.bf16.msra.mxu0 0
  %2172 = vmatpush.bf16.msra.mxu0 0
  %2173 = vmatpush.bf16.msra.mxu0 0
  %2174 = vmatpush.bf16.msra.mxu0 0
  %2175 = vmatpush.bf16.msra.mxu0 %v2147
  %2176 = vmatmul.bf16.gmra.mxu0 %v2141
  %v2177 = vpop.f32.mrf.mxu0
  %v2178 = vadd.f32 0.0, %v2177
  %v2179 = vpop.f32.mrf.mxu0
  %2180 = vdwg.mxu0
  %2181 = vmatpush.bf16.msra.mxu0 0
  %2182 = vmatpush.bf16.msra.mxu0 0
  %2183 = vmatpush.bf16.msra.mxu0 0
  %2184 = vmatpush.bf16.msra.mxu0 0
  %2185 = vmatpush.bf16.msra.mxu0 0
  %2186 = vmatpush.bf16.msra.mxu0 0
  %2187 = vmatpush.bf16.msra.mxu0 0
  %2188 = vmatpush.bf16.msra.mxu0 %v2150
  %2189 = vmatmul.bf16.gmra.mxu0 %v2141
  %v2190 = vpop.f32.mrf.mxu0
  %v2191 = vadd.f32 0.0, %v2190
  %v2192 = vpop.f32.mrf.mxu0
  %2193 = vdwg.mxu0
  %2194 = vmatpush.bf16.msra.mxu0 0
  %2195 = vmatpush.bf16.msra.mxu0 0
  %2196 = vmatpush.bf16.msra.mxu0 0
  %2197 = vmatpush.bf16.msra.mxu0 0
  %2198 = vmatpush.bf16.msra.mxu0 0
  %2199 = vmatpush.bf16.msra.mxu0 0
  %2200 = vmatpush.bf16.msra.mxu0 0
  %2201 = vmatpush.bf16.msra.mxu0 %v2153
  %2202 = vmatmul.bf16.gmra.mxu0 %v2141
  %v2203 = vpop.f32.mrf.mxu0
  %v2204 = vadd.f32 0.0, %v2203
  %v2205 = vpop.f32.mrf.mxu0
  %2206 = vdwg.mxu0
  %v2207 = vadd.f32 %v2041, %v2165
  %v2208 = vadd.f32 %v2042, %v2178
  %v2209 = vadd.f32 %v2043, %v2191
  %v2210 = vadd.f32 %v2044, %v2204
  %v2211 = vld [vmem:[%s5] sm:$0x88]
  %v2212 = vld [vmem:[%s5 + $0x8] sm:$0x88]
  %v2215 = vunpack.c.l.b16 %v2211
  %v2216 = vunpack.c.h.b16 %v2211
  %v2217 = vunpack.c.l.b16 %v2212
  %v2218 = vunpack.c.h.b16 %v2212
  %v2219 = vpack.c.b16 %v2215, %v2215
  %v2220 = vpack.c.b16 %v2216, %v2216
  %v2221 = vpack.c.b16 %v2217, %v2217
  %v2222 = vpack.c.b16 %v2218, %v2218
  %v2224 = vpack.i.b16 %v2219, %v2219
  %v2226 = vperm.slane %v2224, 3
  %v2228 = vpack.i.b16 %v2220, %v2220
  %v2230 = vperm.slane %v2228, 3
  %v2232 = vpack.i.b16 %v2221, %v2221
  %v2234 = vperm.slane %v2232, 3
  %v2236 = vpack.i.b16 %v2222, %v2222
  %v2238 = vperm.slane %v2236, 3
  %v2239 = vunpack.c.l.bf16 %v2226
  %v2240 = vunpack.c.l.bf16 %v2230
  %v2241 = vunpack.c.l.bf16 %v2234
  %v2242 = vunpack.c.l.bf16 %v2238
  %2247 = vrot.lane.b32.xlu0 %v2239, 15
  %v2248 = vpop.permute.xlu0 %2247
  %2249 = vrot.lane.b32.xlu0 %v2240, 15
  %v2250 = vpop.permute.xlu0 %2249
  %2251 = vrot.lane.b32.xlu0 %v2241, 15
  %v2252 = vpop.permute.xlu0 %2251
  %2253 = vrot.lane.b32.xlu0 %v2242, 15
  %v2254 = vpop.permute.xlu0 %2253
  %v2255 = vsel %vm939, %v2248, %v2250
  %v2256 = vsel %vm939, %v2250, %v2252
  %v2257 = vsel %vm939, %v2252, %v2254
  %v2263 = vmul.f32 %v2080, %v2248
  %v2264 = vmul.f32 %v2081, %v2255
  %v2265 = vmul.f32 %v2082, %v2256
  %v2266 = vmul.f32 %v2083, %v2257
  %v2267 = vmul.f32 %v2084, %v2254
  %v2268 = vpack.c.bf16 %v2263, %v2263
  %v2269 = vpack.c.bf16 %v2264, %v2264
  %v2270 = vpack.c.bf16 %v2265, %v2265
  %v2271 = vpack.c.bf16 %v2266, %v2266
  %v2272 = vpack.c.bf16 %v2267, %v2267
  %s2273 = scalar_lea.vmem %s2, 24
  %v2274 = vld [vmem:[%s2273] sm:$0xf]
  %2280 = vrot.lane.b32.xlu0 %v2268, 113
  %v2281 = vpop.permute.xlu0 %2280
  %2282 = vrot.lane.b32.xlu0 %v2269, 113
  %v2283 = vpop.permute.xlu0 %2282
  %2284 = vrot.lane.b32.xlu0 %v2270, 113
  %v2285 = vpop.permute.xlu0 %2284
  %2286 = vrot.lane.b32.xlu0 %v2271, 113
  %v2287 = vpop.permute.xlu0 %2286
  %2288 = vrot.lane.b32.xlu0 %v2272, 113
  %v2289 = vpop.permute.xlu0 %2288
  %v2290 = vsel %vm975, %v2281, %v2283
  %v2291 = vsel %vm975, %v2283, %v2285
  %v2292 = vsel %vm975, %v2285, %v2287
  %v2293 = vsel %vm975, %v2287, %v2289
  %v2295 = vsel %vm186, %v2274, 0
  %v2298 = vsel %vm190, %v2290, 0
  %v2301 = vsel %vm190, %v2291, 0
  %v2304 = vsel %vm190, %v2292, 0
  %v2307 = vsel %vm190, %v2293, 0
  %2309 = vmatpush.bf16.msra.mxu0 0
  %2310 = vmatpush.bf16.msra.mxu0 0
  %2311 = vmatpush.bf16.msra.mxu0 0
  %2312 = vmatpush.bf16.msra.mxu0 0
  %2313 = vmatpush.bf16.msra.mxu0 0
  %2314 = vmatpush.bf16.msra.mxu0 0
  %2315 = vmatpush.bf16.msra.mxu0 0
  %2316 = vmatpush.bf16.msra.mxu0 %v2298
  %2317 = vmatmul.bf16.gmra.mxu0 %v2295
  %v2318 = vpop.f32.mrf.mxu0
  %v2319 = vadd.f32 0.0, %v2318
  %v2320 = vpop.f32.mrf.mxu0
  %2321 = vdwg.mxu0
  %2322 = vmatpush.bf16.msra.mxu0 0
  %2323 = vmatpush.bf16.msra.mxu0 0
  %2324 = vmatpush.bf16.msra.mxu0 0
  %2325 = vmatpush.bf16.msra.mxu0 0
  %2326 = vmatpush.bf16.msra.mxu0 0
  %2327 = vmatpush.bf16.msra.mxu0 0
  %2328 = vmatpush.bf16.msra.mxu0 0
  %2329 = vmatpush.bf16.msra.mxu0 %v2301
  %2330 = vmatmul.bf16.gmra.mxu0 %v2295
  %v2331 = vpop.f32.mrf.mxu0
  %v2332 = vadd.f32 0.0, %v2331
  %v2333 = vpop.f32.mrf.mxu0
  %2334 = vdwg.mxu0
  %2335 = vmatpush.bf16.msra.mxu0 0
  %2336 = vmatpush.bf16.msra.mxu0 0
  %2337 = vmatpush.bf16.msra.mxu0 0
  %2338 = vmatpush.bf16.msra.mxu0 0
  %2339 = vmatpush.bf16.msra.mxu0 0
  %2340 = vmatpush.bf16.msra.mxu0 0
  %2341 = vmatpush.bf16.msra.mxu0 0
  %2342 = vmatpush.bf16.msra.mxu0 %v2304
  %2343 = vmatmul.bf16.gmra.mxu0 %v2295
  %v2344 = vpop.f32.mrf.mxu0
  %v2345 = vadd.f32 0.0, %v2344
  %v2346 = vpop.f32.mrf.mxu0
  %2347 = vdwg.mxu0
  %2348 = vmatpush.bf16.msra.mxu0 0
  %2349 = vmatpush.bf16.msra.mxu0 0
  %2350 = vmatpush.bf16.msra.mxu0 0
  %2351 = vmatpush.bf16.msra.mxu0 0
  %2352 = vmatpush.bf16.msra.mxu0 0
  %2353 = vmatpush.bf16.msra.mxu0 0
  %2354 = vmatpush.bf16.msra.mxu0 0
  %2355 = vmatpush.bf16.msra.mxu0 %v2307
  %2356 = vmatmul.bf16.gmra.mxu0 %v2295
  %v2357 = vpop.f32.mrf.mxu0
  %v2358 = vadd.f32 0.0, %v2357
  %v2359 = vpop.f32.mrf.mxu0
  %2360 = vdwg.mxu0
  %v2361 = vadd.f32 %v2207, %v2319
  %v2362 = vadd.f32 %v2208, %v2332
  %v2363 = vadd.f32 %v2209, %v2345
  %v2364 = vadd.f32 %v2210, %v2358
  %v2365 = vshrl.u32 %v2219, 16
  %v2366 = vpack.i.b16 %v2365, %v2365
  %v2368 = vperm.slane %v2366, 3
  %v2369 = vshrl.u32 %v2220, 16
  %v2370 = vpack.i.b16 %v2369, %v2369
  %v2372 = vperm.slane %v2370, 3
  %v2373 = vshrl.u32 %v2221, 16
  %v2374 = vpack.i.b16 %v2373, %v2373
  %v2376 = vperm.slane %v2374, 3
  %v2377 = vshrl.u32 %v2222, 16
  %v2378 = vpack.i.b16 %v2377, %v2377
  %v2380 = vperm.slane %v2378, 3
  %v2381 = vunpack.c.l.bf16 %v2368
  %v2382 = vunpack.c.l.bf16 %v2372
  %v2383 = vunpack.c.l.bf16 %v2376
  %v2384 = vunpack.c.l.bf16 %v2380
  %2389 = vrot.lane.b32.xlu0 %v2381, 16
  %v2390 = vpop.permute.xlu0 %2389
  %2391 = vrot.lane.b32.xlu0 %v2382, 16
  %v2392 = vpop.permute.xlu0 %2391
  %2393 = vrot.lane.b32.xlu0 %v2383, 16
  %v2394 = vpop.permute.xlu0 %2393
  %2395 = vrot.lane.b32.xlu0 %v2384, 16
  %v2396 = vpop.permute.xlu0 %2395
  %v2397 = vsel %vm1083, %v2390, %v2392
  %v2398 = vsel %vm1083, %v2392, %v2394
  %v2399 = vsel %vm1083, %v2394, %v2396
  %v2405 = vmul.f32 %v2080, %v2390
  %v2406 = vmul.f32 %v2081, %v2397
  %v2407 = vmul.f32 %v2082, %v2398
  %v2408 = vmul.f32 %v2083, %v2399
  %v2409 = vmul.f32 %v2084, %v2396
  %v2410 = vpack.c.bf16 %v2405, %v2405
  %v2411 = vpack.c.bf16 %v2406, %v2406
  %v2412 = vpack.c.bf16 %v2407, %v2407
  %v2413 = vpack.c.bf16 %v2408, %v2408
  %v2414 = vpack.c.bf16 %v2409, %v2409
  %s2415 = scalar_lea.vmem %s2, 28
  %v2416 = vld [vmem:[%s2415] sm:$0xf]
  %2422 = vrot.lane.b32.xlu0 %v2410, 112
  %v2423 = vpop.permute.xlu0 %2422
  %2424 = vrot.lane.b32.xlu0 %v2411, 112
  %v2425 = vpop.permute.xlu0 %2424
  %2426 = vrot.lane.b32.xlu0 %v2412, 112
  %v2427 = vpop.permute.xlu0 %2426
  %2428 = vrot.lane.b32.xlu0 %v2413, 112
  %v2429 = vpop.permute.xlu0 %2428
  %2430 = vrot.lane.b32.xlu0 %v2414, 112
  %v2431 = vpop.permute.xlu0 %2430
  %v2432 = vsel %vm1119, %v2423, %v2425
  %v2433 = vsel %vm1119, %v2425, %v2427
  %v2434 = vsel %vm1119, %v2427, %v2429
  %v2435 = vsel %vm1119, %v2429, %v2431
  %v2437 = vsel %vm186, %v2416, 0
  %v2440 = vsel %vm190, %v2432, 0
  %v2443 = vsel %vm190, %v2433, 0
  %v2446 = vsel %vm190, %v2434, 0
  %v2449 = vsel %vm190, %v2435, 0
  %2451 = vmatpush.bf16.msra.mxu0 0
  %2452 = vmatpush.bf16.msra.mxu0 0
  %2453 = vmatpush.bf16.msra.mxu0 0
  %2454 = vmatpush.bf16.msra.mxu0 0
  %2455 = vmatpush.bf16.msra.mxu0 0
  %2456 = vmatpush.bf16.msra.mxu0 0
  %2457 = vmatpush.bf16.msra.mxu0 0
  %2458 = vmatpush.bf16.msra.mxu0 %v2440
  %2459 = vmatmul.bf16.gmra.mxu0 %v2437
  %v2460 = vpop.f32.mrf.mxu0
  %v2461 = vadd.f32 0.0, %v2460
  %v2462 = vpop.f32.mrf.mxu0
  %2463 = vdwg.mxu0
  %2464 = vmatpush.bf16.msra.mxu0 0
  %2465 = vmatpush.bf16.msra.mxu0 0
  %2466 = vmatpush.bf16.msra.mxu0 0
  %2467 = vmatpush.bf16.msra.mxu0 0
  %2468 = vmatpush.bf16.msra.mxu0 0
  %2469 = vmatpush.bf16.msra.mxu0 0
  %2470 = vmatpush.bf16.msra.mxu0 0
  %2471 = vmatpush.bf16.msra.mxu0 %v2443
  %2472 = vmatmul.bf16.gmra.mxu0 %v2437
  %v2473 = vpop.f32.mrf.mxu0
  %v2474 = vadd.f32 0.0, %v2473
  %v2475 = vpop.f32.mrf.mxu0
  %2476 = vdwg.mxu0
  %2477 = vmatpush.bf16.msra.mxu0 0
  %2478 = vmatpush.bf16.msra.mxu0 0
  %2479 = vmatpush.bf16.msra.mxu0 0
  %2480 = vmatpush.bf16.msra.mxu0 0
  %2481 = vmatpush.bf16.msra.mxu0 0
  %2482 = vmatpush.bf16.msra.mxu0 0
  %2483 = vmatpush.bf16.msra.mxu0 0
  %2484 = vmatpush.bf16.msra.mxu0 %v2446
  %2485 = vmatmul.bf16.gmra.mxu0 %v2437
  %v2486 = vpop.f32.mrf.mxu0
  %v2487 = vadd.f32 0.0, %v2486
  %v2488 = vpop.f32.mrf.mxu0
  %2489 = vdwg.mxu0
  %2490 = vmatpush.bf16.msra.mxu0 0
  %2491 = vmatpush.bf16.msra.mxu0 0
  %2492 = vmatpush.bf16.msra.mxu0 0
  %2493 = vmatpush.bf16.msra.mxu0 0
  %2494 = vmatpush.bf16.msra.mxu0 0
  %2495 = vmatpush.bf16.msra.mxu0 0
  %2496 = vmatpush.bf16.msra.mxu0 0
  %2497 = vmatpush.bf16.msra.mxu0 %v2449
  %2498 = vmatmul.bf16.gmra.mxu0 %v2437
  %v2499 = vpop.f32.mrf.mxu0
  %v2500 = vadd.f32 0.0, %v2499
  %v2501 = vpop.f32.mrf.mxu0
  %2502 = vdwg.mxu0
  %v2503 = vadd.f32 %v2361, %v2461
  %v2504 = vadd.f32 %v2362, %v2474
  %v2505 = vadd.f32 %v2363, %v2487
  %v2506 = vadd.f32 %v2364, %v2500
  %v2507 = vld [vmem:[%s5 + $0x10] sm:$0x11]
  %v2508 = vld [vmem:[%s5 + $0x18] sm:$0x11]
  %v2511 = vunpack.c.l.b16 %v2507
  %v2512 = vunpack.c.h.b16 %v2507
  %v2513 = vunpack.c.l.b16 %v2508
  %v2514 = vunpack.c.h.b16 %v2508
  %v2515 = vpack.c.b16 %v2511, %v2511
  %v2516 = vpack.c.b16 %v2512, %v2512
  %v2517 = vpack.c.b16 %v2513, %v2513
  %v2518 = vpack.c.b16 %v2514, %v2514
  %v2520 = vpack.i.b16 %v2515, %v2515
  %v2522 = vperm.slane %v2520, 0
  %v2524 = vpack.i.b16 %v2516, %v2516
  %v2526 = vperm.slane %v2524, 0
  %v2528 = vpack.i.b16 %v2517, %v2517
  %v2530 = vperm.slane %v2528, 0
  %v2532 = vpack.i.b16 %v2518, %v2518
  %v2534 = vperm.slane %v2532, 0
  %v2535 = vunpack.c.l.bf16 %v2522
  %v2536 = vunpack.c.l.bf16 %v2526
  %v2537 = vunpack.c.l.bf16 %v2530
  %v2538 = vunpack.c.l.bf16 %v2534
  %2543 = vrot.lane.b32.xlu0 %v2535, 17
  %v2544 = vpop.permute.xlu0 %2543
  %2545 = vrot.lane.b32.xlu0 %v2536, 17
  %v2546 = vpop.permute.xlu0 %2545
  %2547 = vrot.lane.b32.xlu0 %v2537, 17
  %v2548 = vpop.permute.xlu0 %2547
  %2549 = vrot.lane.b32.xlu0 %v2538, 17
  %v2550 = vpop.permute.xlu0 %2549
  %v2551 = vsel %vm1239, %v2544, %v2546
  %v2552 = vsel %vm1239, %v2546, %v2548
  %v2553 = vsel %vm1239, %v2548, %v2550
  %v2559 = vmul.f32 %v2080, %v2544
  %v2560 = vmul.f32 %v2081, %v2551
  %v2561 = vmul.f32 %v2082, %v2552
  %v2562 = vmul.f32 %v2083, %v2553
  %v2563 = vmul.f32 %v2084, %v2550
  %v2564 = vpack.c.bf16 %v2559, %v2559
  %v2565 = vpack.c.bf16 %v2560, %v2560
  %v2566 = vpack.c.bf16 %v2561, %v2561
  %v2567 = vpack.c.bf16 %v2562, %v2562
  %v2568 = vpack.c.bf16 %v2563, %v2563
  %s2569 = scalar_lea.vmem %s2, 32
  %v2570 = vld [vmem:[%s2569] sm:$0xf]
  %2576 = vrot.lane.b32.xlu0 %v2564, 111
  %v2577 = vpop.permute.xlu0 %2576
  %2578 = vrot.lane.b32.xlu0 %v2565, 111
  %v2579 = vpop.permute.xlu0 %2578
  %2580 = vrot.lane.b32.xlu0 %v2566, 111
  %v2581 = vpop.permute.xlu0 %2580
  %2582 = vrot.lane.b32.xlu0 %v2567, 111
  %v2583 = vpop.permute.xlu0 %2582
  %2584 = vrot.lane.b32.xlu0 %v2568, 111
  %v2585 = vpop.permute.xlu0 %2584
  %v2586 = vsel %vm1275, %v2577, %v2579
  %v2587 = vsel %vm1275, %v2579, %v2581
  %v2588 = vsel %vm1275, %v2581, %v2583
  %v2589 = vsel %vm1275, %v2583, %v2585
  %v2591 = vsel %vm186, %v2570, 0
  %v2594 = vsel %vm190, %v2586, 0
  %v2597 = vsel %vm190, %v2587, 0
  %v2600 = vsel %vm190, %v2588, 0
  %v2603 = vsel %vm190, %v2589, 0
  %2605 = vmatpush.bf16.msra.mxu0 0
  %2606 = vmatpush.bf16.msra.mxu0 0
  %2607 = vmatpush.bf16.msra.mxu0 0
  %2608 = vmatpush.bf16.msra.mxu0 0
  %2609 = vmatpush.bf16.msra.mxu0 0
  %2610 = vmatpush.bf16.msra.mxu0 0
  %2611 = vmatpush.bf16.msra.mxu0 0
  %2612 = vmatpush.bf16.msra.mxu0 %v2594
  %2613 = vmatmul.bf16.gmra.mxu0 %v2591
  %v2614 = vpop.f32.mrf.mxu0
  %v2615 = vadd.f32 0.0, %v2614
  %v2616 = vpop.f32.mrf.mxu0
  %2617 = vdwg.mxu0
  %2618 = vmatpush.bf16.msra.mxu0 0
  %2619 = vmatpush.bf16.msra.mxu0 0
  %2620 = vmatpush.bf16.msra.mxu0 0
  %2621 = vmatpush.bf16.msra.mxu0 0
  %2622 = vmatpush.bf16.msra.mxu0 0
  %2623 = vmatpush.bf16.msra.mxu0 0
  %2624 = vmatpush.bf16.msra.mxu0 0
  %2625 = vmatpush.bf16.msra.mxu0 %v2597
  %2626 = vmatmul.bf16.gmra.mxu0 %v2591
  %v2627 = vpop.f32.mrf.mxu0
  %v2628 = vadd.f32 0.0, %v2627
  %v2629 = vpop.f32.mrf.mxu0
  %2630 = vdwg.mxu0
  %2631 = vmatpush.bf16.msra.mxu0 0
  %2632 = vmatpush.bf16.msra.mxu0 0
  %2633 = vmatpush.bf16.msra.mxu0 0
  %2634 = vmatpush.bf16.msra.mxu0 0
  %2635 = vmatpush.bf16.msra.mxu0 0
  %2636 = vmatpush.bf16.msra.mxu0 0
  %2637 = vmatpush.bf16.msra.mxu0 0
  %2638 = vmatpush.bf16.msra.mxu0 %v2600
  %2639 = vmatmul.bf16.gmra.mxu0 %v2591
  %v2640 = vpop.f32.mrf.mxu0
  %v2641 = vadd.f32 0.0, %v2640
  %v2642 = vpop.f32.mrf.mxu0
  %2643 = vdwg.mxu0
  %2644 = vmatpush.bf16.msra.mxu0 0
  %2645 = vmatpush.bf16.msra.mxu0 0
  %2646 = vmatpush.bf16.msra.mxu0 0
  %2647 = vmatpush.bf16.msra.mxu0 0
  %2648 = vmatpush.bf16.msra.mxu0 0
  %2649 = vmatpush.bf16.msra.mxu0 0
  %2650 = vmatpush.bf16.msra.mxu0 0
  %2651 = vmatpush.bf16.msra.mxu0 %v2603
  %2652 = vmatmul.bf16.gmra.mxu0 %v2591
  %v2653 = vpop.f32.mrf.mxu0
  %v2654 = vadd.f32 0.0, %v2653
  %v2655 = vpop.f32.mrf.mxu0
  %2656 = vdwg.mxu0
  %v2657 = vadd.f32 %v2503, %v2615
  %v2658 = vadd.f32 %v2504, %v2628
  %v2659 = vadd.f32 %v2505, %v2641
  %v2660 = vadd.f32 %v2506, %v2654
  %v2661 = vld [vmem:[%s4] sm:$0xff]
  %2663 = vset.pattern.permute.xlu0 0
  %2664 = vperm.xlu0 %2663, %v2661
  %v2665 = vpop.permute.xlu0 %2664
  %v2667 = vadd.f32 %v2657, %v2665
  %v2668 = vadd.f32 %v2658, %v2665
  %v2669 = vadd.f32 %v2659, %v2665
  %v2670 = vadd.f32 %v2660, %v2665
  %v2671 = vmax.f32 %v2667, 0.0
  %v2672 = vmax.f32 %v2668, 0.0
  %v2673 = vmax.f32 %v2669, 0.0
  %v2674 = vmax.f32 %v2670, 0.0
  %v2675 = vpack.c.bf16 %v2672, %v2671
  %v2676 = vpack.c.bf16 %v2674, %v2673
  %2677 = vst [vmem:[#allocation2 + $0x4] sm:$0xff] %v2675
  %2678 = vst [vmem:[#allocation2 + $0xc] sm:$0xff] %v2676
  %v2679 = vld [vmem:[#allocation2 + $0x4] sm:$0xff]
  %v2680 = vld [vmem:[#allocation2 + $0xc] sm:$0xff]
  %v2681 = vld [vmem:[#allocation2 + $0x14] sm:$0xf]
  %v2682 = vunpack.c.l.bf16 %v2675
  %v2683 = vunpack.c.h.bf16 %v2675
  %v2684 = vunpack.c.l.bf16 %v2676
  %v2685 = vunpack.c.h.bf16 %v2676
  %v2686 = vunpack.c.l.bf16 %v2679
  %v2687 = vunpack.c.h.bf16 %v2679
  %v2688 = vunpack.c.l.bf16 %v2680
  %v2689 = vunpack.c.h.bf16 %v2680
  %v2690 = vunpack.c.l.bf16 %v2681
  %2696 = vrot.lane.b32.xlu0 %v2686, 127
  %v2697 = vpop.permute.xlu0 %2696
  %2698 = vrot.lane.b32.xlu0 %v2687, 127
  %v2699 = vpop.permute.xlu0 %2698
  %2700 = vrot.lane.b32.xlu0 %v2688, 127
  %v2701 = vpop.permute.xlu0 %2700
  %2702 = vrot.lane.b32.xlu0 %v2689, 127
  %v2703 = vpop.permute.xlu0 %2702
  %2704 = vrot.lane.b32.xlu0 %v2690, 127
  %v2705 = vpop.permute.xlu0 %2704
  %v2706 = vsel %vm530, %v2697, %v2699
  %v2707 = vsel %vm530, %v2699, %v2701
  %v2708 = vsel %vm530, %v2701, %v2703
  %v2709 = vsel %vm530, %v2703, %v2705
  %v2714 = vmax.f32 %v2682, %v2706
  %v2715 = vmax.f32 %v2683, %v2707
  %v2716 = vmax.f32 %v2684, %v2708
  %v2717 = vmax.f32 %v2685, %v2709
  %v2718 = vpack.c.bf16 %v2715, %v2714
  %v2719 = vpack.c.bf16 %v2717, %v2716
  %2720 = vst [vmem:[#allocation2 + $0x4] sm:$0xff] %v2718
  %2721 = vst [vmem:[#allocation2 + $0xc] sm:$0xff] %v2719
  %v2722 = vld [vmem:[#allocation2 + $0x4] sm:$0xff]
  %v2723 = vld [vmem:[#allocation2 + $0xc] sm:$0xff]
  %v2724 = vld [vmem:[#allocation2 + $0x14] sm:$0xf]
  %v2725 = vunpack.c.l.bf16 %v2718
  %v2726 = vunpack.c.h.bf16 %v2718
  %v2727 = vunpack.c.l.bf16 %v2719
  %v2728 = vunpack.c.h.bf16 %v2719
  %v2729 = vunpack.c.l.bf16 %v2722
  %v2730 = vunpack.c.h.bf16 %v2722
  %v2731 = vunpack.c.l.bf16 %v2723
  %v2732 = vunpack.c.h.bf16 %v2723
  %v2733 = vunpack.c.l.bf16 %v2724
  %2739 = vrot.lane.b32.xlu0 %v2729, 112
  %v2740 = vpop.permute.xlu0 %2739
  %2741 = vrot.lane.b32.xlu0 %v2730, 112
  %v2742 = vpop.permute.xlu0 %2741
  %2743 = vrot.lane.b32.xlu0 %v2731, 112
  %v2744 = vpop.permute.xlu0 %2743
  %2745 = vrot.lane.b32.xlu0 %v2732, 112
  %v2746 = vpop.permute.xlu0 %2745
  %2747 = vrot.lane.b32.xlu0 %v2733, 112
  %v2748 = vpop.permute.xlu0 %2747
  %v2749 = vsel %vm145, %v2740, %v2742
  %v2750 = vsel %vm145, %v2742, %v2744
  %v2751 = vsel %vm145, %v2744, %v2746
  %v2752 = vsel %vm145, %v2746, %v2748
  %v2757 = vmax.f32 %v2725, %v2749
  %v2758 = vmax.f32 %v2726, %v2750
  %v2759 = vmax.f32 %v2727, %v2751
  %v2760 = vmax.f32 %v2728, %v2752
  %v2761 = vpack.c.bf16 %v2757, %v2757
  %v2762 = vpack.c.bf16 %v2758, %v2758
  %v2763 = vpack.c.bf16 %v2759, %v2759
  %v2764 = vpack.c.bf16 %v2760, %v2760
  %v2765 = vld [vmem:[%s6] sm:$0xf]
  %v2766 = vld [vmem:[%s6 + $0x4] sm:$0xf]
  %v2767 = vld [vmem:[%s6 + $0x8] sm:$0xf]
  %v2768 = vld [vmem:[%s6 + $0xc] sm:$0xf]
  %v2769 = vld [vmem:[%s6 + $0x10] sm:$0xf]
  %v2770 = vld [vmem:[%s6 + $0x14] sm:$0xf]
  %v2771 = vld [vmem:[%s6 + $0x18] sm:$0xf]
  %v2772 = vld [vmem:[%s6 + $0x1c] sm:$0xf]
  %v2773 = vld [vmem:[%s6 + $0x20] sm:$0xf]
  %v2774 = vld [vmem:[%s6 + $0x24] sm:$0xf]
  %v2775 = vld [vmem:[%s6 + $0x28] sm:$0xf]
  %v2776 = vld [vmem:[%s6 + $0x2c] sm:$0xf]
  %v2777 = vld [vmem:[%s6 + $0x30] sm:$0xf]
  %v2778 = vld [vmem:[%s6 + $0x34] sm:$0xf]
  %v2779 = vld [vmem:[%s6 + $0x38] sm:$0xf]
  %v2780 = vld [vmem:[%s6 + $0x3c] sm:$0xf]
  %v2781 = vld [vmem:[%s6 + $0x40] sm:$0xf]
  %v2782 = vld [vmem:[%s6 + $0x44] sm:$0xf]
  %v2783 = vld [vmem:[%s6 + $0x48] sm:$0xf]
  %v2784 = vld [vmem:[%s6 + $0x4c] sm:$0xf]
  %v2785 = vld [vmem:[%s6 + $0x50] sm:$0xf]
  %v2786 = vld [vmem:[%s6 + $0x54] sm:$0xf]
  %v2787 = vld [vmem:[%s6 + $0x58] sm:$0xf]
  %v2788 = vld [vmem:[%s6 + $0x5c] sm:$0xf]
  %v2789 = vld [vmem:[%s6 + $0x60] sm:$0xf]
  %v2790 = vld [vmem:[%s6 + $0x64] sm:$0xf]
  %v2791 = vld [vmem:[%s6 + $0x68] sm:$0xf]
  %v2792 = vld [vmem:[%s6 + $0x6c] sm:$0xf]
  %v2793 = vld [vmem:[%s6 + $0x70] sm:$0xf]
  %v2794 = vld [vmem:[%s6 + $0x74] sm:$0xf]
  %v2795 = vld [vmem:[%s6 + $0x78] sm:$0xf]
  %v2796 = vld [vmem:[%s6 + $0x7c] sm:$0xf]
  %v2797 = vld [vmem:[%s6 + $0x80] sm:$0xf]
  %v2798 = vld [vmem:[%s6 + $0x84] sm:$0xf]
  %v2799 = vld [vmem:[%s6 + $0x88] sm:$0xf]
  %v2800 = vld [vmem:[%s6 + $0x8c] sm:$0xf]
  %v2801 = vld [vmem:[%s6 + $0x90] sm:$0xf]
  %v2802 = vld [vmem:[%s6 + $0x94] sm:$0xf]
  %v2803 = vld [vmem:[%s6 + $0x98] sm:$0xf]
  %v2804 = vld [vmem:[%s6 + $0x9c] sm:$0xf]
  %v2805 = vld [vmem:[%s6 + $0xa0] sm:$0xf]
  %v2806 = vld [vmem:[%s6 + $0xa4] sm:$0xf]
  %v2807 = vld [vmem:[%s6 + $0xa8] sm:$0xf]
  %v2808 = vld [vmem:[%s6 + $0xac] sm:$0xf]
  %v2809 = vld [vmem:[%s6 + $0xb0] sm:$0xf]
  %v2810 = vld [vmem:[%s6 + $0xb4] sm:$0xf]
  %v2811 = vld [vmem:[%s6 + $0xb8] sm:$0xf]
  %v2812 = vld [vmem:[%s6 + $0xbc] sm:$0xf]
  %v2813 = vld [vmem:[%s6 + $0xc0] sm:$0xf]
  %v2814 = vld [vmem:[%s6 + $0xc4] sm:$0xf]
  %v2815 = vld [vmem:[%s6 + $0xc8] sm:$0xf]
  %v2816 = vld [vmem:[%s6 + $0xcc] sm:$0xf]
  %v2817 = vld [vmem:[%s6 + $0xd0] sm:$0xf]
  %v2818 = vld [vmem:[%s6 + $0xd4] sm:$0xf]
  %v2819 = vld [vmem:[%s6 + $0xd8] sm:$0xf]
  %v2820 = vld [vmem:[%s6 + $0xdc] sm:$0xf]
  %v2821 = vld [vmem:[%s6 + $0xe0] sm:$0xf]
  %v2822 = vld [vmem:[%s6 + $0xe4] sm:$0xf]
  %v2823 = vld [vmem:[%s6 + $0xe8] sm:$0xf]
  %v2824 = vld [vmem:[%s6 + $0xec] sm:$0xf]
  %v2825 = vld [vmem:[%s6 + $0xf0] sm:$0xf]
  %v2826 = vld [vmem:[%s6 + $0xf4] sm:$0xf]
  %v2827 = vld [vmem:[%s6 + $0xf8] sm:$0xf]
  %v2828 = vld [vmem:[%s6 + $0xfc] sm:$0xf]
  %v2893 = vunpack.c.l.b16 %v2765
  %v2894 = vunpack.c.l.b16 %v2766
  %v2895 = vunpack.c.l.b16 %v2767
  %v2896 = vunpack.c.l.b16 %v2768
  %v2897 = vunpack.c.l.b16 %v2769
  %v2898 = vunpack.c.l.b16 %v2770
  %v2899 = vunpack.c.l.b16 %v2771
  %v2900 = vunpack.c.l.b16 %v2772
  %v2901 = vunpack.c.l.b16 %v2773
  %v2902 = vunpack.c.l.b16 %v2774
  %v2903 = vunpack.c.l.b16 %v2775
  %v2904 = vunpack.c.l.b16 %v2776
  %v2905 = vunpack.c.l.b16 %v2777
  %v2906 = vunpack.c.l.b16 %v2778
  %v2907 = vunpack.c.l.b16 %v2779
  %v2908 = vunpack.c.l.b16 %v2780
  %v2909 = vunpack.c.l.b16 %v2781
  %v2910 = vunpack.c.l.b16 %v2782
  %v2911 = vunpack.c.l.b16 %v2783
  %v2912 = vunpack.c.l.b16 %v2784
  %v2913 = vunpack.c.l.b16 %v2785
  %v2914 = vunpack.c.l.b16 %v2786
  %v2915 = vunpack.c.l.b16 %v2787
  %v2916 = vunpack.c.l.b16 %v2788
  %v2917 = vunpack.c.l.b16 %v2789
  %v2918 = vunpack.c.l.b16 %v2790
  %v2919 = vunpack.c.l.b16 %v2791
  %v2920 = vunpack.c.l.b16 %v2792
  %v2921 = vunpack.c.l.b16 %v2793
  %v2922 = vunpack.c.l.b16 %v2794
  %v2923 = vunpack.c.l.b16 %v2795
  %v2924 = vunpack.c.l.b16 %v2796
  %v2925 = vunpack.c.l.b16 %v2797
  %v2926 = vunpack.c.l.b16 %v2798
  %v2927 = vunpack.c.l.b16 %v2799
  %v2928 = vunpack.c.l.b16 %v2800
  %v2929 = vunpack.c.l.b16 %v2801
  %v2930 = vunpack.c.l.b16 %v2802
  %v2931 = vunpack.c.l.b16 %v2803
  %v2932 = vunpack.c.l.b16 %v2804
  %v2933 = vunpack.c.l.b16 %v2805
  %v2934 = vunpack.c.l.b16 %v2806
  %v2935 = vunpack.c.l.b16 %v2807
  %v2936 = vunpack.c.l.b16 %v2808
  %v2937 = vunpack.c.l.b16 %v2809
  %v2938 = vunpack.c.l.b16 %v2810
  %v2939 = vunpack.c.l.b16 %v2811
  %v2940 = vunpack.c.l.b16 %v2812
  %v2941 = vunpack.c.l.b16 %v2813
  %v2942 = vunpack.c.l.b16 %v2814
  %v2943 = vunpack.c.l.b16 %v2815
  %v2944 = vunpack.c.l.b16 %v2816
  %v2945 = vunpack.c.l.b16 %v2817
  %v2946 = vunpack.c.l.b16 %v2818
  %v2947 = vunpack.c.l.b16 %v2819
  %v2948 = vunpack.c.l.b16 %v2820
  %v2949 = vunpack.c.l.b16 %v2821
  %v2950 = vunpack.c.l.b16 %v2822
  %v2951 = vunpack.c.l.b16 %v2823
  %v2952 = vunpack.c.l.b16 %v2824
  %v2953 = vunpack.c.l.b16 %v2825
  %v2954 = vunpack.c.l.b16 %v2826
  %v2955 = vunpack.c.l.b16 %v2827
  %v2956 = vunpack.c.l.b16 %v2828
  %v2957 = vpack.c.b16 %v2894, %v2893
  %v2958 = vpack.c.b16 %v2896, %v2895
  %v2959 = vpack.c.b16 %v2898, %v2897
  %v2960 = vpack.c.b16 %v2900, %v2899
  %v2961 = vpack.c.b16 %v2902, %v2901
  %v2962 = vpack.c.b16 %v2904, %v2903
  %v2963 = vpack.c.b16 %v2906, %v2905
  %v2964 = vpack.c.b16 %v2908, %v2907
  %v2965 = vpack.c.b16 %v2910, %v2909
  %v2966 = vpack.c.b16 %v2912, %v2911
  %v2967 = vpack.c.b16 %v2914, %v2913
  %v2968 = vpack.c.b16 %v2916, %v2915
  %v2969 = vpack.c.b16 %v2918, %v2917
  %v2970 = vpack.c.b16 %v2920, %v2919
  %v2971 = vpack.c.b16 %v2922, %v2921
  %v2972 = vpack.c.b16 %v2924, %v2923
  %v2973 = vpack.c.b16 %v2926, %v2925
  %v2974 = vpack.c.b16 %v2928, %v2927
  %v2975 = vpack.c.b16 %v2930, %v2929
  %v2976 = vpack.c.b16 %v2932, %v2931
  %v2977 = vpack.c.b16 %v2934, %v2933
  %v2978 = vpack.c.b16 %v2936, %v2935
  %v2979 = vpack.c.b16 %v2938, %v2937
  %v2980 = vpack.c.b16 %v2940, %v2939
  %v2981 = vpack.c.b16 %v2942, %v2941
  %v2982 = vpack.c.b16 %v2944, %v2943
  %v2983 = vpack.c.b16 %v2946, %v2945
  %v2984 = vpack.c.b16 %v2948, %v2947
  %v2985 = vpack.c.b16 %v2950, %v2949
  %v2986 = vpack.c.b16 %v2952, %v2951
  %v2987 = vpack.c.b16 %v2954, %v2953
  %v2988 = vpack.c.b16 %v2956, %v2955
  %3021 = vmatpush.bf16.msra.mxu0 %v2964
  %3022 = vmatpush.bf16.msra.mxu0 %v2963
  %3023 = vmatpush.bf16.msra.mxu0 %v2962
  %3024 = vmatpush.bf16.msra.mxu0 %v2961
  %3025 = vmatpush.bf16.msra.mxu0 %v2960
  %3026 = vmatpush.bf16.msra.mxu0 %v2959
  %3027 = vmatpush.bf16.msra.mxu0 %v2958
  %3028 = vmatpush.bf16.msra.mxu0 %v2957
  %3029 = vmatmul.bf16.gmra.mxu0 %v2761
  %v3030 = vpop.f32.mrf.mxu0
  %v3031 = vadd.f32 0.0, %v3030
  %v3032 = vpop.f32.mrf.mxu0
  %3033 = vdwg.mxu0
  %3034 = vmatpush.bf16.msra.mxu0 %v2972
  %3035 = vmatpush.bf16.msra.mxu0 %v2971
  %3036 = vmatpush.bf16.msra.mxu0 %v2970
  %3037 = vmatpush.bf16.msra.mxu0 %v2969
  %3038 = vmatpush.bf16.msra.mxu0 %v2968
  %3039 = vmatpush.bf16.msra.mxu0 %v2967
  %3040 = vmatpush.bf16.msra.mxu0 %v2966
  %3041 = vmatpush.bf16.msra.mxu0 %v2965
  %3042 = vmatmul.bf16.gmra.mxu0 %v2762
  %v3043 = vpop.f32.mrf.mxu0
  %v3044 = vadd.f32 %v3031, %v3043
  %v3045 = vpop.f32.mrf.mxu0
  %3046 = vdwg.mxu0
  %3047 = vmatpush.bf16.msra.mxu0 %v2980
  %3048 = vmatpush.bf16.msra.mxu0 %v2979
  %3049 = vmatpush.bf16.msra.mxu0 %v2978
  %3050 = vmatpush.bf16.msra.mxu0 %v2977
  %3051 = vmatpush.bf16.msra.mxu0 %v2976
  %3052 = vmatpush.bf16.msra.mxu0 %v2975
  %3053 = vmatpush.bf16.msra.mxu0 %v2974
  %3054 = vmatpush.bf16.msra.mxu0 %v2973
  %3055 = vmatmul.bf16.gmra.mxu0 %v2763
  %v3056 = vpop.f32.mrf.mxu0
  %v3057 = vadd.f32 %v3044, %v3056
  %v3058 = vpop.f32.mrf.mxu0
  %3059 = vdwg.mxu0
  %3060 = vmatpush.bf16.msra.mxu0 %v2988
  %3061 = vmatpush.bf16.msra.mxu0 %v2987
  %3062 = vmatpush.bf16.msra.mxu0 %v2986
  %3063 = vmatpush.bf16.msra.mxu0 %v2985
  %3064 = vmatpush.bf16.msra.mxu0 %v2984
  %3065 = vmatpush.bf16.msra.mxu0 %v2983
  %3066 = vmatpush.bf16.msra.mxu0 %v2982
  %3067 = vmatpush.bf16.msra.mxu0 %v2981
  %3068 = vmatmul.bf16.gmra.mxu0 %v2764
  %v3069 = vpop.f32.mrf.mxu0
  %v3070 = vadd.f32 %v3057, %v3069
  %v3071 = vpop.f32.mrf.mxu0
  %3072 = vdwg.mxu0
  %3073 = vst [vmem:[%s7] sm:$0xff] %v3070
  // Predicated region
  $region30: #{conv_classifier_forward.2} parent=0 // pred_check
    _
  $region31: #{conv_classifier_forward.2} parent=0 // pred_check_branch
    %3075 = sbr.rel (0) target = $region33
  $region32: #{conv_classifier_forward.2} parent=0 // pred_region
    _
  $region33: #{conv_classifier_forward.2} parent=0 // pred_fallthru
    _
  // Predicated region
  $region34: #{conv_classifier_forward.2} parent=0 // pred_check
    _
  $region35: #{conv_classifier_forward.2} parent=0 // pred_check_branch
    %3077 = sbr.rel (0) target = $region37
  $region36: #{conv_classifier_forward.2} parent=0 // pred_region
    _
  $region37: #{conv_classifier_forward.2} parent=0 // pred_fallthru
    _

</llo_original>
